<compile_context>
chip_gen: v7x
topology: tpu7x:2x2x1
jax: 0.10.0
libtpu: 0.0.40
codegen_flags: <defaults>
</compile_context>

<pallas_src>
import jax
import jax.numpy as jnp
from jax.experimental import pallas as pl
from jax.experimental.pallas import tpu as pltpu


def moe_packed_kernel(x_ref, w1_ref, b1_ref, w2_ref, b2_ref, w3_ref, b3_ref,
                      o_ref):
    op_dtype = w1_ref.dtype                                  # bf16 or f32
    x = x_ref[...]                                           # [tb, E*Din]
    h = jnp.dot(x, w1_ref[...],
                preferred_element_type=jnp.float32) + b1_ref[...]
    h = jnp.maximum(h, 0.0).astype(op_dtype)                 # [tb, E*H]
    h = jnp.dot(h, w2_ref[...],
                preferred_element_type=jnp.float32) + b2_ref[...]
    h = jnp.maximum(h, 0.0).astype(op_dtype)                 # [tb, E*H]
    out = jnp.dot(h, w3_ref[...],
                  preferred_element_type=jnp.float32) + b3_ref[...]
    o_ref[...] = out.astype(o_ref.dtype)                     # [tb, Dout]


def _block_diag(mats):
    """[E, R, C] -> [E*R, E*C] block-diagonal."""
    E, R, C = mats.shape
    eye = jnp.eye(E, dtype=mats.dtype)
    return (eye[:, None, :, None] * mats[:, :, None, :]).reshape(E * R, E * C)


def pack_params(params, dtype=jnp.bfloat16):
    """Build packed/block-diagonal weight slabs once (not per forward call).

    Weights are stored in `dtype` (bf16 by default: halves HBM traffic and is
    MXU-native); biases stay f32 since they add onto the f32 accumulator.
    """
    w1, b1, w2, b2, w3, b3 = params
    E, Din, H = w1.shape
    Dout = w3.shape[-1]
    w1_bd = _block_diag(w1).astype(dtype)                  # [E*Din, E*H]
    w2_bd = _block_diag(w2).astype(dtype)                  # [E*H,  E*H]
    w3_stk = w3.reshape(E * H, Dout).astype(dtype)         # [E*H,  Dout]
    b1_p = b1.reshape(1, E * H).astype(jnp.float32)        # [1, E*H]
    b2_p = b2.reshape(1, E * H).astype(jnp.float32)        # [1, E*H]
    b3_s = jnp.sum(b3, axis=0, keepdims=True).astype(jnp.float32)  # [1, Dout]
    return (w1_bd, b1_p, w2_bd, b2_p, w3_stk, b3_s)


def _round_up(n, m):
    return ((n + m - 1) // m) * m


def moe_known_cov_forward(x, packed_params, *, block_b=16384,
                          vmem_limit_bytes=48 * 1024 * 1024):
    """x: [B, E, Din] float32.  Returns [B, Dout] float32.

    block_b: max batch tile per grid step.  16384 amortizes the ~0.35 µs/step
      overhead to <~10% on all generations; 32768 is viable on v5e/v6e with a
      larger vmem_limit_bytes, but keep <= 16384 at the 48 MiB limit for v7x.
    """
    w1_bd, b1_p, w2_bd, b2_p, w3_stk, b3_s = packed_params
    B, E, Din = x.shape
    EDin, EH = w1_bd.shape
    Dout = w3_stk.shape[-1]
    assert E * Din == EDin, "packed params do not match input shape"
    op_dtype = w1_bd.dtype

    # [B, E, Din] -> [B, E*Din]: contiguous reshape (no transpose), then cast
    # to the operand dtype (bf16 by default -> halves the dominant HBM read).
    x_packed = x.reshape(B, EDin).astype(op_dtype)

    # Always use the tiled/pipelined path: pick a tile and zero-pad the batch
    # up to a multiple of it (zero rows are harmless and sliced off below).
    tb = min(block_b, _round_up(B, 1024))
    Bp = _round_up(B, tb)
    if Bp != B:
        x_packed = jnp.pad(x_packed, ((0, Bp - B), (0, 0)))

    grid = (Bp // tb,)
    grid_spec = pltpu.PrefetchScalarGridSpec(
        num_scalar_prefetch=0,
        grid=grid,
        in_specs=[
            pl.BlockSpec((tb, EDin), lambda i: (i, 0)),   # x tile (streams)
            pl.BlockSpec((EDin, EH), lambda i: (0, 0)),   # constant-index:
            pl.BlockSpec((1, EH),    lambda i: (0, 0)),   #   weights/biases are
            pl.BlockSpec((EH, EH),   lambda i: (0, 0)),   #   fetched once and
            pl.BlockSpec((1, EH),    lambda i: (0, 0)),   #   stay VMEM-resident
            pl.BlockSpec((EH, Dout), lambda i: (0, 0)),
            pl.BlockSpec((1, Dout),  lambda i: (0, 0)),
        ],
        out_specs=pl.BlockSpec((tb, Dout), lambda i: (i, 0)),
    )
    out = pl.pallas_call(
        moe_packed_kernel,
        out_shape=jax.ShapeDtypeStruct((Bp, Dout), jnp.float32),
        grid_spec=grid_spec,
        compiler_params=pltpu.CompilerParams(
            dimension_semantics=("parallel",),
            vmem_limit_bytes=vmem_limit_bytes,
        ),
    )(x_packed, w1_bd, b1_p, w2_bd, b2_p, w3_stk, b3_s)

    return out[:B] if Bp != B else out


def init_params(key, num_experts, expert_input_dim, hidden_dim, output_dim):
    ks = jax.random.split(key, 6)
    scale = 0.1
    w1 = scale * jax.random.normal(
        ks[0], (num_experts, expert_input_dim, hidden_dim), jnp.float32)
    b1 = scale * jax.random.normal(
        ks[1], (num_experts, hidden_dim), jnp.float32)
    w2 = scale * jax.random.normal(
        ks[2], (num_experts, hidden_dim, hidden_dim), jnp.float32)
    b2 = scale * jax.random.normal(
        ks[3], (num_experts, hidden_dim), jnp.float32)
    w3 = scale * jax.random.normal(
        ks[4], (num_experts, hidden_dim, output_dim), jnp.float32)
    b3 = scale * jax.random.normal(
        ks[5], (num_experts, output_dim), jnp.float32)
    return (w1, b1, w2, b2, w3, b3)


def reference_forward(x, params):
    """Pure-JAX reference matching the PyTorch forward (per-expert loop)."""
    w1, b1, w2, b2, w3, b3 = params
    outs = []
    for i in range(x.shape[1]):
        xi = x[:, i, :]
        h1 = jnp.maximum(xi @ w1[i] + b1[i], 0.0)
        h2 = jnp.maximum(h1 @ w2[i] + b2[i], 0.0)
        outs.append(h2 @ w3[i] + b3[i])
    return jnp.sum(jnp.stack(outs, axis=1), axis=1)


if __name__ == "__main__":
    # Small shapes consistent with the module.
    batch = 8
    num_experts = 4
    feature_dim = 7
    expert_input_dim = feature_dim + 1   # 8
    hidden_dim = 32
    output_dim = 16
    input_dim = 8                        # gate input dim; gate unused in forward

    key = jax.random.PRNGKey(0)
    kx, kp = jax.random.split(key)
    x = jax.random.normal(kx, (batch, num_experts, expert_input_dim),
                          jnp.float32)
    params = init_params(kp, num_experts, expert_input_dim, hidden_dim,
                         output_dim)
    ref = reference_forward(x, params)

    # f32 operand path (tight numerical check of the packing / kernel math).
    packed_f32 = pack_params(params, dtype=jnp.float32)
    out_f32 = jax.block_until_ready(moe_known_cov_forward(x, packed_f32))
    assert out_f32.shape == (batch, output_dim)
    assert jnp.allclose(out_f32, ref, atol=1e-4, rtol=1e-4), \
        "f32 path mismatch vs reference"

    # bf16 operand path (throughput configuration; bf16-class tolerance).
    packed_bf16 = pack_params(params, dtype=jnp.bfloat16)
    out_bf16 = jax.block_until_ready(moe_known_cov_forward(x, packed_bf16))
    assert out_bf16.shape == (batch, output_dim)
    assert jnp.allclose(out_bf16, ref, atol=5e-2, rtol=5e-2), \
        "bf16 path mismatch vs reference"

    print("KERNEL_OK")
</pallas_src>

<mosaic_0001>
module attributes {stable_mosaic.version = 11 : i64} {
  func.func @moe_packed_kernel(%arg0: i32, %arg1: memref<1024x32xf32, #tpu.memory_space<vmem>>, %arg2: memref<32x128xf32, #tpu.memory_space<vmem>>, %arg3: memref<1x128xf32, #tpu.memory_space<vmem>>, %arg4: memref<128x128xf32, #tpu.memory_space<vmem>>, %arg5: memref<1x128xf32, #tpu.memory_space<vmem>>, %arg6: memref<128x16xf32, #tpu.memory_space<vmem>>, %arg7: memref<1x16xf32, #tpu.memory_space<vmem>>, %arg8: memref<1024x16xf32, #tpu.memory_space<vmem>>) attributes {dimension_semantics = [#tpu.dimension_semantics<parallel>], iteration_bounds = array<i64: 1>, scalar_prefetch = 0 : i64, scratch_operands = 0 : i64, tpu.core_type = #tpu.core_type<tc>, window_params = [{transform_indices = @transform_0, window_bounds = array<i64: 1024, 32>}, {pipeline_mode = #tpu.pipeline_mode<synchronous>, transform_indices = @transform_1, window_bounds = array<i64: 32, 128>}, {pipeline_mode = #tpu.pipeline_mode<synchronous>, transform_indices = @transform_2, window_bounds = array<i64: 1, 128>}, {pipeline_mode = #tpu.pipeline_mode<synchronous>, transform_indices = @transform_3, window_bounds = array<i64: 128, 128>}, {pipeline_mode = #tpu.pipeline_mode<synchronous>, transform_indices = @transform_4, window_bounds = array<i64: 1, 128>}, {pipeline_mode = #tpu.pipeline_mode<synchronous>, transform_indices = @transform_5, window_bounds = array<i64: 128, 16>}, {pipeline_mode = #tpu.pipeline_mode<synchronous>, transform_indices = @transform_6, window_bounds = array<i64: 1, 16>}, {transform_indices = @transform_7, window_bounds = array<i64: 1024, 16>}]} {
    %c0 = arith.constant 0 : index
    %c0_0 = arith.constant 0 : index
    %0 = vector.load %arg1[%c0, %c0_0] : memref<1024x32xf32, #tpu.memory_space<vmem>>, vector<1024x32xf32>
    %c0_1 = arith.constant 0 : index
    %c0_2 = arith.constant 0 : index
    %1 = vector.load %arg2[%c0_1, %c0_2] : memref<32x128xf32, #tpu.memory_space<vmem>>, vector<32x128xf32>
    %cst = arith.constant dense<0.000000e+00> : vector<1024x128xf32>
    %2 = tpu.matmul %0, %1, %cst {dimension_numbers = #tpu.dot_dimension_numbers<[1], [0], [0], [1], [0, 0, 1, 1], [], []>} : vector<1024x32xf32>, vector<32x128xf32>, vector<1024x128xf32> -> vector<1024x128xf32>
    %c0_3 = arith.constant 0 : index
    %c0_4 = arith.constant 0 : index
    %3 = vector.load %arg3[%c0_3, %c0_4] : memref<1x128xf32, #tpu.memory_space<vmem>>, vector<1x128xf32>
    %4 = vector.broadcast %3 : vector<1x128xf32> to vector<1024x128xf32>
    %5 = arith.addf %2, %4 : vector<1024x128xf32>
    %cst_5 = arith.constant 0.000000e+00 : f32
    %6 = vector.broadcast %cst_5 : f32 to vector<1024x128xf32>
    %7 = arith.maximumf %5, %6 : vector<1024x128xf32>
    %c0_6 = arith.constant 0 : index
    %c0_7 = arith.constant 0 : index
    %8 = vector.load %arg4[%c0_6, %c0_7] : memref<128x128xf32, #tpu.memory_space<vmem>>, vector<128x128xf32>
    %cst_8 = arith.constant dense<0.000000e+00> : vector<1024x128xf32>
    %9 = tpu.matmul %7, %8, %cst_8 {dimension_numbers = #tpu.dot_dimension_numbers<[1], [0], [0], [1], [0, 0, 1, 1], [], []>} : vector<1024x128xf32>, vector<128x128xf32>, vector<1024x128xf32> -> vector<1024x128xf32>
    %c0_9 = arith.constant 0 : index
    %c0_10 = arith.constant 0 : index
    %10 = vector.load %arg5[%c0_9, %c0_10] : memref<1x128xf32, #tpu.memory_space<vmem>>, vector<1x128xf32>
    %11 = vector.broadcast %10 : vector<1x128xf32> to vector<1024x128xf32>
    %12 = arith.addf %9, %11 : vector<1024x128xf32>
    %cst_11 = arith.constant 0.000000e+00 : f32
    %13 = vector.broadcast %cst_11 : f32 to vector<1024x128xf32>
    %14 = arith.maximumf %12, %13 : vector<1024x128xf32>
    %c0_12 = arith.constant 0 : index
    %c0_13 = arith.constant 0 : index
    %15 = vector.load %arg6[%c0_12, %c0_13] : memref<128x16xf32, #tpu.memory_space<vmem>>, vector<128x16xf32>
    %cst_14 = arith.constant dense<0.000000e+00> : vector<1024x16xf32>
    %16 = tpu.matmul %14, %15, %cst_14 {dimension_numbers = #tpu.dot_dimension_numbers<[1], [0], [0], [1], [0, 0, 1, 1], [], []>} : vector<1024x128xf32>, vector<128x16xf32>, vector<1024x16xf32> -> vector<1024x16xf32>
    %c0_15 = arith.constant 0 : index
    %c0_16 = arith.constant 0 : index
    %17 = vector.load %arg7[%c0_15, %c0_16] : memref<1x16xf32, #tpu.memory_space<vmem>>, vector<1x16xf32>
    %18 = vector.broadcast %17 : vector<1x16xf32> to vector<1024x16xf32>
    %19 = arith.addf %16, %18 : vector<1024x16xf32>
    %c0_17 = arith.constant 0 : index
    %c0_18 = arith.constant 0 : index
    %20 = vector.load %arg8[%c0_17, %c0_18] : memref<1024x16xf32, #tpu.memory_space<vmem>>, vector<1024x16xf32>
    tpu.vector_store %arg8[%c0_17, %c0_18], %19 {strides = array<i32>} : memref<1024x16xf32, #tpu.memory_space<vmem>>, vector<1024x16xf32>,
    return
  }
  func.func @transform_0(%arg0: i32) -> (i32, i32) {
    %c0_i32 = arith.constant 0 : i32
    %c0_i32_0 = arith.constant 0 : i32
    return %arg0, %c0_i32 : i32, i32
  }
  func.func @transform_1(%arg0: i32) -> (i32, i32) {
    %c0_i32 = arith.constant 0 : i32
    %c0_i32_0 = arith.constant 0 : i32
    %c0_i32_1 = arith.constant 0 : i32
    return %c0_i32, %c0_i32_0 : i32, i32
  }
  func.func @transform_2(%arg0: i32) -> (i32, i32) {
    %c0_i32 = arith.constant 0 : i32
    %c0_i32_0 = arith.constant 0 : i32
    %c0_i32_1 = arith.constant 0 : i32
    return %c0_i32, %c0_i32_0 : i32, i32
  }
  func.func @transform_3(%arg0: i32) -> (i32, i32) {
    %c0_i32 = arith.constant 0 : i32
    %c0_i32_0 = arith.constant 0 : i32
    %c0_i32_1 = arith.constant 0 : i32
    return %c0_i32, %c0_i32_0 : i32, i32
  }
  func.func @transform_4(%arg0: i32) -> (i32, i32) {
    %c0_i32 = arith.constant 0 : i32
    %c0_i32_0 = arith.constant 0 : i32
    %c0_i32_1 = arith.constant 0 : i32
    return %c0_i32, %c0_i32_0 : i32, i32
  }
  func.func @transform_5(%arg0: i32) -> (i32, i32) {
    %c0_i32 = arith.constant 0 : i32
    %c0_i32_0 = arith.constant 0 : i32
    %c0_i32_1 = arith.constant 0 : i32
    return %c0_i32, %c0_i32_0 : i32, i32
  }
  func.func @transform_6(%arg0: i32) -> (i32, i32) {
    %c0_i32 = arith.constant 0 : i32
    %c0_i32_0 = arith.constant 0 : i32
    %c0_i32_1 = arith.constant 0 : i32
    return %c0_i32, %c0_i32_0 : i32, i32
  }
  func.func @transform_7(%arg0: i32) -> (i32, i32) {
    %c0_i32 = arith.constant 0 : i32
    %c0_i32_0 = arith.constant 0 : i32
    return %arg0, %c0_i32 : i32, i32
  }
}

</mosaic_0001>

<llo_original>
// kernel: tpu_custom_call.1
$region0: #{tpu_custom_call.1}
  #allocation0 [shape = 'u32[]', space=smem, size = 0x4, offset = 0x4, fixed_abs, tag = 'smem constant byte address 0x4 - core index']
  #allocation1 [shape = 'u32[144,128]{1,0:T(1,128)}', space=vmem, size = 0x12000, scoped, tag = 'internal scratch']
  %s0 = inlined_call_operand.vmem [shape: f32[1024,32], index: 0, kind: input, shape index: {}]
  %s1 = inlined_call_operand.vmem [shape: f32[32,128], index: 1, kind: input, shape index: {}]
  %s2 = inlined_call_operand.vmem [shape: f32[1,128], index: 2, kind: input, shape index: {}]
  %s3 = inlined_call_operand.vmem [shape: f32[128,128], index: 3, kind: input, shape index: {}]
  %s4 = inlined_call_operand.vmem [shape: f32[1,128], index: 4, kind: input, shape index: {}]
  %s5 = inlined_call_operand.vmem [shape: f32[128,16], index: 5, kind: input, shape index: {}]
  %s6 = inlined_call_operand.vmem [shape: f32[1,16], index: 6, kind: input, shape index: {}]
  %s7 = inlined_call_operand.vmem [shape: f32[1024,16], index: 7, kind: output, shape index: {}]
  %s8 = sld [smem:[#allocation0]]
  $region38: #{tpu_custom_call.1} parent=0
    _
  %s10 = ssub.s32 1, %s8
  %s11 = scalar_select 0, %s10, %s8
  // Predicated region
  $region2: #{tpu_custom_call.1} parent=0 // pred_check
    _
  $region3: #{tpu_custom_call.1} parent=0 // pred_check_branch
    %13 = sbr.rel (0) target = $region5
  $region4: #{tpu_custom_call.1} parent=0 // pred_region
    _
  $region5: #{tpu_custom_call.1} parent=0 // pred_fallthru
    _
  // Predicated region
  $region6: #{tpu_custom_call.1} parent=0 // pred_check
    _
  $region7: #{tpu_custom_call.1} parent=0 // pred_check_branch
    %15 = sbr.rel (0) target = $region9
  $region8: #{tpu_custom_call.1} parent=0 // pred_region
    _
  $region9: #{tpu_custom_call.1} parent=0 // pred_fallthru
    _
  // Predicated region
  $region10: #{tpu_custom_call.1} parent=0 // pred_check
    _
  $region11: #{tpu_custom_call.1} parent=0 // pred_check_branch
    %17 = sbr.rel (0) target = $region13
  $region12: #{tpu_custom_call.1} parent=0 // pred_region
    _
  $region13: #{tpu_custom_call.1} parent=0 // pred_fallthru
    _
  // Predicated region
  $region14: #{tpu_custom_call.1} parent=0 // pred_check
    _
  $region15: #{tpu_custom_call.1} parent=0 // pred_check_branch
    %19 = sbr.rel (0) target = $region17
  $region16: #{tpu_custom_call.1} parent=0 // pred_region
    _
  $region17: #{tpu_custom_call.1} parent=0 // pred_fallthru
    _
  // Predicated region
  $region18: #{tpu_custom_call.1} parent=0 // pred_check
    _
  $region19: #{tpu_custom_call.1} parent=0 // pred_check_branch
    %21 = sbr.rel (0) target = $region21
  $region20: #{tpu_custom_call.1} parent=0 // pred_region
    _
  $region21: #{tpu_custom_call.1} parent=0 // pred_fallthru
    _
  // Predicated region
  $region22: #{tpu_custom_call.1} parent=0 // pred_check
    _
  $region23: #{tpu_custom_call.1} parent=0 // pred_check_branch
    %23 = sbr.rel (0) target = $region25
  $region24: #{tpu_custom_call.1} parent=0 // pred_region
    _
  $region25: #{tpu_custom_call.1} parent=0 // pred_fallthru
    _
  // Predicated region
  $region26: #{tpu_custom_call.1} parent=0 // pred_check
    _
  $region27: #{tpu_custom_call.1} parent=0 // pred_check_branch
    %25 = sbr.rel (0) target = $region29
  $region28: #{tpu_custom_call.1} parent=0 // pred_region
    _
  $region29: #{tpu_custom_call.1} parent=0 // pred_fallthru
    _
  %v26 = vld [vmem:[%s0] sm:$0xff]
  %v27 = vld [vmem:[%s0 + $0x8] sm:$0xff]
  %v28 = vld [vmem:[%s0 + $0x10] sm:$0xff]
  %v29 = vld [vmem:[%s0 + $0x18] sm:$0xff]
  %v30 = vld [vmem:[%s0 + $0x20] sm:$0xff]
  %v31 = vld [vmem:[%s0 + $0x28] sm:$0xff]
  %v32 = vld [vmem:[%s0 + $0x30] sm:$0xff]
  %v33 = vld [vmem:[%s0 + $0x38] sm:$0xff]
  %v34 = vld [vmem:[%s0 + $0x40] sm:$0xff]
  %v35 = vld [vmem:[%s0 + $0x48] sm:$0xff]
  %v36 = vld [vmem:[%s0 + $0x50] sm:$0xff]
  %v37 = vld [vmem:[%s0 + $0x58] sm:$0xff]
  %v38 = vld [vmem:[%s0 + $0x60] sm:$0xff]
  %v39 = vld [vmem:[%s0 + $0x68] sm:$0xff]
  %v40 = vld [vmem:[%s0 + $0x70] sm:$0xff]
  %v41 = vld [vmem:[%s0 + $0x78] sm:$0xff]
  %v42 = vld [vmem:[%s0 + $0x80] sm:$0xff]
  %v43 = vld [vmem:[%s0 + $0x88] sm:$0xff]
  %v44 = vld [vmem:[%s0 + $0x90] sm:$0xff]
  %v45 = vld [vmem:[%s0 + $0x98] sm:$0xff]
  %v46 = vld [vmem:[%s0 + $0xa0] sm:$0xff]
  %v47 = vld [vmem:[%s0 + $0xa8] sm:$0xff]
  %v48 = vld [vmem:[%s0 + $0xb0] sm:$0xff]
  %v49 = vld [vmem:[%s0 + $0xb8] sm:$0xff]
  %v50 = vld [vmem:[%s0 + $0xc0] sm:$0xff]
  %v51 = vld [vmem:[%s0 + $0xc8] sm:$0xff]
  %v52 = vld [vmem:[%s0 + $0xd0] sm:$0xff]
  %v53 = vld [vmem:[%s0 + $0xd8] sm:$0xff]
  %v54 = vld [vmem:[%s0 + $0xe0] sm:$0xff]
  %v55 = vld [vmem:[%s0 + $0xe8] sm:$0xff]
  %v56 = vld [vmem:[%s0 + $0xf0] sm:$0xff]
  %v57 = vld [vmem:[%s0 + $0xf8] sm:$0xff]
  %v58 = vld [vmem:[%s0 + $0x100] sm:$0xff]
  %v59 = vld [vmem:[%s0 + $0x108] sm:$0xff]
  %v60 = vld [vmem:[%s0 + $0x110] sm:$0xff]
  %v61 = vld [vmem:[%s0 + $0x118] sm:$0xff]
  %v62 = vld [vmem:[%s0 + $0x120] sm:$0xff]
  %v63 = vld [vmem:[%s0 + $0x128] sm:$0xff]
  %v64 = vld [vmem:[%s0 + $0x130] sm:$0xff]
  %v65 = vld [vmem:[%s0 + $0x138] sm:$0xff]
  %v66 = vld [vmem:[%s0 + $0x140] sm:$0xff]
  %v67 = vld [vmem:[%s0 + $0x148] sm:$0xff]
  %v68 = vld [vmem:[%s0 + $0x150] sm:$0xff]
  %v69 = vld [vmem:[%s0 + $0x158] sm:$0xff]
  %v70 = vld [vmem:[%s0 + $0x160] sm:$0xff]
  %v71 = vld [vmem:[%s0 + $0x168] sm:$0xff]
  %v72 = vld [vmem:[%s0 + $0x170] sm:$0xff]
  %v73 = vld [vmem:[%s0 + $0x178] sm:$0xff]
  %v74 = vld [vmem:[%s0 + $0x180] sm:$0xff]
  %v75 = vld [vmem:[%s0 + $0x188] sm:$0xff]
  %v76 = vld [vmem:[%s0 + $0x190] sm:$0xff]
  %v77 = vld [vmem:[%s0 + $0x198] sm:$0xff]
  %v78 = vld [vmem:[%s0 + $0x1a0] sm:$0xff]
  %v79 = vld [vmem:[%s0 + $0x1a8] sm:$0xff]
  %v80 = vld [vmem:[%s0 + $0x1b0] sm:$0xff]
  %v81 = vld [vmem:[%s0 + $0x1b8] sm:$0xff]
  %v82 = vld [vmem:[%s0 + $0x1c0] sm:$0xff]
  %v83 = vld [vmem:[%s0 + $0x1c8] sm:$0xff]
  %v84 = vld [vmem:[%s0 + $0x1d0] sm:$0xff]
  %v85 = vld [vmem:[%s0 + $0x1d8] sm:$0xff]
  %v86 = vld [vmem:[%s0 + $0x1e0] sm:$0xff]
  %v87 = vld [vmem:[%s0 + $0x1e8] sm:$0xff]
  %v88 = vld [vmem:[%s0 + $0x1f0] sm:$0xff]
  %v89 = vld [vmem:[%s0 + $0x1f8] sm:$0xff]
  %v90 = vld [vmem:[%s0 + $0x200] sm:$0xff]
  %v91 = vld [vmem:[%s0 + $0x208] sm:$0xff]
  %v92 = vld [vmem:[%s0 + $0x210] sm:$0xff]
  %v93 = vld [vmem:[%s0 + $0x218] sm:$0xff]
  %v94 = vld [vmem:[%s0 + $0x220] sm:$0xff]
  %v95 = vld [vmem:[%s0 + $0x228] sm:$0xff]
  %v96 = vld [vmem:[%s0 + $0x230] sm:$0xff]
  %v97 = vld [vmem:[%s0 + $0x238] sm:$0xff]
  %v98 = vld [vmem:[%s0 + $0x240] sm:$0xff]
  %v99 = vld [vmem:[%s0 + $0x248] sm:$0xff]
  %v100 = vld [vmem:[%s0 + $0x250] sm:$0xff]
  %v101 = vld [vmem:[%s0 + $0x258] sm:$0xff]
  %v102 = vld [vmem:[%s0 + $0x260] sm:$0xff]
  %v103 = vld [vmem:[%s0 + $0x268] sm:$0xff]
  %v104 = vld [vmem:[%s0 + $0x270] sm:$0xff]
  %v105 = vld [vmem:[%s0 + $0x278] sm:$0xff]
  %v106 = vld [vmem:[%s0 + $0x280] sm:$0xff]
  %v107 = vld [vmem:[%s0 + $0x288] sm:$0xff]
  %v108 = vld [vmem:[%s0 + $0x290] sm:$0xff]
  %v109 = vld [vmem:[%s0 + $0x298] sm:$0xff]
  %v110 = vld [vmem:[%s0 + $0x2a0] sm:$0xff]
  %v111 = vld [vmem:[%s0 + $0x2a8] sm:$0xff]
  %v112 = vld [vmem:[%s0 + $0x2b0] sm:$0xff]
  %v113 = vld [vmem:[%s0 + $0x2b8] sm:$0xff]
  %v114 = vld [vmem:[%s0 + $0x2c0] sm:$0xff]
  %v115 = vld [vmem:[%s0 + $0x2c8] sm:$0xff]
  %v116 = vld [vmem:[%s0 + $0x2d0] sm:$0xff]
  %v117 = vld [vmem:[%s0 + $0x2d8] sm:$0xff]
  %v118 = vld [vmem:[%s0 + $0x2e0] sm:$0xff]
  %v119 = vld [vmem:[%s0 + $0x2e8] sm:$0xff]
  %v120 = vld [vmem:[%s0 + $0x2f0] sm:$0xff]
  %v121 = vld [vmem:[%s0 + $0x2f8] sm:$0xff]
  %v122 = vld [vmem:[%s0 + $0x300] sm:$0xff]
  %v123 = vld [vmem:[%s0 + $0x308] sm:$0xff]
  %v124 = vld [vmem:[%s0 + $0x310] sm:$0xff]
  %v125 = vld [vmem:[%s0 + $0x318] sm:$0xff]
  %v126 = vld [vmem:[%s0 + $0x320] sm:$0xff]
  %v127 = vld [vmem:[%s0 + $0x328] sm:$0xff]
  %v128 = vld [vmem:[%s0 + $0x330] sm:$0xff]
  %v129 = vld [vmem:[%s0 + $0x338] sm:$0xff]
  %v130 = vld [vmem:[%s0 + $0x340] sm:$0xff]
  %v131 = vld [vmem:[%s0 + $0x348] sm:$0xff]
  %v132 = vld [vmem:[%s0 + $0x350] sm:$0xff]
  %v133 = vld [vmem:[%s0 + $0x358] sm:$0xff]
  %v134 = vld [vmem:[%s0 + $0x360] sm:$0xff]
  %v135 = vld [vmem:[%s0 + $0x368] sm:$0xff]
  %v136 = vld [vmem:[%s0 + $0x370] sm:$0xff]
  %v137 = vld [vmem:[%s0 + $0x378] sm:$0xff]
  %v138 = vld [vmem:[%s0 + $0x380] sm:$0xff]
  %v139 = vld [vmem:[%s0 + $0x388] sm:$0xff]
  %v140 = vld [vmem:[%s0 + $0x390] sm:$0xff]
  %v141 = vld [vmem:[%s0 + $0x398] sm:$0xff]
  %v142 = vld [vmem:[%s0 + $0x3a0] sm:$0xff]
  %v143 = vld [vmem:[%s0 + $0x3a8] sm:$0xff]
  %v144 = vld [vmem:[%s0 + $0x3b0] sm:$0xff]
  %v145 = vld [vmem:[%s0 + $0x3b8] sm:$0xff]
  %v146 = vld [vmem:[%s0 + $0x3c0] sm:$0xff]
  %v147 = vld [vmem:[%s0 + $0x3c8] sm:$0xff]
  %v148 = vld [vmem:[%s0 + $0x3d0] sm:$0xff]
  %v149 = vld [vmem:[%s0 + $0x3d8] sm:$0xff]
  %v150 = vld [vmem:[%s0 + $0x3e0] sm:$0xff]
  %v151 = vld [vmem:[%s0 + $0x3e8] sm:$0xff]
  %v152 = vld [vmem:[%s0 + $0x3f0] sm:$0xff]
  %v153 = vld [vmem:[%s0 + $0x3f8] sm:$0xff]
  %v154 = vld [vmem:[%s1] sm:$0xff]
  %v155 = vld [vmem:[%s1 + $0x8] sm:$0xff]
  %v156 = vld [vmem:[%s1 + $0x10] sm:$0xff]
  %v157 = vld [vmem:[%s1 + $0x18] sm:$0xff]
  %v158 = vld [vmem:[%s2] sm:$0x1]
  %v160 = vlaneseq
  %v161 = vshrl.u32 %v160, 7
  %v162 = vsub.s32 0, %v161
  %v163 = vrot.slane %v158, %v162
  %vm165 = vcmask 261120
  %v167 = vsel %vm165, %v26, 0
  %v170 = vsel %vm165, %v27, 0
  %v173 = vsel %vm165, %v28, 0
  %v176 = vsel %vm165, %v29, 0
  %v179 = vsel %vm165, %v30, 0
  %v182 = vsel %vm165, %v31, 0
  %v185 = vsel %vm165, %v32, 0
  %v188 = vsel %vm165, %v33, 0
  %v191 = vsel %vm165, %v34, 0
  %v194 = vsel %vm165, %v35, 0
  %v197 = vsel %vm165, %v36, 0
  %v200 = vsel %vm165, %v37, 0
  %v203 = vsel %vm165, %v38, 0
  %v206 = vsel %vm165, %v39, 0
  %v209 = vsel %vm165, %v40, 0
  %v212 = vsel %vm165, %v41, 0
  %v215 = vsel %vm165, %v42, 0
  %v218 = vsel %vm165, %v43, 0
  %v221 = vsel %vm165, %v44, 0
  %v224 = vsel %vm165, %v45, 0
  %v227 = vsel %vm165, %v46, 0
  %v230 = vsel %vm165, %v47, 0
  %v233 = vsel %vm165, %v48, 0
  %v236 = vsel %vm165, %v49, 0
  %v239 = vsel %vm165, %v50, 0
  %v242 = vsel %vm165, %v51, 0
  %v245 = vsel %vm165, %v52, 0
  %v248 = vsel %vm165, %v53, 0
  %v251 = vsel %vm165, %v54, 0
  %v254 = vsel %vm165, %v55, 0
  %v257 = vsel %vm165, %v56, 0
  %v260 = vsel %vm165, %v57, 0
  %v263 = vsel %vm165, %v58, 0
  %v266 = vsel %vm165, %v59, 0
  %v269 = vsel %vm165, %v60, 0
  %v272 = vsel %vm165, %v61, 0
  %v275 = vsel %vm165, %v62, 0
  %v278 = vsel %vm165, %v63, 0
  %v281 = vsel %vm165, %v64, 0
  %v284 = vsel %vm165, %v65, 0
  %v287 = vsel %vm165, %v66, 0
  %v290 = vsel %vm165, %v67, 0
  %v293 = vsel %vm165, %v68, 0
  %v296 = vsel %vm165, %v69, 0
  %v299 = vsel %vm165, %v70, 0
  %v302 = vsel %vm165, %v71, 0
  %v305 = vsel %vm165, %v72, 0
  %v308 = vsel %vm165, %v73, 0
  %v311 = vsel %vm165, %v74, 0
  %v314 = vsel %vm165, %v75, 0
  %v317 = vsel %vm165, %v76, 0
  %v320 = vsel %vm165, %v77, 0
  %v323 = vsel %vm165, %v78, 0
  %v326 = vsel %vm165, %v79, 0
  %v329 = vsel %vm165, %v80, 0
  %v332 = vsel %vm165, %v81, 0
  %v335 = vsel %vm165, %v82, 0
  %v338 = vsel %vm165, %v83, 0
  %v341 = vsel %vm165, %v84, 0
  %v344 = vsel %vm165, %v85, 0
  %v347 = vsel %vm165, %v86, 0
  %v350 = vsel %vm165, %v87, 0
  %v353 = vsel %vm165, %v88, 0
  %v356 = vsel %vm165, %v89, 0
  %v359 = vsel %vm165, %v90, 0
  %v362 = vsel %vm165, %v91, 0
  %v365 = vsel %vm165, %v92, 0
  %v368 = vsel %vm165, %v93, 0
  %v371 = vsel %vm165, %v94, 0
  %v374 = vsel %vm165, %v95, 0
  %v377 = vsel %vm165, %v96, 0
  %v380 = vsel %vm165, %v97, 0
  %v383 = vsel %vm165, %v98, 0
  %v386 = vsel %vm165, %v99, 0
  %v389 = vsel %vm165, %v100, 0
  %v392 = vsel %vm165, %v101, 0
  %v395 = vsel %vm165, %v102, 0
  %v398 = vsel %vm165, %v103, 0
  %v401 = vsel %vm165, %v104, 0
  %v404 = vsel %vm165, %v105, 0
  %v407 = vsel %vm165, %v106, 0
  %v410 = vsel %vm165, %v107, 0
  %v413 = vsel %vm165, %v108, 0
  %v416 = vsel %vm165, %v109, 0
  %v419 = vsel %vm165, %v110, 0
  %v422 = vsel %vm165, %v111, 0
  %v425 = vsel %vm165, %v112, 0
  %v428 = vsel %vm165, %v113, 0
  %v431 = vsel %vm165, %v114, 0
  %v434 = vsel %vm165, %v115, 0
  %v437 = vsel %vm165, %v116, 0
  %v440 = vsel %vm165, %v117, 0
  %v443 = vsel %vm165, %v118, 0
  %v446 = vsel %vm165, %v119, 0
  %v449 = vsel %vm165, %v120, 0
  %v452 = vsel %vm165, %v121, 0
  %v455 = vsel %vm165, %v122, 0
  %v458 = vsel %vm165, %v123, 0
  %v461 = vsel %vm165, %v124, 0
  %v464 = vsel %vm165, %v125, 0
  %v467 = vsel %vm165, %v126, 0
  %v470 = vsel %vm165, %v127, 0
  %v473 = vsel %vm165, %v128, 0
  %v476 = vsel %vm165, %v129, 0
  %v479 = vsel %vm165, %v130, 0
  %v482 = vsel %vm165, %v131, 0
  %v485 = vsel %vm165, %v132, 0
  %v488 = vsel %vm165, %v133, 0
  %v491 = vsel %vm165, %v134, 0
  %v494 = vsel %vm165, %v135, 0
  %v497 = vsel %vm165, %v136, 0
  %v500 = vsel %vm165, %v137, 0
  %v503 = vsel %vm165, %v138, 0
  %v506 = vsel %vm165, %v139, 0
  %v509 = vsel %vm165, %v140, 0
  %v512 = vsel %vm165, %v141, 0
  %v515 = vsel %vm165, %v142, 0
  %v518 = vsel %vm165, %v143, 0
  %v521 = vsel %vm165, %v144, 0
  %v524 = vsel %vm165, %v145, 0
  %v527 = vsel %vm165, %v146, 0
  %v530 = vsel %vm165, %v147, 0
  %v533 = vsel %vm165, %v148, 0
  %v536 = vsel %vm165, %v149, 0
  %v539 = vsel %vm165, %v150, 0
  %v542 = vsel %vm165, %v151, 0
  %v545 = vsel %vm165, %v152, 0
  %v548 = vsel %vm165, %v153, 0
  %550 = vmatprep.subr.mxu0 0.0
  %551 = vmatpush1.msra.mxu0 %v154
  %552 = vmatprep.subr.mxu0 0.0
  %553 = vmatpush1.msra.mxu0 %v155
  %554 = vmatprep.subr.mxu0 0.0
  %555 = vmatpush1.msra.mxu0 %v156
  %556 = vmatprep.subr.mxu0 0.0
  %557 = vmatpush1.msra.mxu0 %v157
  %558 = vmatprep.subr.mxu0 0.0
  %559 = vmatpush1.msra.mxu0 0.0
  %560 = vmatprep.subr.mxu0 0.0
  %561 = vmatpush1.msra.mxu0 0.0
  %562 = vmatprep.subr.mxu0 0.0
  %563 = vmatpush1.msra.mxu0 0.0
  %564 = vmatprep.subr.mxu0 0.0
  %565 = vmatpush1.msra.mxu0 0.0
  %566 = vmatprep.subr.mxu0 0.0
  %567 = vmatpush1.msra.mxu0 0.0
  %568 = vmatprep.subr.mxu0 0.0
  %569 = vmatpush1.msra.mxu0 0.0
  %570 = vmatprep.subr.mxu0 0.0
  %571 = vmatpush1.msra.mxu0 0.0
  %572 = vmatprep.subr.mxu0 0.0
  %573 = vmatpush1.msra.mxu0 0.0
  %574 = vmatprep.subr.mxu0 0.0
  %575 = vmatpush1.msra.mxu0 0.0
  %576 = vmatprep.subr.mxu0 0.0
  %577 = vmatpush1.msra.mxu0 0.0
  %578 = vmatprep.subr.mxu0 0.0
  %579 = vmatpush1.msra.mxu0 0.0
  %580 = vmatprep.subr.mxu0 0.0
  %581 = vmatpush1.msra.mxu0 0.0
  %582 = vmatprep.subr.mxu0 0.0
  %583 = vmatpush1.msra.mxu0 0.0
  %584 = vmatprep.subr.mxu0 0.0
  %585 = vmatpush1.msra.mxu0 0.0
  %586 = vmatprep.subr.mxu0 0.0
  %587 = vmatpush1.msra.mxu0 0.0
  %588 = vmatprep.subr.mxu0 0.0
  %589 = vmatpush1.msra.mxu0 0.0
  %590 = vmatprep.subr.mxu0 0.0
  %591 = vmatpush1.msra.mxu0 0.0
  %592 = vmatprep.subr.mxu0 0.0
  %593 = vmatpush1.msra.mxu0 0.0
  %594 = vmatprep.subr.mxu0 0.0
  %595 = vmatpush1.msra.mxu0 0.0
  %596 = vmatprep.subr.mxu0 0.0
  %597 = vmatpush1.msra.mxu0 0.0
  %598 = vmatprep.subr.mxu0 0.0
  %599 = vmatpush1.msra.mxu0 0.0
  %600 = vmatprep.subr.mxu0 0.0
  %601 = vmatpush1.msra.mxu0 0.0
  %602 = vmatprep.subr.mxu0 0.0
  %603 = vmatpush1.msra.mxu0 0.0
  %604 = vmatprep.subr.mxu0 0.0
  %605 = vmatpush1.msra.mxu0 0.0
  %606 = vmatprep.subr.mxu0 0.0
  %607 = vmatpush1.msra.mxu0 0.0
  %608 = vmatprep.subr.mxu0 0.0
  %609 = vmatpush1.msra.mxu0 0.0
  %610 = vmatprep.subr.mxu0 0.0
  %611 = vmatpush1.msra.mxu0 0.0
  %612 = vmatprep.subr.mxu0 0.0
  %613 = vmatpush1.msra.mxu0 0.0
  %614 = vmatprep.mubr.f32.mxu0 0.0
  %615 = vmatmul.mubr.f32.gmra.mrb[0].mxu0 %v167
  %v616 = vpop.f32.mrb[0].mxu0
  %v617 = vadd.f32 %v163, %v616
  %v618 = vpop.f32.mrb[0].mxu0
  %619 = vmatprep.mubr.f32.mxu0 0.0
  %620 = vmatmul.mubr.f32.gmra.mrb[0].mxu0 %v170
  %v621 = vpop.f32.mrb[0].mxu0
  %v622 = vadd.f32 %v163, %v621
  %v623 = vpop.f32.mrb[0].mxu0
  %624 = vmatprep.mubr.f32.mxu0 0.0
  %625 = vmatmul.mubr.f32.gmra.mrb[0].mxu0 %v173
  %v626 = vpop.f32.mrb[0].mxu0
  %v627 = vadd.f32 %v163, %v626
  %v628 = vpop.f32.mrb[0].mxu0
  %629 = vmatprep.mubr.f32.mxu0 0.0
  %630 = vmatmul.mubr.f32.gmra.mrb[0].mxu0 %v176
  %v631 = vpop.f32.mrb[0].mxu0
  %v632 = vadd.f32 %v163, %v631
  %v633 = vpop.f32.mrb[0].mxu0
  %634 = vmatprep.mubr.f32.mxu0 0.0
  %635 = vmatmul.mubr.f32.gmra.mrb[0].mxu0 %v179
  %v636 = vpop.f32.mrb[0].mxu0
  %v637 = vadd.f32 %v163, %v636
  %v638 = vpop.f32.mrb[0].mxu0
  %639 = vmatprep.mubr.f32.mxu0 0.0
  %640 = vmatmul.mubr.f32.gmra.mrb[0].mxu0 %v182
  %v641 = vpop.f32.mrb[0].mxu0
  %v642 = vadd.f32 %v163, %v641
  %v643 = vpop.f32.mrb[0].mxu0
  %644 = vmatprep.mubr.f32.mxu0 0.0
  %645 = vmatmul.mubr.f32.gmra.mrb[0].mxu0 %v185
  %v646 = vpop.f32.mrb[0].mxu0
  %v647 = vadd.f32 %v163, %v646
  %v648 = vpop.f32.mrb[0].mxu0
  %649 = vmatprep.mubr.f32.mxu0 0.0
  %650 = vmatmul.mubr.f32.gmra.mrb[0].mxu0 %v188
  %v651 = vpop.f32.mrb[0].mxu0
  %v652 = vadd.f32 %v163, %v651
  %v653 = vpop.f32.mrb[0].mxu0
  %654 = vmatprep.mubr.f32.mxu0 0.0
  %655 = vmatmul.mubr.f32.gmra.mrb[0].mxu0 %v191
  %v656 = vpop.f32.mrb[0].mxu0
  %v657 = vadd.f32 %v163, %v656
  %v658 = vpop.f32.mrb[0].mxu0
  %659 = vmatprep.mubr.f32.mxu0 0.0
  %660 = vmatmul.mubr.f32.gmra.mrb[0].mxu0 %v194
  %v661 = vpop.f32.mrb[0].mxu0
  %v662 = vadd.f32 %v163, %v661
  %v663 = vpop.f32.mrb[0].mxu0
  %664 = vmatprep.mubr.f32.mxu0 0.0
  %665 = vmatmul.mubr.f32.gmra.mrb[0].mxu0 %v197
  %v666 = vpop.f32.mrb[0].mxu0
  %v667 = vadd.f32 %v163, %v666
  %v668 = vpop.f32.mrb[0].mxu0
  %669 = vmatprep.mubr.f32.mxu0 0.0
  %670 = vmatmul.mubr.f32.gmra.mrb[0].mxu0 %v200
  %v671 = vpop.f32.mrb[0].mxu0
  %v672 = vadd.f32 %v163, %v671
  %v673 = vpop.f32.mrb[0].mxu0
  %674 = vmatprep.mubr.f32.mxu0 0.0
  %675 = vmatmul.mubr.f32.gmra.mrb[0].mxu0 %v203
  %v676 = vpop.f32.mrb[0].mxu0
  %v677 = vadd.f32 %v163, %v676
  %v678 = vpop.f32.mrb[0].mxu0
  %679 = vmatprep.mubr.f32.mxu0 0.0
  %680 = vmatmul.mubr.f32.gmra.mrb[0].mxu0 %v206
  %v681 = vpop.f32.mrb[0].mxu0
  %v682 = vadd.f32 %v163, %v681
  %v683 = vpop.f32.mrb[0].mxu0
  %684 = vmatprep.mubr.f32.mxu0 0.0
  %685 = vmatmul.mubr.f32.gmra.mrb[0].mxu0 %v209
  %v686 = vpop.f32.mrb[0].mxu0
  %v687 = vadd.f32 %v163, %v686
  %v688 = vpop.f32.mrb[0].mxu0
  %689 = vmatprep.mubr.f32.mxu0 0.0
  %690 = vmatmul.mubr.f32.gmra.mrb[0].mxu0 %v212
  %v691 = vpop.f32.mrb[0].mxu0
  %v692 = vadd.f32 %v163, %v691
  %v693 = vpop.f32.mrb[0].mxu0
  %694 = vmatprep.mubr.f32.mxu0 0.0
  %695 = vmatmul.mubr.f32.gmra.mrb[0].mxu0 %v215
  %v696 = vpop.f32.mrb[0].mxu0
  %v697 = vadd.f32 %v163, %v696
  %v698 = vpop.f32.mrb[0].mxu0
  %699 = vmatprep.mubr.f32.mxu0 0.0
  %700 = vmatmul.mubr.f32.gmra.mrb[0].mxu0 %v218
  %v701 = vpop.f32.mrb[0].mxu0
  %v702 = vadd.f32 %v163, %v701
  %v703 = vpop.f32.mrb[0].mxu0
  %704 = vmatprep.mubr.f32.mxu0 0.0
  %705 = vmatmul.mubr.f32.gmra.mrb[0].mxu0 %v221
  %v706 = vpop.f32.mrb[0].mxu0
  %v707 = vadd.f32 %v163, %v706
  %v708 = vpop.f32.mrb[0].mxu0
  %709 = vmatprep.mubr.f32.mxu0 0.0
  %710 = vmatmul.mubr.f32.gmra.mrb[0].mxu0 %v224
  %v711 = vpop.f32.mrb[0].mxu0
  %v712 = vadd.f32 %v163, %v711
  %v713 = vpop.f32.mrb[0].mxu0
  %714 = vmatprep.mubr.f32.mxu0 0.0
  %715 = vmatmul.mubr.f32.gmra.mrb[0].mxu0 %v227
  %v716 = vpop.f32.mrb[0].mxu0
  %v717 = vadd.f32 %v163, %v716
  %v718 = vpop.f32.mrb[0].mxu0
  %719 = vmatprep.mubr.f32.mxu0 0.0
  %720 = vmatmul.mubr.f32.gmra.mrb[0].mxu0 %v230
  %v721 = vpop.f32.mrb[0].mxu0
  %v722 = vadd.f32 %v163, %v721
  %v723 = vpop.f32.mrb[0].mxu0
  %724 = vmatprep.mubr.f32.mxu0 0.0
  %725 = vmatmul.mubr.f32.gmra.mrb[0].mxu0 %v233
  %v726 = vpop.f32.mrb[0].mxu0
  %v727 = vadd.f32 %v163, %v726
  %v728 = vpop.f32.mrb[0].mxu0
  %729 = vmatprep.mubr.f32.mxu0 0.0
  %730 = vmatmul.mubr.f32.gmra.mrb[0].mxu0 %v236
  %v731 = vpop.f32.mrb[0].mxu0
  %v732 = vadd.f32 %v163, %v731
  %v733 = vpop.f32.mrb[0].mxu0
  %734 = vmatprep.mubr.f32.mxu0 0.0
  %735 = vmatmul.mubr.f32.gmra.mrb[0].mxu0 %v239
  %v736 = vpop.f32.mrb[0].mxu0
  %v737 = vadd.f32 %v163, %v736
  %v738 = vpop.f32.mrb[0].mxu0
  %739 = vmatprep.mubr.f32.mxu0 0.0
  %740 = vmatmul.mubr.f32.gmra.mrb[0].mxu0 %v242
  %v741 = vpop.f32.mrb[0].mxu0
  %v742 = vadd.f32 %v163, %v741
  %v743 = vpop.f32.mrb[0].mxu0
  %744 = vmatprep.mubr.f32.mxu0 0.0
  %745 = vmatmul.mubr.f32.gmra.mrb[0].mxu0 %v245
  %v746 = vpop.f32.mrb[0].mxu0
  %v747 = vadd.f32 %v163, %v746
  %v748 = vpop.f32.mrb[0].mxu0
  %749 = vmatprep.mubr.f32.mxu0 0.0
  %750 = vmatmul.mubr.f32.gmra.mrb[0].mxu0 %v248
  %v751 = vpop.f32.mrb[0].mxu0
  %v752 = vadd.f32 %v163, %v751
  %v753 = vpop.f32.mrb[0].mxu0
  %754 = vmatprep.mubr.f32.mxu0 0.0
  %755 = vmatmul.mubr.f32.gmra.mrb[0].mxu0 %v251
  %v756 = vpop.f32.mrb[0].mxu0
  %v757 = vadd.f32 %v163, %v756
  %v758 = vpop.f32.mrb[0].mxu0
  %759 = vmatprep.mubr.f32.mxu0 0.0
  %760 = vmatmul.mubr.f32.gmra.mrb[0].mxu0 %v254
  %v761 = vpop.f32.mrb[0].mxu0
  %v762 = vadd.f32 %v163, %v761
  %v763 = vpop.f32.mrb[0].mxu0
  %764 = vmatprep.mubr.f32.mxu0 0.0
  %765 = vmatmul.mubr.f32.gmra.mrb[0].mxu0 %v257
  %v766 = vpop.f32.mrb[0].mxu0
  %v767 = vadd.f32 %v163, %v766
  %v768 = vpop.f32.mrb[0].mxu0
  %769 = vmatprep.mubr.f32.mxu0 0.0
  %770 = vmatmul.mubr.f32.gmra.mrb[0].mxu0 %v260
  %v771 = vpop.f32.mrb[0].mxu0
  %v772 = vadd.f32 %v163, %v771
  %v773 = vpop.f32.mrb[0].mxu0
  %774 = vmatprep.mubr.f32.mxu0 0.0
  %775 = vmatmul.mubr.f32.gmra.mrb[0].mxu0 %v263
  %v776 = vpop.f32.mrb[0].mxu0
  %v777 = vadd.f32 %v163, %v776
  %v778 = vpop.f32.mrb[0].mxu0
  %779 = vmatprep.mubr.f32.mxu0 0.0
  %780 = vmatmul.mubr.f32.gmra.mrb[0].mxu0 %v266
  %v781 = vpop.f32.mrb[0].mxu0
  %v782 = vadd.f32 %v163, %v781
  %v783 = vpop.f32.mrb[0].mxu0
  %784 = vmatprep.mubr.f32.mxu0 0.0
  %785 = vmatmul.mubr.f32.gmra.mrb[0].mxu0 %v269
  %v786 = vpop.f32.mrb[0].mxu0
  %v787 = vadd.f32 %v163, %v786
  %v788 = vpop.f32.mrb[0].mxu0
  %789 = vmatprep.mubr.f32.mxu0 0.0
  %790 = vmatmul.mubr.f32.gmra.mrb[0].mxu0 %v272
  %v791 = vpop.f32.mrb[0].mxu0
  %v792 = vadd.f32 %v163, %v791
  %v793 = vpop.f32.mrb[0].mxu0
  %794 = vmatprep.mubr.f32.mxu0 0.0
  %795 = vmatmul.mubr.f32.gmra.mrb[0].mxu0 %v275
  %v796 = vpop.f32.mrb[0].mxu0
  %v797 = vadd.f32 %v163, %v796
  %v798 = vpop.f32.mrb[0].mxu0
  %799 = vmatprep.mubr.f32.mxu0 0.0
  %800 = vmatmul.mubr.f32.gmra.mrb[0].mxu0 %v278
  %v801 = vpop.f32.mrb[0].mxu0
  %v802 = vadd.f32 %v163, %v801
  %v803 = vpop.f32.mrb[0].mxu0
  %804 = vmatprep.mubr.f32.mxu0 0.0
  %805 = vmatmul.mubr.f32.gmra.mrb[0].mxu0 %v281
  %v806 = vpop.f32.mrb[0].mxu0
  %v807 = vadd.f32 %v163, %v806
  %v808 = vpop.f32.mrb[0].mxu0
  %809 = vmatprep.mubr.f32.mxu0 0.0
  %810 = vmatmul.mubr.f32.gmra.mrb[0].mxu0 %v284
  %v811 = vpop.f32.mrb[0].mxu0
  %v812 = vadd.f32 %v163, %v811
  %v813 = vpop.f32.mrb[0].mxu0
  %814 = vmatprep.mubr.f32.mxu0 0.0
  %815 = vmatmul.mubr.f32.gmra.mrb[0].mxu0 %v287
  %v816 = vpop.f32.mrb[0].mxu0
  %v817 = vadd.f32 %v163, %v816
  %v818 = vpop.f32.mrb[0].mxu0
  %819 = vmatprep.mubr.f32.mxu0 0.0
  %820 = vmatmul.mubr.f32.gmra.mrb[0].mxu0 %v290
  %v821 = vpop.f32.mrb[0].mxu0
  %v822 = vadd.f32 %v163, %v821
  %v823 = vpop.f32.mrb[0].mxu0
  %824 = vmatprep.mubr.f32.mxu0 0.0
  %825 = vmatmul.mubr.f32.gmra.mrb[0].mxu0 %v293
  %v826 = vpop.f32.mrb[0].mxu0
  %v827 = vadd.f32 %v163, %v826
  %v828 = vpop.f32.mrb[0].mxu0
  %829 = vmatprep.mubr.f32.mxu0 0.0
  %830 = vmatmul.mubr.f32.gmra.mrb[0].mxu0 %v296
  %v831 = vpop.f32.mrb[0].mxu0
  %v832 = vadd.f32 %v163, %v831
  %v833 = vpop.f32.mrb[0].mxu0
  %834 = vmatprep.mubr.f32.mxu0 0.0
  %835 = vmatmul.mubr.f32.gmra.mrb[0].mxu0 %v299
  %v836 = vpop.f32.mrb[0].mxu0
  %v837 = vadd.f32 %v163, %v836
  %v838 = vpop.f32.mrb[0].mxu0
  %839 = vmatprep.mubr.f32.mxu0 0.0
  %840 = vmatmul.mubr.f32.gmra.mrb[0].mxu0 %v302
  %v841 = vpop.f32.mrb[0].mxu0
  %v842 = vadd.f32 %v163, %v841
  %v843 = vpop.f32.mrb[0].mxu0
  %844 = vmatprep.mubr.f32.mxu0 0.0
  %845 = vmatmul.mubr.f32.gmra.mrb[0].mxu0 %v305
  %v846 = vpop.f32.mrb[0].mxu0
  %v847 = vadd.f32 %v163, %v846
  %v848 = vpop.f32.mrb[0].mxu0
  %849 = vmatprep.mubr.f32.mxu0 0.0
  %850 = vmatmul.mubr.f32.gmra.mrb[0].mxu0 %v308
  %v851 = vpop.f32.mrb[0].mxu0
  %v852 = vadd.f32 %v163, %v851
  %v853 = vpop.f32.mrb[0].mxu0
  %854 = vmatprep.mubr.f32.mxu0 0.0
  %855 = vmatmul.mubr.f32.gmra.mrb[0].mxu0 %v311
  %v856 = vpop.f32.mrb[0].mxu0
  %v857 = vadd.f32 %v163, %v856
  %v858 = vpop.f32.mrb[0].mxu0
  %859 = vmatprep.mubr.f32.mxu0 0.0
  %860 = vmatmul.mubr.f32.gmra.mrb[0].mxu0 %v314
  %v861 = vpop.f32.mrb[0].mxu0
  %v862 = vadd.f32 %v163, %v861
  %v863 = vpop.f32.mrb[0].mxu0
  %864 = vmatprep.mubr.f32.mxu0 0.0
  %865 = vmatmul.mubr.f32.gmra.mrb[0].mxu0 %v317
  %v866 = vpop.f32.mrb[0].mxu0
  %v867 = vadd.f32 %v163, %v866
  %v868 = vpop.f32.mrb[0].mxu0
  %869 = vmatprep.mubr.f32.mxu0 0.0
  %870 = vmatmul.mubr.f32.gmra.mrb[0].mxu0 %v320
  %v871 = vpop.f32.mrb[0].mxu0
  %v872 = vadd.f32 %v163, %v871
  %v873 = vpop.f32.mrb[0].mxu0
  %874 = vmatprep.mubr.f32.mxu0 0.0
  %875 = vmatmul.mubr.f32.gmra.mrb[0].mxu0 %v323
  %v876 = vpop.f32.mrb[0].mxu0
  %v877 = vadd.f32 %v163, %v876
  %v878 = vpop.f32.mrb[0].mxu0
  %879 = vmatprep.mubr.f32.mxu0 0.0
  %880 = vmatmul.mubr.f32.gmra.mrb[0].mxu0 %v326
  %v881 = vpop.f32.mrb[0].mxu0
  %v882 = vadd.f32 %v163, %v881
  %v883 = vpop.f32.mrb[0].mxu0
  %884 = vmatprep.mubr.f32.mxu0 0.0
  %885 = vmatmul.mubr.f32.gmra.mrb[0].mxu0 %v329
  %v886 = vpop.f32.mrb[0].mxu0
  %v887 = vadd.f32 %v163, %v886
  %v888 = vpop.f32.mrb[0].mxu0
  %889 = vmatprep.mubr.f32.mxu0 0.0
  %890 = vmatmul.mubr.f32.gmra.mrb[0].mxu0 %v332
  %v891 = vpop.f32.mrb[0].mxu0
  %v892 = vadd.f32 %v163, %v891
  %v893 = vpop.f32.mrb[0].mxu0
  %894 = vmatprep.mubr.f32.mxu0 0.0
  %895 = vmatmul.mubr.f32.gmra.mrb[0].mxu0 %v335
  %v896 = vpop.f32.mrb[0].mxu0
  %v897 = vadd.f32 %v163, %v896
  %v898 = vpop.f32.mrb[0].mxu0
  %899 = vmatprep.mubr.f32.mxu0 0.0
  %900 = vmatmul.mubr.f32.gmra.mrb[0].mxu0 %v338
  %v901 = vpop.f32.mrb[0].mxu0
  %v902 = vadd.f32 %v163, %v901
  %v903 = vpop.f32.mrb[0].mxu0
  %904 = vmatprep.mubr.f32.mxu0 0.0
  %905 = vmatmul.mubr.f32.gmra.mrb[0].mxu0 %v341
  %v906 = vpop.f32.mrb[0].mxu0
  %v907 = vadd.f32 %v163, %v906
  %v908 = vpop.f32.mrb[0].mxu0
  %909 = vmatprep.mubr.f32.mxu0 0.0
  %910 = vmatmul.mubr.f32.gmra.mrb[0].mxu0 %v344
  %v911 = vpop.f32.mrb[0].mxu0
  %v912 = vadd.f32 %v163, %v911
  %v913 = vpop.f32.mrb[0].mxu0
  %914 = vmatprep.mubr.f32.mxu0 0.0
  %915 = vmatmul.mubr.f32.gmra.mrb[0].mxu0 %v347
  %v916 = vpop.f32.mrb[0].mxu0
  %v917 = vadd.f32 %v163, %v916
  %v918 = vpop.f32.mrb[0].mxu0
  %919 = vmatprep.mubr.f32.mxu0 0.0
  %920 = vmatmul.mubr.f32.gmra.mrb[0].mxu0 %v350
  %v921 = vpop.f32.mrb[0].mxu0
  %v922 = vadd.f32 %v163, %v921
  %v923 = vpop.f32.mrb[0].mxu0
  %924 = vmatprep.mubr.f32.mxu0 0.0
  %925 = vmatmul.mubr.f32.gmra.mrb[0].mxu0 %v353
  %v926 = vpop.f32.mrb[0].mxu0
  %v927 = vadd.f32 %v163, %v926
  %v928 = vpop.f32.mrb[0].mxu0
  %929 = vmatprep.mubr.f32.mxu0 0.0
  %930 = vmatmul.mubr.f32.gmra.mrb[0].mxu0 %v356
  %v931 = vpop.f32.mrb[0].mxu0
  %v932 = vadd.f32 %v163, %v931
  %v933 = vpop.f32.mrb[0].mxu0
  %934 = vmatprep.mubr.f32.mxu0 0.0
  %935 = vmatmul.mubr.f32.gmra.mrb[0].mxu0 %v359
  %v936 = vpop.f32.mrb[0].mxu0
  %v937 = vadd.f32 %v163, %v936
  %v938 = vpop.f32.mrb[0].mxu0
  %939 = vmatprep.mubr.f32.mxu0 0.0
  %940 = vmatmul.mubr.f32.gmra.mrb[0].mxu0 %v362
  %v941 = vpop.f32.mrb[0].mxu0
  %v942 = vadd.f32 %v163, %v941
  %v943 = vpop.f32.mrb[0].mxu0
  %944 = vmatprep.mubr.f32.mxu0 0.0
  %945 = vmatmul.mubr.f32.gmra.mrb[0].mxu0 %v365
  %v946 = vpop.f32.mrb[0].mxu0
  %v947 = vadd.f32 %v163, %v946
  %v948 = vpop.f32.mrb[0].mxu0
  %949 = vmatprep.mubr.f32.mxu0 0.0
  %950 = vmatmul.mubr.f32.gmra.mrb[0].mxu0 %v368
  %v951 = vpop.f32.mrb[0].mxu0
  %v952 = vadd.f32 %v163, %v951
  %v953 = vpop.f32.mrb[0].mxu0
  %954 = vmatprep.mubr.f32.mxu0 0.0
  %955 = vmatmul.mubr.f32.gmra.mrb[0].mxu0 %v371
  %v956 = vpop.f32.mrb[0].mxu0
  %v957 = vadd.f32 %v163, %v956
  %v958 = vpop.f32.mrb[0].mxu0
  %959 = vmatprep.mubr.f32.mxu0 0.0
  %960 = vmatmul.mubr.f32.gmra.mrb[0].mxu0 %v374
  %v961 = vpop.f32.mrb[0].mxu0
  %v962 = vadd.f32 %v163, %v961
  %v963 = vpop.f32.mrb[0].mxu0
  %964 = vmatprep.mubr.f32.mxu0 0.0
  %965 = vmatmul.mubr.f32.gmra.mrb[0].mxu0 %v377
  %v966 = vpop.f32.mrb[0].mxu0
  %v967 = vadd.f32 %v163, %v966
  %v968 = vpop.f32.mrb[0].mxu0
  %969 = vmatprep.mubr.f32.mxu0 0.0
  %970 = vmatmul.mubr.f32.gmra.mrb[0].mxu0 %v380
  %v971 = vpop.f32.mrb[0].mxu0
  %v972 = vadd.f32 %v163, %v971
  %v973 = vpop.f32.mrb[0].mxu0
  %974 = vmatprep.mubr.f32.mxu0 0.0
  %975 = vmatmul.mubr.f32.gmra.mrb[0].mxu0 %v383
  %v976 = vpop.f32.mrb[0].mxu0
  %v977 = vadd.f32 %v163, %v976
  %v978 = vpop.f32.mrb[0].mxu0
  %979 = vmatprep.mubr.f32.mxu0 0.0
  %980 = vmatmul.mubr.f32.gmra.mrb[0].mxu0 %v386
  %v981 = vpop.f32.mrb[0].mxu0
  %v982 = vadd.f32 %v163, %v981
  %v983 = vpop.f32.mrb[0].mxu0
  %984 = vmatprep.mubr.f32.mxu0 0.0
  %985 = vmatmul.mubr.f32.gmra.mrb[0].mxu0 %v389
  %v986 = vpop.f32.mrb[0].mxu0
  %v987 = vadd.f32 %v163, %v986
  %v988 = vpop.f32.mrb[0].mxu0
  %989 = vmatprep.mubr.f32.mxu0 0.0
  %990 = vmatmul.mubr.f32.gmra.mrb[0].mxu0 %v392
  %v991 = vpop.f32.mrb[0].mxu0
  %v992 = vadd.f32 %v163, %v991
  %v993 = vpop.f32.mrb[0].mxu0
  %994 = vmatprep.mubr.f32.mxu0 0.0
  %995 = vmatmul.mubr.f32.gmra.mrb[0].mxu0 %v395
  %v996 = vpop.f32.mrb[0].mxu0
  %v997 = vadd.f32 %v163, %v996
  %v998 = vpop.f32.mrb[0].mxu0
  %999 = vmatprep.mubr.f32.mxu0 0.0
  %1000 = vmatmul.mubr.f32.gmra.mrb[0].mxu0 %v398
  %v1001 = vpop.f32.mrb[0].mxu0
  %v1002 = vadd.f32 %v163, %v1001
  %v1003 = vpop.f32.mrb[0].mxu0
  %1004 = vmatprep.mubr.f32.mxu0 0.0
  %1005 = vmatmul.mubr.f32.gmra.mrb[0].mxu0 %v401
  %v1006 = vpop.f32.mrb[0].mxu0
  %v1007 = vadd.f32 %v163, %v1006
  %v1008 = vpop.f32.mrb[0].mxu0
  %1009 = vmatprep.mubr.f32.mxu0 0.0
  %1010 = vmatmul.mubr.f32.gmra.mrb[0].mxu0 %v404
  %v1011 = vpop.f32.mrb[0].mxu0
  %v1012 = vadd.f32 %v163, %v1011
  %v1013 = vpop.f32.mrb[0].mxu0
  %1014 = vmatprep.mubr.f32.mxu0 0.0
  %1015 = vmatmul.mubr.f32.gmra.mrb[0].mxu0 %v407
  %v1016 = vpop.f32.mrb[0].mxu0
  %v1017 = vadd.f32 %v163, %v1016
  %v1018 = vpop.f32.mrb[0].mxu0
  %1019 = vmatprep.mubr.f32.mxu0 0.0
  %1020 = vmatmul.mubr.f32.gmra.mrb[0].mxu0 %v410
  %v1021 = vpop.f32.mrb[0].mxu0
  %v1022 = vadd.f32 %v163, %v1021
  %v1023 = vpop.f32.mrb[0].mxu0
  %1024 = vmatprep.mubr.f32.mxu0 0.0
  %1025 = vmatmul.mubr.f32.gmra.mrb[0].mxu0 %v413
  %v1026 = vpop.f32.mrb[0].mxu0
  %v1027 = vadd.f32 %v163, %v1026
  %v1028 = vpop.f32.mrb[0].mxu0
  %1029 = vmatprep.mubr.f32.mxu0 0.0
  %1030 = vmatmul.mubr.f32.gmra.mrb[0].mxu0 %v416
  %v1031 = vpop.f32.mrb[0].mxu0
  %v1032 = vadd.f32 %v163, %v1031
  %v1033 = vpop.f32.mrb[0].mxu0
  %1034 = vmatprep.mubr.f32.mxu0 0.0
  %1035 = vmatmul.mubr.f32.gmra.mrb[0].mxu0 %v419
  %v1036 = vpop.f32.mrb[0].mxu0
  %v1037 = vadd.f32 %v163, %v1036
  %v1038 = vpop.f32.mrb[0].mxu0
  %1039 = vmatprep.mubr.f32.mxu0 0.0
  %1040 = vmatmul.mubr.f32.gmra.mrb[0].mxu0 %v422
  %v1041 = vpop.f32.mrb[0].mxu0
  %v1042 = vadd.f32 %v163, %v1041
  %v1043 = vpop.f32.mrb[0].mxu0
  %1044 = vmatprep.mubr.f32.mxu0 0.0
  %1045 = vmatmul.mubr.f32.gmra.mrb[0].mxu0 %v425
  %v1046 = vpop.f32.mrb[0].mxu0
  %v1047 = vadd.f32 %v163, %v1046
  %v1048 = vpop.f32.mrb[0].mxu0
  %1049 = vmatprep.mubr.f32.mxu0 0.0
  %1050 = vmatmul.mubr.f32.gmra.mrb[0].mxu0 %v428
  %v1051 = vpop.f32.mrb[0].mxu0
  %v1052 = vadd.f32 %v163, %v1051
  %v1053 = vpop.f32.mrb[0].mxu0
  %1054 = vmatprep.mubr.f32.mxu0 0.0
  %1055 = vmatmul.mubr.f32.gmra.mrb[0].mxu0 %v431
  %v1056 = vpop.f32.mrb[0].mxu0
  %v1057 = vadd.f32 %v163, %v1056
  %v1058 = vpop.f32.mrb[0].mxu0
  %1059 = vmatprep.mubr.f32.mxu0 0.0
  %1060 = vmatmul.mubr.f32.gmra.mrb[0].mxu0 %v434
  %v1061 = vpop.f32.mrb[0].mxu0
  %v1062 = vadd.f32 %v163, %v1061
  %v1063 = vpop.f32.mrb[0].mxu0
  %1064 = vmatprep.mubr.f32.mxu0 0.0
  %1065 = vmatmul.mubr.f32.gmra.mrb[0].mxu0 %v437
  %v1066 = vpop.f32.mrb[0].mxu0
  %v1067 = vadd.f32 %v163, %v1066
  %v1068 = vpop.f32.mrb[0].mxu0
  %1069 = vmatprep.mubr.f32.mxu0 0.0
  %1070 = vmatmul.mubr.f32.gmra.mrb[0].mxu0 %v440
  %v1071 = vpop.f32.mrb[0].mxu0
  %v1072 = vadd.f32 %v163, %v1071
  %v1073 = vpop.f32.mrb[0].mxu0
  %1074 = vmatprep.mubr.f32.mxu0 0.0
  %1075 = vmatmul.mubr.f32.gmra.mrb[0].mxu0 %v443
  %v1076 = vpop.f32.mrb[0].mxu0
  %v1077 = vadd.f32 %v163, %v1076
  %v1078 = vpop.f32.mrb[0].mxu0
  %1079 = vmatprep.mubr.f32.mxu0 0.0
  %1080 = vmatmul.mubr.f32.gmra.mrb[0].mxu0 %v446
  %v1081 = vpop.f32.mrb[0].mxu0
  %v1082 = vadd.f32 %v163, %v1081
  %v1083 = vpop.f32.mrb[0].mxu0
  %1084 = vmatprep.mubr.f32.mxu0 0.0
  %1085 = vmatmul.mubr.f32.gmra.mrb[0].mxu0 %v449
  %v1086 = vpop.f32.mrb[0].mxu0
  %v1087 = vadd.f32 %v163, %v1086
  %v1088 = vpop.f32.mrb[0].mxu0
  %1089 = vmatprep.mubr.f32.mxu0 0.0
  %1090 = vmatmul.mubr.f32.gmra.mrb[0].mxu0 %v452
  %v1091 = vpop.f32.mrb[0].mxu0
  %v1092 = vadd.f32 %v163, %v1091
  %v1093 = vpop.f32.mrb[0].mxu0
  %1094 = vmatprep.mubr.f32.mxu0 0.0
  %1095 = vmatmul.mubr.f32.gmra.mrb[0].mxu0 %v455
  %v1096 = vpop.f32.mrb[0].mxu0
  %v1097 = vadd.f32 %v163, %v1096
  %v1098 = vpop.f32.mrb[0].mxu0
  %1099 = vmatprep.mubr.f32.mxu0 0.0
  %1100 = vmatmul.mubr.f32.gmra.mrb[0].mxu0 %v458
  %v1101 = vpop.f32.mrb[0].mxu0
  %v1102 = vadd.f32 %v163, %v1101
  %v1103 = vpop.f32.mrb[0].mxu0
  %1104 = vmatprep.mubr.f32.mxu0 0.0
  %1105 = vmatmul.mubr.f32.gmra.mrb[0].mxu0 %v461
  %v1106 = vpop.f32.mrb[0].mxu0
  %v1107 = vadd.f32 %v163, %v1106
  %v1108 = vpop.f32.mrb[0].mxu0
  %1109 = vmatprep.mubr.f32.mxu0 0.0
  %1110 = vmatmul.mubr.f32.gmra.mrb[0].mxu0 %v464
  %v1111 = vpop.f32.mrb[0].mxu0
  %v1112 = vadd.f32 %v163, %v1111
  %v1113 = vpop.f32.mrb[0].mxu0
  %1114 = vmatprep.mubr.f32.mxu0 0.0
  %1115 = vmatmul.mubr.f32.gmra.mrb[0].mxu0 %v467
  %v1116 = vpop.f32.mrb[0].mxu0
  %v1117 = vadd.f32 %v163, %v1116
  %v1118 = vpop.f32.mrb[0].mxu0
  %1119 = vmatprep.mubr.f32.mxu0 0.0
  %1120 = vmatmul.mubr.f32.gmra.mrb[0].mxu0 %v470
  %v1121 = vpop.f32.mrb[0].mxu0
  %v1122 = vadd.f32 %v163, %v1121
  %v1123 = vpop.f32.mrb[0].mxu0
  %1124 = vmatprep.mubr.f32.mxu0 0.0
  %1125 = vmatmul.mubr.f32.gmra.mrb[0].mxu0 %v473
  %v1126 = vpop.f32.mrb[0].mxu0
  %v1127 = vadd.f32 %v163, %v1126
  %v1128 = vpop.f32.mrb[0].mxu0
  %1129 = vmatprep.mubr.f32.mxu0 0.0
  %1130 = vmatmul.mubr.f32.gmra.mrb[0].mxu0 %v476
  %v1131 = vpop.f32.mrb[0].mxu0
  %v1132 = vadd.f32 %v163, %v1131
  %v1133 = vpop.f32.mrb[0].mxu0
  %1134 = vmatprep.mubr.f32.mxu0 0.0
  %1135 = vmatmul.mubr.f32.gmra.mrb[0].mxu0 %v479
  %v1136 = vpop.f32.mrb[0].mxu0
  %v1137 = vadd.f32 %v163, %v1136
  %v1138 = vpop.f32.mrb[0].mxu0
  %1139 = vmatprep.mubr.f32.mxu0 0.0
  %1140 = vmatmul.mubr.f32.gmra.mrb[0].mxu0 %v482
  %v1141 = vpop.f32.mrb[0].mxu0
  %v1142 = vadd.f32 %v163, %v1141
  %v1143 = vpop.f32.mrb[0].mxu0
  %1144 = vmatprep.mubr.f32.mxu0 0.0
  %1145 = vmatmul.mubr.f32.gmra.mrb[0].mxu0 %v485
  %v1146 = vpop.f32.mrb[0].mxu0
  %v1147 = vadd.f32 %v163, %v1146
  %v1148 = vpop.f32.mrb[0].mxu0
  %1149 = vmatprep.mubr.f32.mxu0 0.0
  %1150 = vmatmul.mubr.f32.gmra.mrb[0].mxu0 %v488
  %v1151 = vpop.f32.mrb[0].mxu0
  %v1152 = vadd.f32 %v163, %v1151
  %v1153 = vpop.f32.mrb[0].mxu0
  %1154 = vmatprep.mubr.f32.mxu0 0.0
  %1155 = vmatmul.mubr.f32.gmra.mrb[0].mxu0 %v491
  %v1156 = vpop.f32.mrb[0].mxu0
  %v1157 = vadd.f32 %v163, %v1156
  %v1158 = vpop.f32.mrb[0].mxu0
  %1159 = vmatprep.mubr.f32.mxu0 0.0
  %1160 = vmatmul.mubr.f32.gmra.mrb[0].mxu0 %v494
  %v1161 = vpop.f32.mrb[0].mxu0
  %v1162 = vadd.f32 %v163, %v1161
  %v1163 = vpop.f32.mrb[0].mxu0
  %1164 = vmatprep.mubr.f32.mxu0 0.0
  %1165 = vmatmul.mubr.f32.gmra.mrb[0].mxu0 %v497
  %v1166 = vpop.f32.mrb[0].mxu0
  %v1167 = vadd.f32 %v163, %v1166
  %v1168 = vpop.f32.mrb[0].mxu0
  %1169 = vmatprep.mubr.f32.mxu0 0.0
  %1170 = vmatmul.mubr.f32.gmra.mrb[0].mxu0 %v500
  %v1171 = vpop.f32.mrb[0].mxu0
  %v1172 = vadd.f32 %v163, %v1171
  %v1173 = vpop.f32.mrb[0].mxu0
  %1174 = vmatprep.mubr.f32.mxu0 0.0
  %1175 = vmatmul.mubr.f32.gmra.mrb[0].mxu0 %v503
  %v1176 = vpop.f32.mrb[0].mxu0
  %v1177 = vadd.f32 %v163, %v1176
  %v1178 = vpop.f32.mrb[0].mxu0
  %1179 = vmatprep.mubr.f32.mxu0 0.0
  %1180 = vmatmul.mubr.f32.gmra.mrb[0].mxu0 %v506
  %v1181 = vpop.f32.mrb[0].mxu0
  %v1182 = vadd.f32 %v163, %v1181
  %v1183 = vpop.f32.mrb[0].mxu0
  %1184 = vmatprep.mubr.f32.mxu0 0.0
  %1185 = vmatmul.mubr.f32.gmra.mrb[0].mxu0 %v509
  %v1186 = vpop.f32.mrb[0].mxu0
  %v1187 = vadd.f32 %v163, %v1186
  %v1188 = vpop.f32.mrb[0].mxu0
  %1189 = vmatprep.mubr.f32.mxu0 0.0
  %1190 = vmatmul.mubr.f32.gmra.mrb[0].mxu0 %v512
  %v1191 = vpop.f32.mrb[0].mxu0
  %v1192 = vadd.f32 %v163, %v1191
  %v1193 = vpop.f32.mrb[0].mxu0
  %1194 = vmatprep.mubr.f32.mxu0 0.0
  %1195 = vmatmul.mubr.f32.gmra.mrb[0].mxu0 %v515
  %v1196 = vpop.f32.mrb[0].mxu0
  %v1197 = vadd.f32 %v163, %v1196
  %v1198 = vpop.f32.mrb[0].mxu0
  %1199 = vmatprep.mubr.f32.mxu0 0.0
  %1200 = vmatmul.mubr.f32.gmra.mrb[0].mxu0 %v518
  %v1201 = vpop.f32.mrb[0].mxu0
  %v1202 = vadd.f32 %v163, %v1201
  %v1203 = vpop.f32.mrb[0].mxu0
  %1204 = vmatprep.mubr.f32.mxu0 0.0
  %1205 = vmatmul.mubr.f32.gmra.mrb[0].mxu0 %v521
  %v1206 = vpop.f32.mrb[0].mxu0
  %v1207 = vadd.f32 %v163, %v1206
  %v1208 = vpop.f32.mrb[0].mxu0
  %1209 = vmatprep.mubr.f32.mxu0 0.0
  %1210 = vmatmul.mubr.f32.gmra.mrb[0].mxu0 %v524
  %v1211 = vpop.f32.mrb[0].mxu0
  %v1212 = vadd.f32 %v163, %v1211
  %v1213 = vpop.f32.mrb[0].mxu0
  %1214 = vmatprep.mubr.f32.mxu0 0.0
  %1215 = vmatmul.mubr.f32.gmra.mrb[0].mxu0 %v527
  %v1216 = vpop.f32.mrb[0].mxu0
  %v1217 = vadd.f32 %v163, %v1216
  %v1218 = vpop.f32.mrb[0].mxu0
  %1219 = vmatprep.mubr.f32.mxu0 0.0
  %1220 = vmatmul.mubr.f32.gmra.mrb[0].mxu0 %v530
  %v1221 = vpop.f32.mrb[0].mxu0
  %v1222 = vadd.f32 %v163, %v1221
  %v1223 = vpop.f32.mrb[0].mxu0
  %1224 = vmatprep.mubr.f32.mxu0 0.0
  %1225 = vmatmul.mubr.f32.gmra.mrb[0].mxu0 %v533
  %v1226 = vpop.f32.mrb[0].mxu0
  %v1227 = vadd.f32 %v163, %v1226
  %v1228 = vpop.f32.mrb[0].mxu0
  %1229 = vmatprep.mubr.f32.mxu0 0.0
  %1230 = vmatmul.mubr.f32.gmra.mrb[0].mxu0 %v536
  %v1231 = vpop.f32.mrb[0].mxu0
  %v1232 = vadd.f32 %v163, %v1231
  %v1233 = vpop.f32.mrb[0].mxu0
  %1234 = vmatprep.mubr.f32.mxu0 0.0
  %1235 = vmatmul.mubr.f32.gmra.mrb[0].mxu0 %v539
  %v1236 = vpop.f32.mrb[0].mxu0
  %v1237 = vadd.f32 %v163, %v1236
  %v1238 = vpop.f32.mrb[0].mxu0
  %1239 = vmatprep.mubr.f32.mxu0 0.0
  %1240 = vmatmul.mubr.f32.gmra.mrb[0].mxu0 %v542
  %v1241 = vpop.f32.mrb[0].mxu0
  %v1242 = vadd.f32 %v163, %v1241
  %v1243 = vpop.f32.mrb[0].mxu0
  %1244 = vmatprep.mubr.f32.mxu0 0.0
  %1245 = vmatmul.mubr.f32.gmra.mrb[0].mxu0 %v545
  %v1246 = vpop.f32.mrb[0].mxu0
  %v1247 = vadd.f32 %v163, %v1246
  %v1248 = vpop.f32.mrb[0].mxu0
  %1249 = vmatprep.mubr.f32.mxu0 0.0
  %1250 = vmatmul.mubr.f32.gmra.mrb[0].mxu0 %v548
  %v1251 = vpop.f32.mrb[0].mxu0
  %v1252 = vadd.f32 %v163, %v1251
  %v1253 = vpop.f32.mrb[0].mxu0
  %1254 = vdwg.mxu0
  %v1255 = vmax.f32 %v617, 0.0
  %v1256 = vmax.f32 %v622, 0.0
  %v1257 = vmax.f32 %v627, 0.0
  %v1258 = vmax.f32 %v632, 0.0
  %v1259 = vmax.f32 %v637, 0.0
  %v1260 = vmax.f32 %v642, 0.0
  %v1261 = vmax.f32 %v647, 0.0
  %v1262 = vmax.f32 %v652, 0.0
  %v1263 = vmax.f32 %v657, 0.0
  %v1264 = vmax.f32 %v662, 0.0
  %v1265 = vmax.f32 %v667, 0.0
  %v1266 = vmax.f32 %v672, 0.0
  %v1267 = vmax.f32 %v677, 0.0
  %v1268 = vmax.f32 %v682, 0.0
  %v1269 = vmax.f32 %v687, 0.0
  %v1270 = vmax.f32 %v692, 0.0
  %v1271 = vmax.f32 %v697, 0.0
  %v1272 = vmax.f32 %v702, 0.0
  %v1273 = vmax.f32 %v707, 0.0
  %v1274 = vmax.f32 %v712, 0.0
  %v1275 = vmax.f32 %v717, 0.0
  %v1276 = vmax.f32 %v722, 0.0
  %v1277 = vmax.f32 %v727, 0.0
  %v1278 = vmax.f32 %v732, 0.0
  %v1279 = vmax.f32 %v737, 0.0
  %v1280 = vmax.f32 %v742, 0.0
  %v1281 = vmax.f32 %v747, 0.0
  %v1282 = vmax.f32 %v752, 0.0
  %v1283 = vmax.f32 %v757, 0.0
  %v1284 = vmax.f32 %v762, 0.0
  %v1285 = vmax.f32 %v767, 0.0
  %v1286 = vmax.f32 %v772, 0.0
  %v1287 = vmax.f32 %v777, 0.0
  %v1288 = vmax.f32 %v782, 0.0
  %v1289 = vmax.f32 %v787, 0.0
  %v1290 = vmax.f32 %v792, 0.0
  %v1291 = vmax.f32 %v797, 0.0
  %v1292 = vmax.f32 %v802, 0.0
  %v1293 = vmax.f32 %v807, 0.0
  %v1294 = vmax.f32 %v812, 0.0
  %v1295 = vmax.f32 %v817, 0.0
  %v1296 = vmax.f32 %v822, 0.0
  %v1297 = vmax.f32 %v827, 0.0
  %v1298 = vmax.f32 %v832, 0.0
  %v1299 = vmax.f32 %v837, 0.0
  %v1300 = vmax.f32 %v842, 0.0
  %v1301 = vmax.f32 %v847, 0.0
  %v1302 = vmax.f32 %v852, 0.0
  %v1303 = vmax.f32 %v857, 0.0
  %v1304 = vmax.f32 %v862, 0.0
  %v1305 = vmax.f32 %v867, 0.0
  %v1306 = vmax.f32 %v872, 0.0
  %v1307 = vmax.f32 %v877, 0.0
  %v1308 = vmax.f32 %v882, 0.0
  %v1309 = vmax.f32 %v887, 0.0
  %v1310 = vmax.f32 %v892, 0.0
  %v1311 = vmax.f32 %v897, 0.0
  %v1312 = vmax.f32 %v902, 0.0
  %v1313 = vmax.f32 %v907, 0.0
  %v1314 = vmax.f32 %v912, 0.0
  %v1315 = vmax.f32 %v917, 0.0
  %v1316 = vmax.f32 %v922, 0.0
  %v1317 = vmax.f32 %v927, 0.0
  %v1318 = vmax.f32 %v932, 0.0
  %v1319 = vmax.f32 %v937, 0.0
  %v1320 = vmax.f32 %v942, 0.0
  %v1321 = vmax.f32 %v947, 0.0
  %v1322 = vmax.f32 %v952, 0.0
  %v1323 = vmax.f32 %v957, 0.0
  %v1324 = vmax.f32 %v962, 0.0
  %v1325 = vmax.f32 %v967, 0.0
  %v1326 = vmax.f32 %v972, 0.0
  %v1327 = vmax.f32 %v977, 0.0
  %v1328 = vmax.f32 %v982, 0.0
  %v1329 = vmax.f32 %v987, 0.0
  %v1330 = vmax.f32 %v992, 0.0
  %v1331 = vmax.f32 %v997, 0.0
  %v1332 = vmax.f32 %v1002, 0.0
  %v1333 = vmax.f32 %v1007, 0.0
  %v1334 = vmax.f32 %v1012, 0.0
  %v1335 = vmax.f32 %v1017, 0.0
  %v1336 = vmax.f32 %v1022, 0.0
  %v1337 = vmax.f32 %v1027, 0.0
  %v1338 = vmax.f32 %v1032, 0.0
  %v1339 = vmax.f32 %v1037, 0.0
  %v1340 = vmax.f32 %v1042, 0.0
  %v1341 = vmax.f32 %v1047, 0.0
  %v1342 = vmax.f32 %v1052, 0.0
  %v1343 = vmax.f32 %v1057, 0.0
  %v1344 = vmax.f32 %v1062, 0.0
  %v1345 = vmax.f32 %v1067, 0.0
  %v1346 = vmax.f32 %v1072, 0.0
  %v1347 = vmax.f32 %v1077, 0.0
  %v1348 = vmax.f32 %v1082, 0.0
  %v1349 = vmax.f32 %v1087, 0.0
  %v1350 = vmax.f32 %v1092, 0.0
  %v1351 = vmax.f32 %v1097, 0.0
  %v1352 = vmax.f32 %v1102, 0.0
  %v1353 = vmax.f32 %v1107, 0.0
  %v1354 = vmax.f32 %v1112, 0.0
  %v1355 = vmax.f32 %v1117, 0.0
  %v1356 = vmax.f32 %v1122, 0.0
  %v1357 = vmax.f32 %v1127, 0.0
  %v1358 = vmax.f32 %v1132, 0.0
  %v1359 = vmax.f32 %v1137, 0.0
  %v1360 = vmax.f32 %v1142, 0.0
  %v1361 = vmax.f32 %v1147, 0.0
  %v1362 = vmax.f32 %v1152, 0.0
  %v1363 = vmax.f32 %v1157, 0.0
  %v1364 = vmax.f32 %v1162, 0.0
  %v1365 = vmax.f32 %v1167, 0.0
  %v1366 = vmax.f32 %v1172, 0.0
  %v1367 = vmax.f32 %v1177, 0.0
  %v1368 = vmax.f32 %v1182, 0.0
  %v1369 = vmax.f32 %v1187, 0.0
  %v1370 = vmax.f32 %v1192, 0.0
  %v1371 = vmax.f32 %v1197, 0.0
  %v1372 = vmax.f32 %v1202, 0.0
  %v1373 = vmax.f32 %v1207, 0.0
  %v1374 = vmax.f32 %v1212, 0.0
  %v1375 = vmax.f32 %v1217, 0.0
  %v1376 = vmax.f32 %v1222, 0.0
  %v1377 = vmax.f32 %v1227, 0.0
  %v1378 = vmax.f32 %v1232, 0.0
  %v1379 = vmax.f32 %v1237, 0.0
  %v1380 = vmax.f32 %v1242, 0.0
  %v1381 = vmax.f32 %v1247, 0.0
  %v1382 = vmax.f32 %v1252, 0.0
  %v1383 = vld [vmem:[%s3] sm:$0xff]
  %v1384 = vld [vmem:[%s3 + $0x8] sm:$0xff]
  %v1385 = vld [vmem:[%s3 + $0x10] sm:$0xff]
  %v1386 = vld [vmem:[%s3 + $0x18] sm:$0xff]
  %v1387 = vld [vmem:[%s3 + $0x20] sm:$0xff]
  %v1388 = vld [vmem:[%s3 + $0x28] sm:$0xff]
  %v1389 = vld [vmem:[%s3 + $0x30] sm:$0xff]
  %v1390 = vld [vmem:[%s3 + $0x38] sm:$0xff]
  %v1391 = vld [vmem:[%s3 + $0x40] sm:$0xff]
  %v1392 = vld [vmem:[%s3 + $0x48] sm:$0xff]
  %v1393 = vld [vmem:[%s3 + $0x50] sm:$0xff]
  %v1394 = vld [vmem:[%s3 + $0x58] sm:$0xff]
  %v1395 = vld [vmem:[%s3 + $0x60] sm:$0xff]
  %v1396 = vld [vmem:[%s3 + $0x68] sm:$0xff]
  %v1397 = vld [vmem:[%s3 + $0x70] sm:$0xff]
  %v1398 = vld [vmem:[%s3 + $0x78] sm:$0xff]
  %v1399 = vld [vmem:[%s4] sm:$0x1]
  %v1401 = vlaneseq
  %v1402 = vshrl.u32 %v1401, 7
  %v1403 = vsub.s32 0, %v1402
  %v1404 = vrot.slane %v1399, %v1403
  %1406 = vmatprep.subr.mxu0 0.0
  %1407 = vmatpush1.msra.mxu0 %v1383
  %1408 = vmatprep.subr.mxu0 0.0
  %1409 = vmatpush1.msra.mxu0 %v1384
  %1410 = vmatprep.subr.mxu0 0.0
  %1411 = vmatpush1.msra.mxu0 %v1385
  %1412 = vmatprep.subr.mxu0 0.0
  %1413 = vmatpush1.msra.mxu0 %v1386
  %1414 = vmatprep.subr.mxu0 0.0
  %1415 = vmatpush1.msra.mxu0 %v1387
  %1416 = vmatprep.subr.mxu0 0.0
  %1417 = vmatpush1.msra.mxu0 %v1388
  %1418 = vmatprep.subr.mxu0 0.0
  %1419 = vmatpush1.msra.mxu0 %v1389
  %1420 = vmatprep.subr.mxu0 0.0
  %1421 = vmatpush1.msra.mxu0 %v1390
  %1422 = vmatprep.subr.mxu0 0.0
  %1423 = vmatpush1.msra.mxu0 %v1391
  %1424 = vmatprep.subr.mxu0 0.0
  %1425 = vmatpush1.msra.mxu0 %v1392
  %1426 = vmatprep.subr.mxu0 0.0
  %1427 = vmatpush1.msra.mxu0 %v1393
  %1428 = vmatprep.subr.mxu0 0.0
  %1429 = vmatpush1.msra.mxu0 %v1394
  %1430 = vmatprep.subr.mxu0 0.0
  %1431 = vmatpush1.msra.mxu0 %v1395
  %1432 = vmatprep.subr.mxu0 0.0
  %1433 = vmatpush1.msra.mxu0 %v1396
  %1434 = vmatprep.subr.mxu0 0.0
  %1435 = vmatpush1.msra.mxu0 %v1397
  %1436 = vmatprep.subr.mxu0 0.0
  %1437 = vmatpush1.msra.mxu0 %v1398
  %1438 = vmatprep.subr.mxu0 0.0
  %1439 = vmatpush1.msra.mxu0 0.0
  %1440 = vmatprep.subr.mxu0 0.0
  %1441 = vmatpush1.msra.mxu0 0.0
  %1442 = vmatprep.subr.mxu0 0.0
  %1443 = vmatpush1.msra.mxu0 0.0
  %1444 = vmatprep.subr.mxu0 0.0
  %1445 = vmatpush1.msra.mxu0 0.0
  %1446 = vmatprep.subr.mxu0 0.0
  %1447 = vmatpush1.msra.mxu0 0.0
  %1448 = vmatprep.subr.mxu0 0.0
  %1449 = vmatpush1.msra.mxu0 0.0
  %1450 = vmatprep.subr.mxu0 0.0
  %1451 = vmatpush1.msra.mxu0 0.0
  %1452 = vmatprep.subr.mxu0 0.0
  %1453 = vmatpush1.msra.mxu0 0.0
  %1454 = vmatprep.subr.mxu0 0.0
  %1455 = vmatpush1.msra.mxu0 0.0
  %1456 = vmatprep.subr.mxu0 0.0
  %1457 = vmatpush1.msra.mxu0 0.0
  %1458 = vmatprep.subr.mxu0 0.0
  %1459 = vmatpush1.msra.mxu0 0.0
  %1460 = vmatprep.subr.mxu0 0.0
  %1461 = vmatpush1.msra.mxu0 0.0
  %1462 = vmatprep.subr.mxu0 0.0
  %1463 = vmatpush1.msra.mxu0 0.0
  %1464 = vmatprep.subr.mxu0 0.0
  %1465 = vmatpush1.msra.mxu0 0.0
  %1466 = vmatprep.subr.mxu0 0.0
  %1467 = vmatpush1.msra.mxu0 0.0
  %1468 = vmatprep.subr.mxu0 0.0
  %1469 = vmatpush1.msra.mxu0 0.0
  %1470 = vmatprep.mubr.f32.mxu0 0.0
  %1471 = vmatmul.mubr.f32.gmra.mrb[0].mxu0 %v1255
  %v1472 = vpop.f32.mrb[0].mxu0
  %v1473 = vadd.f32 %v1404, %v1472
  %v1474 = vpop.f32.mrb[0].mxu0
  %1475 = vmatprep.mubr.f32.mxu0 0.0
  %1476 = vmatmul.mubr.f32.gmra.mrb[0].mxu0 %v1256
  %v1477 = vpop.f32.mrb[0].mxu0
  %v1478 = vadd.f32 %v1404, %v1477
  %v1479 = vpop.f32.mrb[0].mxu0
  %1480 = vmatprep.mubr.f32.mxu0 0.0
  %1481 = vmatmul.mubr.f32.gmra.mrb[0].mxu0 %v1257
  %v1482 = vpop.f32.mrb[0].mxu0
  %v1483 = vadd.f32 %v1404, %v1482
  %v1484 = vpop.f32.mrb[0].mxu0
  %1485 = vmatprep.mubr.f32.mxu0 0.0
  %1486 = vmatmul.mubr.f32.gmra.mrb[0].mxu0 %v1258
  %v1487 = vpop.f32.mrb[0].mxu0
  %v1488 = vadd.f32 %v1404, %v1487
  %v1489 = vpop.f32.mrb[0].mxu0
  %1490 = vmatprep.mubr.f32.mxu0 0.0
  %1491 = vmatmul.mubr.f32.gmra.mrb[0].mxu0 %v1259
  %v1492 = vpop.f32.mrb[0].mxu0
  %v1493 = vadd.f32 %v1404, %v1492
  %v1494 = vpop.f32.mrb[0].mxu0
  %1495 = vmatprep.mubr.f32.mxu0 0.0
  %1496 = vmatmul.mubr.f32.gmra.mrb[0].mxu0 %v1260
  %v1497 = vpop.f32.mrb[0].mxu0
  %v1498 = vadd.f32 %v1404, %v1497
  %v1499 = vpop.f32.mrb[0].mxu0
  %1500 = vmatprep.mubr.f32.mxu0 0.0
  %1501 = vmatmul.mubr.f32.gmra.mrb[0].mxu0 %v1261
  %v1502 = vpop.f32.mrb[0].mxu0
  %v1503 = vadd.f32 %v1404, %v1502
  %v1504 = vpop.f32.mrb[0].mxu0
  %1505 = vmatprep.mubr.f32.mxu0 0.0
  %1506 = vmatmul.mubr.f32.gmra.mrb[0].mxu0 %v1262
  %v1507 = vpop.f32.mrb[0].mxu0
  %v1508 = vadd.f32 %v1404, %v1507
  %v1509 = vpop.f32.mrb[0].mxu0
  %1510 = vmatprep.mubr.f32.mxu0 0.0
  %1511 = vmatmul.mubr.f32.gmra.mrb[0].mxu0 %v1263
  %v1512 = vpop.f32.mrb[0].mxu0
  %v1513 = vadd.f32 %v1404, %v1512
  %v1514 = vpop.f32.mrb[0].mxu0
  %1515 = vmatprep.mubr.f32.mxu0 0.0
  %1516 = vmatmul.mubr.f32.gmra.mrb[0].mxu0 %v1264
  %v1517 = vpop.f32.mrb[0].mxu0
  %v1518 = vadd.f32 %v1404, %v1517
  %v1519 = vpop.f32.mrb[0].mxu0
  %1520 = vmatprep.mubr.f32.mxu0 0.0
  %1521 = vmatmul.mubr.f32.gmra.mrb[0].mxu0 %v1265
  %v1522 = vpop.f32.mrb[0].mxu0
  %v1523 = vadd.f32 %v1404, %v1522
  %v1524 = vpop.f32.mrb[0].mxu0
  %1525 = vmatprep.mubr.f32.mxu0 0.0
  %1526 = vmatmul.mubr.f32.gmra.mrb[0].mxu0 %v1266
  %v1527 = vpop.f32.mrb[0].mxu0
  %v1528 = vadd.f32 %v1404, %v1527
  %v1529 = vpop.f32.mrb[0].mxu0
  %1530 = vmatprep.mubr.f32.mxu0 0.0
  %1531 = vmatmul.mubr.f32.gmra.mrb[0].mxu0 %v1267
  %v1532 = vpop.f32.mrb[0].mxu0
  %v1533 = vadd.f32 %v1404, %v1532
  %v1534 = vpop.f32.mrb[0].mxu0
  %1535 = vmatprep.mubr.f32.mxu0 0.0
  %1536 = vmatmul.mubr.f32.gmra.mrb[0].mxu0 %v1268
  %v1537 = vpop.f32.mrb[0].mxu0
  %v1538 = vadd.f32 %v1404, %v1537
  %v1539 = vpop.f32.mrb[0].mxu0
  %1540 = vmatprep.mubr.f32.mxu0 0.0
  %1541 = vmatmul.mubr.f32.gmra.mrb[0].mxu0 %v1269
  %v1542 = vpop.f32.mrb[0].mxu0
  %v1543 = vadd.f32 %v1404, %v1542
  %v1544 = vpop.f32.mrb[0].mxu0
  %1545 = vmatprep.mubr.f32.mxu0 0.0
  %1546 = vmatmul.mubr.f32.gmra.mrb[0].mxu0 %v1270
  %v1547 = vpop.f32.mrb[0].mxu0
  %v1548 = vadd.f32 %v1404, %v1547
  %v1549 = vpop.f32.mrb[0].mxu0
  %1550 = vmatprep.mubr.f32.mxu0 0.0
  %1551 = vmatmul.mubr.f32.gmra.mrb[0].mxu0 %v1271
  %v1552 = vpop.f32.mrb[0].mxu0
  %v1553 = vadd.f32 %v1404, %v1552
  %v1554 = vpop.f32.mrb[0].mxu0
  %1555 = vmatprep.mubr.f32.mxu0 0.0
  %1556 = vmatmul.mubr.f32.gmra.mrb[0].mxu0 %v1272
  %v1557 = vpop.f32.mrb[0].mxu0
  %v1558 = vadd.f32 %v1404, %v1557
  %v1559 = vpop.f32.mrb[0].mxu0
  %1560 = vmatprep.mubr.f32.mxu0 0.0
  %1561 = vmatmul.mubr.f32.gmra.mrb[0].mxu0 %v1273
  %v1562 = vpop.f32.mrb[0].mxu0
  %v1563 = vadd.f32 %v1404, %v1562
  %v1564 = vpop.f32.mrb[0].mxu0
  %1565 = vmatprep.mubr.f32.mxu0 0.0
  %1566 = vmatmul.mubr.f32.gmra.mrb[0].mxu0 %v1274
  %v1567 = vpop.f32.mrb[0].mxu0
  %v1568 = vadd.f32 %v1404, %v1567
  %v1569 = vpop.f32.mrb[0].mxu0
  %1570 = vmatprep.mubr.f32.mxu0 0.0
  %1571 = vmatmul.mubr.f32.gmra.mrb[0].mxu0 %v1275
  %v1572 = vpop.f32.mrb[0].mxu0
  %v1573 = vadd.f32 %v1404, %v1572
  %v1574 = vpop.f32.mrb[0].mxu0
  %1575 = vmatprep.mubr.f32.mxu0 0.0
  %1576 = vmatmul.mubr.f32.gmra.mrb[0].mxu0 %v1276
  %v1577 = vpop.f32.mrb[0].mxu0
  %v1578 = vadd.f32 %v1404, %v1577
  %v1579 = vpop.f32.mrb[0].mxu0
  %1580 = vmatprep.mubr.f32.mxu0 0.0
  %1581 = vmatmul.mubr.f32.gmra.mrb[0].mxu0 %v1277
  %v1582 = vpop.f32.mrb[0].mxu0
  %v1583 = vadd.f32 %v1404, %v1582
  %v1584 = vpop.f32.mrb[0].mxu0
  %1585 = vmatprep.mubr.f32.mxu0 0.0
  %1586 = vmatmul.mubr.f32.gmra.mrb[0].mxu0 %v1278
  %v1587 = vpop.f32.mrb[0].mxu0
  %v1588 = vadd.f32 %v1404, %v1587
  %v1589 = vpop.f32.mrb[0].mxu0
  %1590 = vmatprep.mubr.f32.mxu0 0.0
  %1591 = vmatmul.mubr.f32.gmra.mrb[0].mxu0 %v1279
  %v1592 = vpop.f32.mrb[0].mxu0
  %v1593 = vadd.f32 %v1404, %v1592
  %v1594 = vpop.f32.mrb[0].mxu0
  %1595 = vmatprep.mubr.f32.mxu0 0.0
  %1596 = vmatmul.mubr.f32.gmra.mrb[0].mxu0 %v1280
  %v1597 = vpop.f32.mrb[0].mxu0
  %v1598 = vadd.f32 %v1404, %v1597
  %v1599 = vpop.f32.mrb[0].mxu0
  %1600 = vmatprep.mubr.f32.mxu0 0.0
  %1601 = vmatmul.mubr.f32.gmra.mrb[0].mxu0 %v1281
  %v1602 = vpop.f32.mrb[0].mxu0
  %v1603 = vadd.f32 %v1404, %v1602
  %v1604 = vpop.f32.mrb[0].mxu0
  %1605 = vmatprep.mubr.f32.mxu0 0.0
  %1606 = vmatmul.mubr.f32.gmra.mrb[0].mxu0 %v1282
  %v1607 = vpop.f32.mrb[0].mxu0
  %v1608 = vadd.f32 %v1404, %v1607
  %v1609 = vpop.f32.mrb[0].mxu0
  %1610 = vmatprep.mubr.f32.mxu0 0.0
  %1611 = vmatmul.mubr.f32.gmra.mrb[0].mxu0 %v1283
  %v1612 = vpop.f32.mrb[0].mxu0
  %v1613 = vadd.f32 %v1404, %v1612
  %v1614 = vpop.f32.mrb[0].mxu0
  %1615 = vmatprep.mubr.f32.mxu0 0.0
  %1616 = vmatmul.mubr.f32.gmra.mrb[0].mxu0 %v1284
  %v1617 = vpop.f32.mrb[0].mxu0
  %v1618 = vadd.f32 %v1404, %v1617
  %v1619 = vpop.f32.mrb[0].mxu0
  %1620 = vmatprep.mubr.f32.mxu0 0.0
  %1621 = vmatmul.mubr.f32.gmra.mrb[0].mxu0 %v1285
  %v1622 = vpop.f32.mrb[0].mxu0
  %v1623 = vadd.f32 %v1404, %v1622
  %v1624 = vpop.f32.mrb[0].mxu0
  %1625 = vmatprep.mubr.f32.mxu0 0.0
  %1626 = vmatmul.mubr.f32.gmra.mrb[0].mxu0 %v1286
  %v1627 = vpop.f32.mrb[0].mxu0
  %v1628 = vadd.f32 %v1404, %v1627
  %v1629 = vpop.f32.mrb[0].mxu0
  %1630 = vmatprep.mubr.f32.mxu0 0.0
  %1631 = vmatmul.mubr.f32.gmra.mrb[0].mxu0 %v1287
  %v1632 = vpop.f32.mrb[0].mxu0
  %v1633 = vadd.f32 %v1404, %v1632
  %v1634 = vpop.f32.mrb[0].mxu0
  %1635 = vmatprep.mubr.f32.mxu0 0.0
  %1636 = vmatmul.mubr.f32.gmra.mrb[0].mxu0 %v1288
  %v1637 = vpop.f32.mrb[0].mxu0
  %v1638 = vadd.f32 %v1404, %v1637
  %v1639 = vpop.f32.mrb[0].mxu0
  %1640 = vmatprep.mubr.f32.mxu0 0.0
  %1641 = vmatmul.mubr.f32.gmra.mrb[0].mxu0 %v1289
  %v1642 = vpop.f32.mrb[0].mxu0
  %v1643 = vadd.f32 %v1404, %v1642
  %v1644 = vpop.f32.mrb[0].mxu0
  %1645 = vmatprep.mubr.f32.mxu0 0.0
  %1646 = vmatmul.mubr.f32.gmra.mrb[0].mxu0 %v1290
  %v1647 = vpop.f32.mrb[0].mxu0
  %v1648 = vadd.f32 %v1404, %v1647
  %v1649 = vpop.f32.mrb[0].mxu0
  %1650 = vmatprep.mubr.f32.mxu0 0.0
  %1651 = vmatmul.mubr.f32.gmra.mrb[0].mxu0 %v1291
  %v1652 = vpop.f32.mrb[0].mxu0
  %v1653 = vadd.f32 %v1404, %v1652
  %v1654 = vpop.f32.mrb[0].mxu0
  %1655 = vmatprep.mubr.f32.mxu0 0.0
  %1656 = vmatmul.mubr.f32.gmra.mrb[0].mxu0 %v1292
  %v1657 = vpop.f32.mrb[0].mxu0
  %v1658 = vadd.f32 %v1404, %v1657
  %v1659 = vpop.f32.mrb[0].mxu0
  %1660 = vmatprep.mubr.f32.mxu0 0.0
  %1661 = vmatmul.mubr.f32.gmra.mrb[0].mxu0 %v1293
  %v1662 = vpop.f32.mrb[0].mxu0
  %v1663 = vadd.f32 %v1404, %v1662
  %v1664 = vpop.f32.mrb[0].mxu0
  %1665 = vmatprep.mubr.f32.mxu0 0.0
  %1666 = vmatmul.mubr.f32.gmra.mrb[0].mxu0 %v1294
  %v1667 = vpop.f32.mrb[0].mxu0
  %v1668 = vadd.f32 %v1404, %v1667
  %v1669 = vpop.f32.mrb[0].mxu0
  %1670 = vmatprep.mubr.f32.mxu0 0.0
  %1671 = vmatmul.mubr.f32.gmra.mrb[0].mxu0 %v1295
  %v1672 = vpop.f32.mrb[0].mxu0
  %v1673 = vadd.f32 %v1404, %v1672
  %v1674 = vpop.f32.mrb[0].mxu0
  %1675 = vmatprep.mubr.f32.mxu0 0.0
  %1676 = vmatmul.mubr.f32.gmra.mrb[0].mxu0 %v1296
  %v1677 = vpop.f32.mrb[0].mxu0
  %v1678 = vadd.f32 %v1404, %v1677
  %v1679 = vpop.f32.mrb[0].mxu0
  %1680 = vmatprep.mubr.f32.mxu0 0.0
  %1681 = vmatmul.mubr.f32.gmra.mrb[0].mxu0 %v1297
  %v1682 = vpop.f32.mrb[0].mxu0
  %v1683 = vadd.f32 %v1404, %v1682
  %v1684 = vpop.f32.mrb[0].mxu0
  %1685 = vmatprep.mubr.f32.mxu0 0.0
  %1686 = vmatmul.mubr.f32.gmra.mrb[0].mxu0 %v1298
  %v1687 = vpop.f32.mrb[0].mxu0
  %v1688 = vadd.f32 %v1404, %v1687
  %v1689 = vpop.f32.mrb[0].mxu0
  %1690 = vmatprep.mubr.f32.mxu0 0.0
  %1691 = vmatmul.mubr.f32.gmra.mrb[0].mxu0 %v1299
  %v1692 = vpop.f32.mrb[0].mxu0
  %v1693 = vadd.f32 %v1404, %v1692
  %v1694 = vpop.f32.mrb[0].mxu0
  %1695 = vmatprep.mubr.f32.mxu0 0.0
  %1696 = vmatmul.mubr.f32.gmra.mrb[0].mxu0 %v1300
  %v1697 = vpop.f32.mrb[0].mxu0
  %v1698 = vadd.f32 %v1404, %v1697
  %v1699 = vpop.f32.mrb[0].mxu0
  %1700 = vmatprep.mubr.f32.mxu0 0.0
  %1701 = vmatmul.mubr.f32.gmra.mrb[0].mxu0 %v1301
  %v1702 = vpop.f32.mrb[0].mxu0
  %v1703 = vadd.f32 %v1404, %v1702
  %v1704 = vpop.f32.mrb[0].mxu0
  %1705 = vmatprep.mubr.f32.mxu0 0.0
  %1706 = vmatmul.mubr.f32.gmra.mrb[0].mxu0 %v1302
  %v1707 = vpop.f32.mrb[0].mxu0
  %v1708 = vadd.f32 %v1404, %v1707
  %v1709 = vpop.f32.mrb[0].mxu0
  %1710 = vmatprep.mubr.f32.mxu0 0.0
  %1711 = vmatmul.mubr.f32.gmra.mrb[0].mxu0 %v1303
  %v1712 = vpop.f32.mrb[0].mxu0
  %v1713 = vadd.f32 %v1404, %v1712
  %v1714 = vpop.f32.mrb[0].mxu0
  %1715 = vmatprep.mubr.f32.mxu0 0.0
  %1716 = vmatmul.mubr.f32.gmra.mrb[0].mxu0 %v1304
  %v1717 = vpop.f32.mrb[0].mxu0
  %v1718 = vadd.f32 %v1404, %v1717
  %v1719 = vpop.f32.mrb[0].mxu0
  %1720 = vmatprep.mubr.f32.mxu0 0.0
  %1721 = vmatmul.mubr.f32.gmra.mrb[0].mxu0 %v1305
  %v1722 = vpop.f32.mrb[0].mxu0
  %v1723 = vadd.f32 %v1404, %v1722
  %v1724 = vpop.f32.mrb[0].mxu0
  %1725 = vmatprep.mubr.f32.mxu0 0.0
  %1726 = vmatmul.mubr.f32.gmra.mrb[0].mxu0 %v1306
  %v1727 = vpop.f32.mrb[0].mxu0
  %v1728 = vadd.f32 %v1404, %v1727
  %v1729 = vpop.f32.mrb[0].mxu0
  %1730 = vmatprep.mubr.f32.mxu0 0.0
  %1731 = vmatmul.mubr.f32.gmra.mrb[0].mxu0 %v1307
  %v1732 = vpop.f32.mrb[0].mxu0
  %v1733 = vadd.f32 %v1404, %v1732
  %v1734 = vpop.f32.mrb[0].mxu0
  %1735 = vmatprep.mubr.f32.mxu0 0.0
  %1736 = vmatmul.mubr.f32.gmra.mrb[0].mxu0 %v1308
  %v1737 = vpop.f32.mrb[0].mxu0
  %v1738 = vadd.f32 %v1404, %v1737
  %v1739 = vpop.f32.mrb[0].mxu0
  %1740 = vmatprep.mubr.f32.mxu0 0.0
  %1741 = vmatmul.mubr.f32.gmra.mrb[0].mxu0 %v1309
  %v1742 = vpop.f32.mrb[0].mxu0
  %v1743 = vadd.f32 %v1404, %v1742
  %v1744 = vpop.f32.mrb[0].mxu0
  %1745 = vmatprep.mubr.f32.mxu0 0.0
  %1746 = vmatmul.mubr.f32.gmra.mrb[0].mxu0 %v1310
  %v1747 = vpop.f32.mrb[0].mxu0
  %v1748 = vadd.f32 %v1404, %v1747
  %v1749 = vpop.f32.mrb[0].mxu0
  %1750 = vmatprep.mubr.f32.mxu0 0.0
  %1751 = vmatmul.mubr.f32.gmra.mrb[0].mxu0 %v1311
  %v1752 = vpop.f32.mrb[0].mxu0
  %v1753 = vadd.f32 %v1404, %v1752
  %v1754 = vpop.f32.mrb[0].mxu0
  %1755 = vmatprep.mubr.f32.mxu0 0.0
  %1756 = vmatmul.mubr.f32.gmra.mrb[0].mxu0 %v1312
  %v1757 = vpop.f32.mrb[0].mxu0
  %v1758 = vadd.f32 %v1404, %v1757
  %v1759 = vpop.f32.mrb[0].mxu0
  %1760 = vmatprep.mubr.f32.mxu0 0.0
  %1761 = vmatmul.mubr.f32.gmra.mrb[0].mxu0 %v1313
  %v1762 = vpop.f32.mrb[0].mxu0
  %v1763 = vadd.f32 %v1404, %v1762
  %v1764 = vpop.f32.mrb[0].mxu0
  %1765 = vmatprep.mubr.f32.mxu0 0.0
  %1766 = vmatmul.mubr.f32.gmra.mrb[0].mxu0 %v1314
  %v1767 = vpop.f32.mrb[0].mxu0
  %v1768 = vadd.f32 %v1404, %v1767
  %v1769 = vpop.f32.mrb[0].mxu0
  %1770 = vmatprep.mubr.f32.mxu0 0.0
  %1771 = vmatmul.mubr.f32.gmra.mrb[0].mxu0 %v1315
  %v1772 = vpop.f32.mrb[0].mxu0
  %v1773 = vadd.f32 %v1404, %v1772
  %v1774 = vpop.f32.mrb[0].mxu0
  %1775 = vmatprep.mubr.f32.mxu0 0.0
  %1776 = vmatmul.mubr.f32.gmra.mrb[0].mxu0 %v1316
  %v1777 = vpop.f32.mrb[0].mxu0
  %v1778 = vadd.f32 %v1404, %v1777
  %v1779 = vpop.f32.mrb[0].mxu0
  %1780 = vmatprep.mubr.f32.mxu0 0.0
  %1781 = vmatmul.mubr.f32.gmra.mrb[0].mxu0 %v1317
  %v1782 = vpop.f32.mrb[0].mxu0
  %v1783 = vadd.f32 %v1404, %v1782
  %v1784 = vpop.f32.mrb[0].mxu0
  %1785 = vmatprep.mubr.f32.mxu0 0.0
  %1786 = vmatmul.mubr.f32.gmra.mrb[0].mxu0 %v1318
  %v1787 = vpop.f32.mrb[0].mxu0
  %v1788 = vadd.f32 %v1404, %v1787
  %v1789 = vpop.f32.mrb[0].mxu0
  %1790 = vmatprep.mubr.f32.mxu0 0.0
  %1791 = vmatmul.mubr.f32.gmra.mrb[0].mxu0 %v1319
  %v1792 = vpop.f32.mrb[0].mxu0
  %v1793 = vadd.f32 %v1404, %v1792
  %v1794 = vpop.f32.mrb[0].mxu0
  %1795 = vmatprep.mubr.f32.mxu0 0.0
  %1796 = vmatmul.mubr.f32.gmra.mrb[0].mxu0 %v1320
  %v1797 = vpop.f32.mrb[0].mxu0
  %v1798 = vadd.f32 %v1404, %v1797
  %v1799 = vpop.f32.mrb[0].mxu0
  %1800 = vmatprep.mubr.f32.mxu0 0.0
  %1801 = vmatmul.mubr.f32.gmra.mrb[0].mxu0 %v1321
  %v1802 = vpop.f32.mrb[0].mxu0
  %v1803 = vadd.f32 %v1404, %v1802
  %v1804 = vpop.f32.mrb[0].mxu0
  %1805 = vmatprep.mubr.f32.mxu0 0.0
  %1806 = vmatmul.mubr.f32.gmra.mrb[0].mxu0 %v1322
  %v1807 = vpop.f32.mrb[0].mxu0
  %v1808 = vadd.f32 %v1404, %v1807
  %v1809 = vpop.f32.mrb[0].mxu0
  %1810 = vmatprep.mubr.f32.mxu0 0.0
  %1811 = vmatmul.mubr.f32.gmra.mrb[0].mxu0 %v1323
  %v1812 = vpop.f32.mrb[0].mxu0
  %v1813 = vadd.f32 %v1404, %v1812
  %v1814 = vpop.f32.mrb[0].mxu0
  %1815 = vmatprep.mubr.f32.mxu0 0.0
  %1816 = vmatmul.mubr.f32.gmra.mrb[0].mxu0 %v1324
  %v1817 = vpop.f32.mrb[0].mxu0
  %v1818 = vadd.f32 %v1404, %v1817
  %v1819 = vpop.f32.mrb[0].mxu0
  %1820 = vmatprep.mubr.f32.mxu0 0.0
  %1821 = vmatmul.mubr.f32.gmra.mrb[0].mxu0 %v1325
  %v1822 = vpop.f32.mrb[0].mxu0
  %v1823 = vadd.f32 %v1404, %v1822
  %v1824 = vpop.f32.mrb[0].mxu0
  %1825 = vmatprep.mubr.f32.mxu0 0.0
  %1826 = vmatmul.mubr.f32.gmra.mrb[0].mxu0 %v1326
  %v1827 = vpop.f32.mrb[0].mxu0
  %v1828 = vadd.f32 %v1404, %v1827
  %v1829 = vpop.f32.mrb[0].mxu0
  %1830 = vmatprep.mubr.f32.mxu0 0.0
  %1831 = vmatmul.mubr.f32.gmra.mrb[0].mxu0 %v1327
  %v1832 = vpop.f32.mrb[0].mxu0
  %v1833 = vadd.f32 %v1404, %v1832
  %v1834 = vpop.f32.mrb[0].mxu0
  %1835 = vmatprep.mubr.f32.mxu0 0.0
  %1836 = vmatmul.mubr.f32.gmra.mrb[0].mxu0 %v1328
  %v1837 = vpop.f32.mrb[0].mxu0
  %v1838 = vadd.f32 %v1404, %v1837
  %v1839 = vpop.f32.mrb[0].mxu0
  %1840 = vmatprep.mubr.f32.mxu0 0.0
  %1841 = vmatmul.mubr.f32.gmra.mrb[0].mxu0 %v1329
  %v1842 = vpop.f32.mrb[0].mxu0
  %v1843 = vadd.f32 %v1404, %v1842
  %v1844 = vpop.f32.mrb[0].mxu0
  %1845 = vmatprep.mubr.f32.mxu0 0.0
  %1846 = vmatmul.mubr.f32.gmra.mrb[0].mxu0 %v1330
  %v1847 = vpop.f32.mrb[0].mxu0
  %v1848 = vadd.f32 %v1404, %v1847
  %v1849 = vpop.f32.mrb[0].mxu0
  %1850 = vmatprep.mubr.f32.mxu0 0.0
  %1851 = vmatmul.mubr.f32.gmra.mrb[0].mxu0 %v1331
  %v1852 = vpop.f32.mrb[0].mxu0
  %v1853 = vadd.f32 %v1404, %v1852
  %v1854 = vpop.f32.mrb[0].mxu0
  %1855 = vmatprep.mubr.f32.mxu0 0.0
  %1856 = vmatmul.mubr.f32.gmra.mrb[0].mxu0 %v1332
  %v1857 = vpop.f32.mrb[0].mxu0
  %v1858 = vadd.f32 %v1404, %v1857
  %v1859 = vpop.f32.mrb[0].mxu0
  %1860 = vmatprep.mubr.f32.mxu0 0.0
  %1861 = vmatmul.mubr.f32.gmra.mrb[0].mxu0 %v1333
  %v1862 = vpop.f32.mrb[0].mxu0
  %v1863 = vadd.f32 %v1404, %v1862
  %v1864 = vpop.f32.mrb[0].mxu0
  %1865 = vmatprep.mubr.f32.mxu0 0.0
  %1866 = vmatmul.mubr.f32.gmra.mrb[0].mxu0 %v1334
  %v1867 = vpop.f32.mrb[0].mxu0
  %v1868 = vadd.f32 %v1404, %v1867
  %v1869 = vpop.f32.mrb[0].mxu0
  %1870 = vmatprep.mubr.f32.mxu0 0.0
  %1871 = vmatmul.mubr.f32.gmra.mrb[0].mxu0 %v1335
  %v1872 = vpop.f32.mrb[0].mxu0
  %v1873 = vadd.f32 %v1404, %v1872
  %v1874 = vpop.f32.mrb[0].mxu0
  %1875 = vmatprep.mubr.f32.mxu0 0.0
  %1876 = vmatmul.mubr.f32.gmra.mrb[0].mxu0 %v1336
  %v1877 = vpop.f32.mrb[0].mxu0
  %v1878 = vadd.f32 %v1404, %v1877
  %v1879 = vpop.f32.mrb[0].mxu0
  %1880 = vmatprep.mubr.f32.mxu0 0.0
  %1881 = vmatmul.mubr.f32.gmra.mrb[0].mxu0 %v1337
  %v1882 = vpop.f32.mrb[0].mxu0
  %v1883 = vadd.f32 %v1404, %v1882
  %v1884 = vpop.f32.mrb[0].mxu0
  %1885 = vmatprep.mubr.f32.mxu0 0.0
  %1886 = vmatmul.mubr.f32.gmra.mrb[0].mxu0 %v1338
  %v1887 = vpop.f32.mrb[0].mxu0
  %v1888 = vadd.f32 %v1404, %v1887
  %v1889 = vpop.f32.mrb[0].mxu0
  %1890 = vmatprep.mubr.f32.mxu0 0.0
  %1891 = vmatmul.mubr.f32.gmra.mrb[0].mxu0 %v1339
  %v1892 = vpop.f32.mrb[0].mxu0
  %v1893 = vadd.f32 %v1404, %v1892
  %v1894 = vpop.f32.mrb[0].mxu0
  %1895 = vmatprep.mubr.f32.mxu0 0.0
  %1896 = vmatmul.mubr.f32.gmra.mrb[0].mxu0 %v1340
  %v1897 = vpop.f32.mrb[0].mxu0
  %v1898 = vadd.f32 %v1404, %v1897
  %v1899 = vpop.f32.mrb[0].mxu0
  %1900 = vmatprep.mubr.f32.mxu0 0.0
  %1901 = vmatmul.mubr.f32.gmra.mrb[0].mxu0 %v1341
  %v1902 = vpop.f32.mrb[0].mxu0
  %v1903 = vadd.f32 %v1404, %v1902
  %v1904 = vpop.f32.mrb[0].mxu0
  %1905 = vmatprep.mubr.f32.mxu0 0.0
  %1906 = vmatmul.mubr.f32.gmra.mrb[0].mxu0 %v1342
  %v1907 = vpop.f32.mrb[0].mxu0
  %v1908 = vadd.f32 %v1404, %v1907
  %v1909 = vpop.f32.mrb[0].mxu0
  %1910 = vmatprep.mubr.f32.mxu0 0.0
  %1911 = vmatmul.mubr.f32.gmra.mrb[0].mxu0 %v1343
  %v1912 = vpop.f32.mrb[0].mxu0
  %v1913 = vadd.f32 %v1404, %v1912
  %v1914 = vpop.f32.mrb[0].mxu0
  %1915 = vmatprep.mubr.f32.mxu0 0.0
  %1916 = vmatmul.mubr.f32.gmra.mrb[0].mxu0 %v1344
  %v1917 = vpop.f32.mrb[0].mxu0
  %v1918 = vadd.f32 %v1404, %v1917
  %v1919 = vpop.f32.mrb[0].mxu0
  %1920 = vmatprep.mubr.f32.mxu0 0.0
  %1921 = vmatmul.mubr.f32.gmra.mrb[0].mxu0 %v1345
  %v1922 = vpop.f32.mrb[0].mxu0
  %v1923 = vadd.f32 %v1404, %v1922
  %v1924 = vpop.f32.mrb[0].mxu0
  %1925 = vmatprep.mubr.f32.mxu0 0.0
  %1926 = vmatmul.mubr.f32.gmra.mrb[0].mxu0 %v1346
  %v1927 = vpop.f32.mrb[0].mxu0
  %v1928 = vadd.f32 %v1404, %v1927
  %v1929 = vpop.f32.mrb[0].mxu0
  %1930 = vmatprep.mubr.f32.mxu0 0.0
  %1931 = vmatmul.mubr.f32.gmra.mrb[0].mxu0 %v1347
  %v1932 = vpop.f32.mrb[0].mxu0
  %v1933 = vadd.f32 %v1404, %v1932
  %v1934 = vpop.f32.mrb[0].mxu0
  %1935 = vmatprep.mubr.f32.mxu0 0.0
  %1936 = vmatmul.mubr.f32.gmra.mrb[0].mxu0 %v1348
  %v1937 = vpop.f32.mrb[0].mxu0
  %v1938 = vadd.f32 %v1404, %v1937
  %v1939 = vpop.f32.mrb[0].mxu0
  %1940 = vmatprep.mubr.f32.mxu0 0.0
  %1941 = vmatmul.mubr.f32.gmra.mrb[0].mxu0 %v1349
  %v1942 = vpop.f32.mrb[0].mxu0
  %v1943 = vadd.f32 %v1404, %v1942
  %v1944 = vpop.f32.mrb[0].mxu0
  %1945 = vmatprep.mubr.f32.mxu0 0.0
  %1946 = vmatmul.mubr.f32.gmra.mrb[0].mxu0 %v1350
  %v1947 = vpop.f32.mrb[0].mxu0
  %v1948 = vadd.f32 %v1404, %v1947
  %v1949 = vpop.f32.mrb[0].mxu0
  %1950 = vmatprep.mubr.f32.mxu0 0.0
  %1951 = vmatmul.mubr.f32.gmra.mrb[0].mxu0 %v1351
  %v1952 = vpop.f32.mrb[0].mxu0
  %v1953 = vadd.f32 %v1404, %v1952
  %v1954 = vpop.f32.mrb[0].mxu0
  %1955 = vmatprep.mubr.f32.mxu0 0.0
  %1956 = vmatmul.mubr.f32.gmra.mrb[0].mxu0 %v1352
  %v1957 = vpop.f32.mrb[0].mxu0
  %v1958 = vadd.f32 %v1404, %v1957
  %v1959 = vpop.f32.mrb[0].mxu0
  %1960 = vmatprep.mubr.f32.mxu0 0.0
  %1961 = vmatmul.mubr.f32.gmra.mrb[0].mxu0 %v1353
  %v1962 = vpop.f32.mrb[0].mxu0
  %v1963 = vadd.f32 %v1404, %v1962
  %v1964 = vpop.f32.mrb[0].mxu0
  %1965 = vmatprep.mubr.f32.mxu0 0.0
  %1966 = vmatmul.mubr.f32.gmra.mrb[0].mxu0 %v1354
  %v1967 = vpop.f32.mrb[0].mxu0
  %v1968 = vadd.f32 %v1404, %v1967
  %v1969 = vpop.f32.mrb[0].mxu0
  %1970 = vmatprep.mubr.f32.mxu0 0.0
  %1971 = vmatmul.mubr.f32.gmra.mrb[0].mxu0 %v1355
  %v1972 = vpop.f32.mrb[0].mxu0
  %v1973 = vadd.f32 %v1404, %v1972
  %v1974 = vpop.f32.mrb[0].mxu0
  %1975 = vmatprep.mubr.f32.mxu0 0.0
  %1976 = vmatmul.mubr.f32.gmra.mrb[0].mxu0 %v1356
  %v1977 = vpop.f32.mrb[0].mxu0
  %v1978 = vadd.f32 %v1404, %v1977
  %v1979 = vpop.f32.mrb[0].mxu0
  %1980 = vmatprep.mubr.f32.mxu0 0.0
  %1981 = vmatmul.mubr.f32.gmra.mrb[0].mxu0 %v1357
  %v1982 = vpop.f32.mrb[0].mxu0
  %v1983 = vadd.f32 %v1404, %v1982
  %v1984 = vpop.f32.mrb[0].mxu0
  %1985 = vmatprep.mubr.f32.mxu0 0.0
  %1986 = vmatmul.mubr.f32.gmra.mrb[0].mxu0 %v1358
  %v1987 = vpop.f32.mrb[0].mxu0
  %v1988 = vadd.f32 %v1404, %v1987
  %v1989 = vpop.f32.mrb[0].mxu0
  %1990 = vmatprep.mubr.f32.mxu0 0.0
  %1991 = vmatmul.mubr.f32.gmra.mrb[0].mxu0 %v1359
  %v1992 = vpop.f32.mrb[0].mxu0
  %v1993 = vadd.f32 %v1404, %v1992
  %v1994 = vpop.f32.mrb[0].mxu0
  %1995 = vmatprep.mubr.f32.mxu0 0.0
  %1996 = vmatmul.mubr.f32.gmra.mrb[0].mxu0 %v1360
  %v1997 = vpop.f32.mrb[0].mxu0
  %v1998 = vadd.f32 %v1404, %v1997
  %v1999 = vpop.f32.mrb[0].mxu0
  %2000 = vmatprep.mubr.f32.mxu0 0.0
  %2001 = vmatmul.mubr.f32.gmra.mrb[0].mxu0 %v1361
  %v2002 = vpop.f32.mrb[0].mxu0
  %v2003 = vadd.f32 %v1404, %v2002
  %v2004 = vpop.f32.mrb[0].mxu0
  %2005 = vmatprep.mubr.f32.mxu0 0.0
  %2006 = vmatmul.mubr.f32.gmra.mrb[0].mxu0 %v1362
  %v2007 = vpop.f32.mrb[0].mxu0
  %v2008 = vadd.f32 %v1404, %v2007
  %v2009 = vpop.f32.mrb[0].mxu0
  %2010 = vmatprep.mubr.f32.mxu0 0.0
  %2011 = vmatmul.mubr.f32.gmra.mrb[0].mxu0 %v1363
  %v2012 = vpop.f32.mrb[0].mxu0
  %v2013 = vadd.f32 %v1404, %v2012
  %v2014 = vpop.f32.mrb[0].mxu0
  %2015 = vmatprep.mubr.f32.mxu0 0.0
  %2016 = vmatmul.mubr.f32.gmra.mrb[0].mxu0 %v1364
  %v2017 = vpop.f32.mrb[0].mxu0
  %v2018 = vadd.f32 %v1404, %v2017
  %v2019 = vpop.f32.mrb[0].mxu0
  %2020 = vmatprep.mubr.f32.mxu0 0.0
  %2021 = vmatmul.mubr.f32.gmra.mrb[0].mxu0 %v1365
  %v2022 = vpop.f32.mrb[0].mxu0
  %v2023 = vadd.f32 %v1404, %v2022
  %v2024 = vpop.f32.mrb[0].mxu0
  %2025 = vmatprep.mubr.f32.mxu0 0.0
  %2026 = vmatmul.mubr.f32.gmra.mrb[0].mxu0 %v1366
  %v2027 = vpop.f32.mrb[0].mxu0
  %v2028 = vadd.f32 %v1404, %v2027
  %v2029 = vpop.f32.mrb[0].mxu0
  %2030 = vmatprep.mubr.f32.mxu0 0.0
  %2031 = vmatmul.mubr.f32.gmra.mrb[0].mxu0 %v1367
  %v2032 = vpop.f32.mrb[0].mxu0
  %v2033 = vadd.f32 %v1404, %v2032
  %v2034 = vpop.f32.mrb[0].mxu0
  %2035 = vmatprep.mubr.f32.mxu0 0.0
  %2036 = vmatmul.mubr.f32.gmra.mrb[0].mxu0 %v1368
  %v2037 = vpop.f32.mrb[0].mxu0
  %v2038 = vadd.f32 %v1404, %v2037
  %v2039 = vpop.f32.mrb[0].mxu0
  %2040 = vmatprep.mubr.f32.mxu0 0.0
  %2041 = vmatmul.mubr.f32.gmra.mrb[0].mxu0 %v1369
  %v2042 = vpop.f32.mrb[0].mxu0
  %v2043 = vadd.f32 %v1404, %v2042
  %v2044 = vpop.f32.mrb[0].mxu0
  %2045 = vmatprep.mubr.f32.mxu0 0.0
  %2046 = vmatmul.mubr.f32.gmra.mrb[0].mxu0 %v1370
  %v2047 = vpop.f32.mrb[0].mxu0
  %v2048 = vadd.f32 %v1404, %v2047
  %v2049 = vpop.f32.mrb[0].mxu0
  %2050 = vmatprep.mubr.f32.mxu0 0.0
  %2051 = vmatmul.mubr.f32.gmra.mrb[0].mxu0 %v1371
  %v2052 = vpop.f32.mrb[0].mxu0
  %v2053 = vadd.f32 %v1404, %v2052
  %v2054 = vpop.f32.mrb[0].mxu0
  %2055 = vmatprep.mubr.f32.mxu0 0.0
  %2056 = vmatmul.mubr.f32.gmra.mrb[0].mxu0 %v1372
  %v2057 = vpop.f32.mrb[0].mxu0
  %v2058 = vadd.f32 %v1404, %v2057
  %v2059 = vpop.f32.mrb[0].mxu0
  %2060 = vmatprep.mubr.f32.mxu0 0.0
  %2061 = vmatmul.mubr.f32.gmra.mrb[0].mxu0 %v1373
  %v2062 = vpop.f32.mrb[0].mxu0
  %v2063 = vadd.f32 %v1404, %v2062
  %v2064 = vpop.f32.mrb[0].mxu0
  %2065 = vmatprep.mubr.f32.mxu0 0.0
  %2066 = vmatmul.mubr.f32.gmra.mrb[0].mxu0 %v1374
  %v2067 = vpop.f32.mrb[0].mxu0
  %v2068 = vadd.f32 %v1404, %v2067
  %v2069 = vpop.f32.mrb[0].mxu0
  %2070 = vmatprep.mubr.f32.mxu0 0.0
  %2071 = vmatmul.mubr.f32.gmra.mrb[0].mxu0 %v1375
  %v2072 = vpop.f32.mrb[0].mxu0
  %v2073 = vadd.f32 %v1404, %v2072
  %v2074 = vpop.f32.mrb[0].mxu0
  %2075 = vmatprep.mubr.f32.mxu0 0.0
  %2076 = vmatmul.mubr.f32.gmra.mrb[0].mxu0 %v1376
  %v2077 = vpop.f32.mrb[0].mxu0
  %v2078 = vadd.f32 %v1404, %v2077
  %v2079 = vpop.f32.mrb[0].mxu0
  %2080 = vmatprep.mubr.f32.mxu0 0.0
  %2081 = vmatmul.mubr.f32.gmra.mrb[0].mxu0 %v1377
  %v2082 = vpop.f32.mrb[0].mxu0
  %v2083 = vadd.f32 %v1404, %v2082
  %v2084 = vpop.f32.mrb[0].mxu0
  %2085 = vmatprep.mubr.f32.mxu0 0.0
  %2086 = vmatmul.mubr.f32.gmra.mrb[0].mxu0 %v1378
  %v2087 = vpop.f32.mrb[0].mxu0
  %v2088 = vadd.f32 %v1404, %v2087
  %v2089 = vpop.f32.mrb[0].mxu0
  %2090 = vmatprep.mubr.f32.mxu0 0.0
  %2091 = vmatmul.mubr.f32.gmra.mrb[0].mxu0 %v1379
  %v2092 = vpop.f32.mrb[0].mxu0
  %v2093 = vadd.f32 %v1404, %v2092
  %v2094 = vpop.f32.mrb[0].mxu0
  %2095 = vmatprep.mubr.f32.mxu0 0.0
  %2096 = vmatmul.mubr.f32.gmra.mrb[0].mxu0 %v1380
  %v2097 = vpop.f32.mrb[0].mxu0
  %v2098 = vadd.f32 %v1404, %v2097
  %v2099 = vpop.f32.mrb[0].mxu0
  %2100 = vmatprep.mubr.f32.mxu0 0.0
  %2101 = vmatmul.mubr.f32.gmra.mrb[0].mxu0 %v1381
  %v2102 = vpop.f32.mrb[0].mxu0
  %v2103 = vadd.f32 %v1404, %v2102
  %v2104 = vpop.f32.mrb[0].mxu0
  %2105 = vmatprep.mubr.f32.mxu0 0.0
  %2106 = vmatmul.mubr.f32.gmra.mrb[0].mxu0 %v1382
  %v2107 = vpop.f32.mrb[0].mxu0
  %v2108 = vadd.f32 %v1404, %v2107
  %v2109 = vpop.f32.mrb[0].mxu0
  %2110 = vdwg.mxu0
  %v2111 = vmax.f32 %v1473, 0.0
  %v2112 = vmax.f32 %v1478, 0.0
  %v2113 = vmax.f32 %v1483, 0.0
  %v2114 = vmax.f32 %v1488, 0.0
  %v2115 = vmax.f32 %v1493, 0.0
  %v2116 = vmax.f32 %v1498, 0.0
  %v2117 = vmax.f32 %v1503, 0.0
  %v2118 = vmax.f32 %v1508, 0.0
  %v2119 = vmax.f32 %v1513, 0.0
  %v2120 = vmax.f32 %v1518, 0.0
  %v2121 = vmax.f32 %v1523, 0.0
  %v2122 = vmax.f32 %v1528, 0.0
  %v2123 = vmax.f32 %v1533, 0.0
  %v2124 = vmax.f32 %v1538, 0.0
  %v2125 = vmax.f32 %v1543, 0.0
  %v2126 = vmax.f32 %v1548, 0.0
  %v2127 = vmax.f32 %v1553, 0.0
  %v2128 = vmax.f32 %v1558, 0.0
  %v2129 = vmax.f32 %v1563, 0.0
  %v2130 = vmax.f32 %v1568, 0.0
  %v2131 = vmax.f32 %v1573, 0.0
  %v2132 = vmax.f32 %v1578, 0.0
  %v2133 = vmax.f32 %v1583, 0.0
  %v2134 = vmax.f32 %v1588, 0.0
  %v2135 = vmax.f32 %v1593, 0.0
  %v2136 = vmax.f32 %v1598, 0.0
  %v2137 = vmax.f32 %v1603, 0.0
  %v2138 = vmax.f32 %v1608, 0.0
  %v2139 = vmax.f32 %v1613, 0.0
  %v2140 = vmax.f32 %v1618, 0.0
  %v2141 = vmax.f32 %v1623, 0.0
  %v2142 = vmax.f32 %v1628, 0.0
  %v2143 = vmax.f32 %v1633, 0.0
  %v2144 = vmax.f32 %v1638, 0.0
  %v2145 = vmax.f32 %v1643, 0.0
  %v2146 = vmax.f32 %v1648, 0.0
  %v2147 = vmax.f32 %v1653, 0.0
  %v2148 = vmax.f32 %v1658, 0.0
  %v2149 = vmax.f32 %v1663, 0.0
  %v2150 = vmax.f32 %v1668, 0.0
  %v2151 = vmax.f32 %v1673, 0.0
  %v2152 = vmax.f32 %v1678, 0.0
  %v2153 = vmax.f32 %v1683, 0.0
  %v2154 = vmax.f32 %v1688, 0.0
  %v2155 = vmax.f32 %v1693, 0.0
  %v2156 = vmax.f32 %v1698, 0.0
  %v2157 = vmax.f32 %v1703, 0.0
  %v2158 = vmax.f32 %v1708, 0.0
  %v2159 = vmax.f32 %v1713, 0.0
  %v2160 = vmax.f32 %v1718, 0.0
  %v2161 = vmax.f32 %v1723, 0.0
  %v2162 = vmax.f32 %v1728, 0.0
  %v2163 = vmax.f32 %v1733, 0.0
  %v2164 = vmax.f32 %v1738, 0.0
  %v2165 = vmax.f32 %v1743, 0.0
  %v2166 = vmax.f32 %v1748, 0.0
  %v2167 = vmax.f32 %v1753, 0.0
  %v2168 = vmax.f32 %v1758, 0.0
  %v2169 = vmax.f32 %v1763, 0.0
  %v2170 = vmax.f32 %v1768, 0.0
  %v2171 = vmax.f32 %v1773, 0.0
  %v2172 = vmax.f32 %v1778, 0.0
  %v2173 = vmax.f32 %v1783, 0.0
  %v2174 = vmax.f32 %v1788, 0.0
  %v2175 = vmax.f32 %v1793, 0.0
  %v2176 = vmax.f32 %v1798, 0.0
  %v2177 = vmax.f32 %v1803, 0.0
  %v2178 = vmax.f32 %v1808, 0.0
  %v2179 = vmax.f32 %v1813, 0.0
  %v2180 = vmax.f32 %v1818, 0.0
  %v2181 = vmax.f32 %v1823, 0.0
  %v2182 = vmax.f32 %v1828, 0.0
  %v2183 = vmax.f32 %v1833, 0.0
  %v2184 = vmax.f32 %v1838, 0.0
  %v2185 = vmax.f32 %v1843, 0.0
  %v2186 = vmax.f32 %v1848, 0.0
  %v2187 = vmax.f32 %v1853, 0.0
  %v2188 = vmax.f32 %v1858, 0.0
  %v2189 = vmax.f32 %v1863, 0.0
  %v2190 = vmax.f32 %v1868, 0.0
  %v2191 = vmax.f32 %v1873, 0.0
  %v2192 = vmax.f32 %v1878, 0.0
  %v2193 = vmax.f32 %v1883, 0.0
  %v2194 = vmax.f32 %v1888, 0.0
  %v2195 = vmax.f32 %v1893, 0.0
  %v2196 = vmax.f32 %v1898, 0.0
  %v2197 = vmax.f32 %v1903, 0.0
  %v2198 = vmax.f32 %v1908, 0.0
  %v2199 = vmax.f32 %v1913, 0.0
  %v2200 = vmax.f32 %v1918, 0.0
  %v2201 = vmax.f32 %v1923, 0.0
  %v2202 = vmax.f32 %v1928, 0.0
  %v2203 = vmax.f32 %v1933, 0.0
  %v2204 = vmax.f32 %v1938, 0.0
  %v2205 = vmax.f32 %v1943, 0.0
  %v2206 = vmax.f32 %v1948, 0.0
  %v2207 = vmax.f32 %v1953, 0.0
  %v2208 = vmax.f32 %v1958, 0.0
  %v2209 = vmax.f32 %v1963, 0.0
  %v2210 = vmax.f32 %v1968, 0.0
  %v2211 = vmax.f32 %v1973, 0.0
  %v2212 = vmax.f32 %v1978, 0.0
  %v2213 = vmax.f32 %v1983, 0.0
  %v2214 = vmax.f32 %v1988, 0.0
  %v2215 = vmax.f32 %v1993, 0.0
  %v2216 = vmax.f32 %v1998, 0.0
  %v2217 = vmax.f32 %v2003, 0.0
  %v2218 = vmax.f32 %v2008, 0.0
  %v2219 = vmax.f32 %v2013, 0.0
  %v2220 = vmax.f32 %v2018, 0.0
  %v2221 = vmax.f32 %v2023, 0.0
  %v2222 = vmax.f32 %v2028, 0.0
  %v2223 = vmax.f32 %v2033, 0.0
  %v2224 = vmax.f32 %v2038, 0.0
  %v2225 = vmax.f32 %v2043, 0.0
  %v2226 = vmax.f32 %v2048, 0.0
  %v2227 = vmax.f32 %v2053, 0.0
  %v2228 = vmax.f32 %v2058, 0.0
  %v2229 = vmax.f32 %v2063, 0.0
  %v2230 = vmax.f32 %v2068, 0.0
  %v2231 = vmax.f32 %v2073, 0.0
  %v2232 = vmax.f32 %v2078, 0.0
  %v2233 = vmax.f32 %v2083, 0.0
  %v2234 = vmax.f32 %v2088, 0.0
  %v2235 = vmax.f32 %v2093, 0.0
  %v2236 = vmax.f32 %v2098, 0.0
  %v2237 = vmax.f32 %v2103, 0.0
  %v2238 = vmax.f32 %v2108, 0.0
  %v2239 = vld [vmem:[%s5] sm:$0xff]
  %v2240 = vld [vmem:[%s5 + $0x8] sm:$0xff]
  %v2241 = vld [vmem:[%s5 + $0x10] sm:$0xff]
  %v2242 = vld [vmem:[%s5 + $0x18] sm:$0xff]
  %v2243 = vld [vmem:[%s5 + $0x20] sm:$0xff]
  %v2244 = vld [vmem:[%s5 + $0x28] sm:$0xff]
  %v2245 = vld [vmem:[%s5 + $0x30] sm:$0xff]
  %v2246 = vld [vmem:[%s5 + $0x38] sm:$0xff]
  %v2247 = vld [vmem:[%s5 + $0x40] sm:$0xff]
  %v2248 = vld [vmem:[%s5 + $0x48] sm:$0xff]
  %v2249 = vld [vmem:[%s5 + $0x50] sm:$0xff]
  %v2250 = vld [vmem:[%s5 + $0x58] sm:$0xff]
  %v2251 = vld [vmem:[%s5 + $0x60] sm:$0xff]
  %v2252 = vld [vmem:[%s5 + $0x68] sm:$0xff]
  %v2253 = vld [vmem:[%s5 + $0x70] sm:$0xff]
  %v2254 = vld [vmem:[%s5 + $0x78] sm:$0xff]
  %v2255 = vld [vmem:[%s6] sm:$0x1]
  %v2257 = vlaneseq
  %v2258 = vshrl.u32 %v2257, 7
  %v2259 = vsub.s32 0, %v2258
  %v2260 = vrot.slane %v2255, %v2259
  %2262 = vmatprep.subr.mxu0 0.0
  %2263 = vmatpush1.msra.mxu0 %v2239
  %2264 = vmatprep.subr.mxu0 0.0
  %2265 = vmatpush1.msra.mxu0 %v2240
  %2266 = vmatprep.subr.mxu0 0.0
  %2267 = vmatpush1.msra.mxu0 %v2241
  %2268 = vmatprep.subr.mxu0 0.0
  %2269 = vmatpush1.msra.mxu0 %v2242
  %2270 = vmatprep.subr.mxu0 0.0
  %2271 = vmatpush1.msra.mxu0 %v2243
  %2272 = vmatprep.subr.mxu0 0.0
  %2273 = vmatpush1.msra.mxu0 %v2244
  %2274 = vmatprep.subr.mxu0 0.0
  %2275 = vmatpush1.msra.mxu0 %v2245
  %2276 = vmatprep.subr.mxu0 0.0
  %2277 = vmatpush1.msra.mxu0 %v2246
  %2278 = vmatprep.subr.mxu0 0.0
  %2279 = vmatpush1.msra.mxu0 %v2247
  %2280 = vmatprep.subr.mxu0 0.0
  %2281 = vmatpush1.msra.mxu0 %v2248
  %2282 = vmatprep.subr.mxu0 0.0
  %2283 = vmatpush1.msra.mxu0 %v2249
  %2284 = vmatprep.subr.mxu0 0.0
  %2285 = vmatpush1.msra.mxu0 %v2250
  %2286 = vmatprep.subr.mxu0 0.0
  %2287 = vmatpush1.msra.mxu0 %v2251
  %2288 = vmatprep.subr.mxu0 0.0
  %2289 = vmatpush1.msra.mxu0 %v2252
  %2290 = vmatprep.subr.mxu0 0.0
  %2291 = vmatpush1.msra.mxu0 %v2253
  %2292 = vmatprep.subr.mxu0 0.0
  %2293 = vmatpush1.msra.mxu0 %v2254
  %2294 = vmatprep.subr.mxu0 0.0
  %2295 = vmatpush1.msra.mxu0 0.0
  %2296 = vmatprep.subr.mxu0 0.0
  %2297 = vmatpush1.msra.mxu0 0.0
  %2298 = vmatprep.subr.mxu0 0.0
  %2299 = vmatpush1.msra.mxu0 0.0
  %2300 = vmatprep.subr.mxu0 0.0
  %2301 = vmatpush1.msra.mxu0 0.0
  %2302 = vmatprep.subr.mxu0 0.0
  %2303 = vmatpush1.msra.mxu0 0.0
  %2304 = vmatprep.subr.mxu0 0.0
  %2305 = vmatpush1.msra.mxu0 0.0
  %2306 = vmatprep.subr.mxu0 0.0
  %2307 = vmatpush1.msra.mxu0 0.0
  %2308 = vmatprep.subr.mxu0 0.0
  %2309 = vmatpush1.msra.mxu0 0.0
  %2310 = vmatprep.subr.mxu0 0.0
  %2311 = vmatpush1.msra.mxu0 0.0
  %2312 = vmatprep.subr.mxu0 0.0
  %2313 = vmatpush1.msra.mxu0 0.0
  %2314 = vmatprep.subr.mxu0 0.0
  %2315 = vmatpush1.msra.mxu0 0.0
  %2316 = vmatprep.subr.mxu0 0.0
  %2317 = vmatpush1.msra.mxu0 0.0
  %2318 = vmatprep.subr.mxu0 0.0
  %2319 = vmatpush1.msra.mxu0 0.0
  %2320 = vmatprep.subr.mxu0 0.0
  %2321 = vmatpush1.msra.mxu0 0.0
  %2322 = vmatprep.subr.mxu0 0.0
  %2323 = vmatpush1.msra.mxu0 0.0
  %2324 = vmatprep.subr.mxu0 0.0
  %2325 = vmatpush1.msra.mxu0 0.0
  %2326 = vmatprep.mubr.f32.mxu0 0.0
  %2327 = vmatmul.mubr.f32.gmra.mrb[0].mxu0 %v2111
  %v2328 = vpop.f32.mrb[0].mxu0
  %v2329 = vadd.f32 %v2260, %v2328
  %v2330 = vpop.f32.mrb[0].mxu0
  %2331 = vmatprep.mubr.f32.mxu0 0.0
  %2332 = vmatmul.mubr.f32.gmra.mrb[0].mxu0 %v2112
  %v2333 = vpop.f32.mrb[0].mxu0
  %v2334 = vadd.f32 %v2260, %v2333
  %v2335 = vpop.f32.mrb[0].mxu0
  %2336 = vmatprep.mubr.f32.mxu0 0.0
  %2337 = vmatmul.mubr.f32.gmra.mrb[0].mxu0 %v2113
  %v2338 = vpop.f32.mrb[0].mxu0
  %v2339 = vadd.f32 %v2260, %v2338
  %v2340 = vpop.f32.mrb[0].mxu0
  %2341 = vmatprep.mubr.f32.mxu0 0.0
  %2342 = vmatmul.mubr.f32.gmra.mrb[0].mxu0 %v2114
  %v2343 = vpop.f32.mrb[0].mxu0
  %v2344 = vadd.f32 %v2260, %v2343
  %v2345 = vpop.f32.mrb[0].mxu0
  %2346 = vmatprep.mubr.f32.mxu0 0.0
  %2347 = vmatmul.mubr.f32.gmra.mrb[0].mxu0 %v2115
  %v2348 = vpop.f32.mrb[0].mxu0
  %v2349 = vadd.f32 %v2260, %v2348
  %v2350 = vpop.f32.mrb[0].mxu0
  %2351 = vmatprep.mubr.f32.mxu0 0.0
  %2352 = vmatmul.mubr.f32.gmra.mrb[0].mxu0 %v2116
  %v2353 = vpop.f32.mrb[0].mxu0
  %v2354 = vadd.f32 %v2260, %v2353
  %v2355 = vpop.f32.mrb[0].mxu0
  %2356 = vmatprep.mubr.f32.mxu0 0.0
  %2357 = vmatmul.mubr.f32.gmra.mrb[0].mxu0 %v2117
  %v2358 = vpop.f32.mrb[0].mxu0
  %v2359 = vadd.f32 %v2260, %v2358
  %v2360 = vpop.f32.mrb[0].mxu0
  %2361 = vmatprep.mubr.f32.mxu0 0.0
  %2362 = vmatmul.mubr.f32.gmra.mrb[0].mxu0 %v2118
  %v2363 = vpop.f32.mrb[0].mxu0
  %v2364 = vadd.f32 %v2260, %v2363
  %v2365 = vpop.f32.mrb[0].mxu0
  %2366 = vmatprep.mubr.f32.mxu0 0.0
  %2367 = vmatmul.mubr.f32.gmra.mrb[0].mxu0 %v2119
  %v2368 = vpop.f32.mrb[0].mxu0
  %v2369 = vadd.f32 %v2260, %v2368
  %v2370 = vpop.f32.mrb[0].mxu0
  %2371 = vmatprep.mubr.f32.mxu0 0.0
  %2372 = vmatmul.mubr.f32.gmra.mrb[0].mxu0 %v2120
  %v2373 = vpop.f32.mrb[0].mxu0
  %v2374 = vadd.f32 %v2260, %v2373
  %v2375 = vpop.f32.mrb[0].mxu0
  %2376 = vmatprep.mubr.f32.mxu0 0.0
  %2377 = vmatmul.mubr.f32.gmra.mrb[0].mxu0 %v2121
  %v2378 = vpop.f32.mrb[0].mxu0
  %v2379 = vadd.f32 %v2260, %v2378
  %v2380 = vpop.f32.mrb[0].mxu0
  %2381 = vmatprep.mubr.f32.mxu0 0.0
  %2382 = vmatmul.mubr.f32.gmra.mrb[0].mxu0 %v2122
  %v2383 = vpop.f32.mrb[0].mxu0
  %v2384 = vadd.f32 %v2260, %v2383
  %v2385 = vpop.f32.mrb[0].mxu0
  %2386 = vmatprep.mubr.f32.mxu0 0.0
  %2387 = vmatmul.mubr.f32.gmra.mrb[0].mxu0 %v2123
  %v2388 = vpop.f32.mrb[0].mxu0
  %v2389 = vadd.f32 %v2260, %v2388
  %v2390 = vpop.f32.mrb[0].mxu0
  %2391 = vmatprep.mubr.f32.mxu0 0.0
  %2392 = vmatmul.mubr.f32.gmra.mrb[0].mxu0 %v2124
  %v2393 = vpop.f32.mrb[0].mxu0
  %v2394 = vadd.f32 %v2260, %v2393
  %v2395 = vpop.f32.mrb[0].mxu0
  %2396 = vmatprep.mubr.f32.mxu0 0.0
  %2397 = vmatmul.mubr.f32.gmra.mrb[0].mxu0 %v2125
  %v2398 = vpop.f32.mrb[0].mxu0
  %v2399 = vadd.f32 %v2260, %v2398
  %v2400 = vpop.f32.mrb[0].mxu0
  %2401 = vmatprep.mubr.f32.mxu0 0.0
  %2402 = vmatmul.mubr.f32.gmra.mrb[0].mxu0 %v2126
  %v2403 = vpop.f32.mrb[0].mxu0
  %v2404 = vadd.f32 %v2260, %v2403
  %v2405 = vpop.f32.mrb[0].mxu0
  %2406 = vmatprep.mubr.f32.mxu0 0.0
  %2407 = vmatmul.mubr.f32.gmra.mrb[0].mxu0 %v2127
  %v2408 = vpop.f32.mrb[0].mxu0
  %v2409 = vadd.f32 %v2260, %v2408
  %v2410 = vpop.f32.mrb[0].mxu0
  %2411 = vmatprep.mubr.f32.mxu0 0.0
  %2412 = vmatmul.mubr.f32.gmra.mrb[0].mxu0 %v2128
  %v2413 = vpop.f32.mrb[0].mxu0
  %v2414 = vadd.f32 %v2260, %v2413
  %v2415 = vpop.f32.mrb[0].mxu0
  %2416 = vmatprep.mubr.f32.mxu0 0.0
  %2417 = vmatmul.mubr.f32.gmra.mrb[0].mxu0 %v2129
  %v2418 = vpop.f32.mrb[0].mxu0
  %v2419 = vadd.f32 %v2260, %v2418
  %v2420 = vpop.f32.mrb[0].mxu0
  %2421 = vmatprep.mubr.f32.mxu0 0.0
  %2422 = vmatmul.mubr.f32.gmra.mrb[0].mxu0 %v2130
  %v2423 = vpop.f32.mrb[0].mxu0
  %v2424 = vadd.f32 %v2260, %v2423
  %v2425 = vpop.f32.mrb[0].mxu0
  %2426 = vmatprep.mubr.f32.mxu0 0.0
  %2427 = vmatmul.mubr.f32.gmra.mrb[0].mxu0 %v2131
  %v2428 = vpop.f32.mrb[0].mxu0
  %v2429 = vadd.f32 %v2260, %v2428
  %v2430 = vpop.f32.mrb[0].mxu0
  %2431 = vmatprep.mubr.f32.mxu0 0.0
  %2432 = vmatmul.mubr.f32.gmra.mrb[0].mxu0 %v2132
  %v2433 = vpop.f32.mrb[0].mxu0
  %v2434 = vadd.f32 %v2260, %v2433
  %v2435 = vpop.f32.mrb[0].mxu0
  %2436 = vmatprep.mubr.f32.mxu0 0.0
  %2437 = vmatmul.mubr.f32.gmra.mrb[0].mxu0 %v2133
  %v2438 = vpop.f32.mrb[0].mxu0
  %v2439 = vadd.f32 %v2260, %v2438
  %v2440 = vpop.f32.mrb[0].mxu0
  %2441 = vmatprep.mubr.f32.mxu0 0.0
  %2442 = vmatmul.mubr.f32.gmra.mrb[0].mxu0 %v2134
  %v2443 = vpop.f32.mrb[0].mxu0
  %v2444 = vadd.f32 %v2260, %v2443
  %v2445 = vpop.f32.mrb[0].mxu0
  %2446 = vmatprep.mubr.f32.mxu0 0.0
  %2447 = vmatmul.mubr.f32.gmra.mrb[0].mxu0 %v2135
  %v2448 = vpop.f32.mrb[0].mxu0
  %v2449 = vadd.f32 %v2260, %v2448
  %v2450 = vpop.f32.mrb[0].mxu0
  %2451 = vmatprep.mubr.f32.mxu0 0.0
  %2452 = vmatmul.mubr.f32.gmra.mrb[0].mxu0 %v2136
  %v2453 = vpop.f32.mrb[0].mxu0
  %v2454 = vadd.f32 %v2260, %v2453
  %v2455 = vpop.f32.mrb[0].mxu0
  %2456 = vmatprep.mubr.f32.mxu0 0.0
  %2457 = vmatmul.mubr.f32.gmra.mrb[0].mxu0 %v2137
  %v2458 = vpop.f32.mrb[0].mxu0
  %v2459 = vadd.f32 %v2260, %v2458
  %v2460 = vpop.f32.mrb[0].mxu0
  %2461 = vmatprep.mubr.f32.mxu0 0.0
  %2462 = vmatmul.mubr.f32.gmra.mrb[0].mxu0 %v2138
  %v2463 = vpop.f32.mrb[0].mxu0
  %v2464 = vadd.f32 %v2260, %v2463
  %v2465 = vpop.f32.mrb[0].mxu0
  %2466 = vmatprep.mubr.f32.mxu0 0.0
  %2467 = vmatmul.mubr.f32.gmra.mrb[0].mxu0 %v2139
  %v2468 = vpop.f32.mrb[0].mxu0
  %v2469 = vadd.f32 %v2260, %v2468
  %v2470 = vpop.f32.mrb[0].mxu0
  %2471 = vmatprep.mubr.f32.mxu0 0.0
  %2472 = vmatmul.mubr.f32.gmra.mrb[0].mxu0 %v2140
  %v2473 = vpop.f32.mrb[0].mxu0
  %v2474 = vadd.f32 %v2260, %v2473
  %v2475 = vpop.f32.mrb[0].mxu0
  %2476 = vmatprep.mubr.f32.mxu0 0.0
  %2477 = vmatmul.mubr.f32.gmra.mrb[0].mxu0 %v2141
  %v2478 = vpop.f32.mrb[0].mxu0
  %v2479 = vadd.f32 %v2260, %v2478
  %v2480 = vpop.f32.mrb[0].mxu0
  %2481 = vmatprep.mubr.f32.mxu0 0.0
  %2482 = vmatmul.mubr.f32.gmra.mrb[0].mxu0 %v2142
  %v2483 = vpop.f32.mrb[0].mxu0
  %v2484 = vadd.f32 %v2260, %v2483
  %v2485 = vpop.f32.mrb[0].mxu0
  %2486 = vmatprep.mubr.f32.mxu0 0.0
  %2487 = vmatmul.mubr.f32.gmra.mrb[0].mxu0 %v2143
  %v2488 = vpop.f32.mrb[0].mxu0
  %v2489 = vadd.f32 %v2260, %v2488
  %v2490 = vpop.f32.mrb[0].mxu0
  %2491 = vmatprep.mubr.f32.mxu0 0.0
  %2492 = vmatmul.mubr.f32.gmra.mrb[0].mxu0 %v2144
  %v2493 = vpop.f32.mrb[0].mxu0
  %v2494 = vadd.f32 %v2260, %v2493
  %v2495 = vpop.f32.mrb[0].mxu0
  %2496 = vmatprep.mubr.f32.mxu0 0.0
  %2497 = vmatmul.mubr.f32.gmra.mrb[0].mxu0 %v2145
  %v2498 = vpop.f32.mrb[0].mxu0
  %v2499 = vadd.f32 %v2260, %v2498
  %v2500 = vpop.f32.mrb[0].mxu0
  %2501 = vmatprep.mubr.f32.mxu0 0.0
  %2502 = vmatmul.mubr.f32.gmra.mrb[0].mxu0 %v2146
  %v2503 = vpop.f32.mrb[0].mxu0
  %v2504 = vadd.f32 %v2260, %v2503
  %v2505 = vpop.f32.mrb[0].mxu0
  %2506 = vmatprep.mubr.f32.mxu0 0.0
  %2507 = vmatmul.mubr.f32.gmra.mrb[0].mxu0 %v2147
  %v2508 = vpop.f32.mrb[0].mxu0
  %v2509 = vadd.f32 %v2260, %v2508
  %v2510 = vpop.f32.mrb[0].mxu0
  %2511 = vmatprep.mubr.f32.mxu0 0.0
  %2512 = vmatmul.mubr.f32.gmra.mrb[0].mxu0 %v2148
  %v2513 = vpop.f32.mrb[0].mxu0
  %v2514 = vadd.f32 %v2260, %v2513
  %v2515 = vpop.f32.mrb[0].mxu0
  %2516 = vmatprep.mubr.f32.mxu0 0.0
  %2517 = vmatmul.mubr.f32.gmra.mrb[0].mxu0 %v2149
  %v2518 = vpop.f32.mrb[0].mxu0
  %v2519 = vadd.f32 %v2260, %v2518
  %v2520 = vpop.f32.mrb[0].mxu0
  %2521 = vmatprep.mubr.f32.mxu0 0.0
  %2522 = vmatmul.mubr.f32.gmra.mrb[0].mxu0 %v2150
  %v2523 = vpop.f32.mrb[0].mxu0
  %v2524 = vadd.f32 %v2260, %v2523
  %v2525 = vpop.f32.mrb[0].mxu0
  %2526 = vmatprep.mubr.f32.mxu0 0.0
  %2527 = vmatmul.mubr.f32.gmra.mrb[0].mxu0 %v2151
  %v2528 = vpop.f32.mrb[0].mxu0
  %v2529 = vadd.f32 %v2260, %v2528
  %v2530 = vpop.f32.mrb[0].mxu0
  %2531 = vmatprep.mubr.f32.mxu0 0.0
  %2532 = vmatmul.mubr.f32.gmra.mrb[0].mxu0 %v2152
  %v2533 = vpop.f32.mrb[0].mxu0
  %v2534 = vadd.f32 %v2260, %v2533
  %v2535 = vpop.f32.mrb[0].mxu0
  %2536 = vmatprep.mubr.f32.mxu0 0.0
  %2537 = vmatmul.mubr.f32.gmra.mrb[0].mxu0 %v2153
  %v2538 = vpop.f32.mrb[0].mxu0
  %v2539 = vadd.f32 %v2260, %v2538
  %v2540 = vpop.f32.mrb[0].mxu0
  %2541 = vmatprep.mubr.f32.mxu0 0.0
  %2542 = vmatmul.mubr.f32.gmra.mrb[0].mxu0 %v2154
  %v2543 = vpop.f32.mrb[0].mxu0
  %v2544 = vadd.f32 %v2260, %v2543
  %v2545 = vpop.f32.mrb[0].mxu0
  %2546 = vmatprep.mubr.f32.mxu0 0.0
  %2547 = vmatmul.mubr.f32.gmra.mrb[0].mxu0 %v2155
  %v2548 = vpop.f32.mrb[0].mxu0
  %v2549 = vadd.f32 %v2260, %v2548
  %v2550 = vpop.f32.mrb[0].mxu0
  %2551 = vmatprep.mubr.f32.mxu0 0.0
  %2552 = vmatmul.mubr.f32.gmra.mrb[0].mxu0 %v2156
  %v2553 = vpop.f32.mrb[0].mxu0
  %v2554 = vadd.f32 %v2260, %v2553
  %v2555 = vpop.f32.mrb[0].mxu0
  %2556 = vmatprep.mubr.f32.mxu0 0.0
  %2557 = vmatmul.mubr.f32.gmra.mrb[0].mxu0 %v2157
  %v2558 = vpop.f32.mrb[0].mxu0
  %v2559 = vadd.f32 %v2260, %v2558
  %v2560 = vpop.f32.mrb[0].mxu0
  %2561 = vmatprep.mubr.f32.mxu0 0.0
  %2562 = vmatmul.mubr.f32.gmra.mrb[0].mxu0 %v2158
  %v2563 = vpop.f32.mrb[0].mxu0
  %v2564 = vadd.f32 %v2260, %v2563
  %v2565 = vpop.f32.mrb[0].mxu0
  %2566 = vmatprep.mubr.f32.mxu0 0.0
  %2567 = vmatmul.mubr.f32.gmra.mrb[0].mxu0 %v2159
  %v2568 = vpop.f32.mrb[0].mxu0
  %v2569 = vadd.f32 %v2260, %v2568
  %v2570 = vpop.f32.mrb[0].mxu0
  %2571 = vmatprep.mubr.f32.mxu0 0.0
  %2572 = vmatmul.mubr.f32.gmra.mrb[0].mxu0 %v2160
  %v2573 = vpop.f32.mrb[0].mxu0
  %v2574 = vadd.f32 %v2260, %v2573
  %v2575 = vpop.f32.mrb[0].mxu0
  %2576 = vmatprep.mubr.f32.mxu0 0.0
  %2577 = vmatmul.mubr.f32.gmra.mrb[0].mxu0 %v2161
  %v2578 = vpop.f32.mrb[0].mxu0
  %v2579 = vadd.f32 %v2260, %v2578
  %v2580 = vpop.f32.mrb[0].mxu0
  %2581 = vmatprep.mubr.f32.mxu0 0.0
  %2582 = vmatmul.mubr.f32.gmra.mrb[0].mxu0 %v2162
  %v2583 = vpop.f32.mrb[0].mxu0
  %v2584 = vadd.f32 %v2260, %v2583
  %v2585 = vpop.f32.mrb[0].mxu0
  %2586 = vmatprep.mubr.f32.mxu0 0.0
  %2587 = vmatmul.mubr.f32.gmra.mrb[0].mxu0 %v2163
  %v2588 = vpop.f32.mrb[0].mxu0
  %v2589 = vadd.f32 %v2260, %v2588
  %v2590 = vpop.f32.mrb[0].mxu0
  %2591 = vmatprep.mubr.f32.mxu0 0.0
  %2592 = vmatmul.mubr.f32.gmra.mrb[0].mxu0 %v2164
  %v2593 = vpop.f32.mrb[0].mxu0
  %v2594 = vadd.f32 %v2260, %v2593
  %v2595 = vpop.f32.mrb[0].mxu0
  %2596 = vmatprep.mubr.f32.mxu0 0.0
  %2597 = vmatmul.mubr.f32.gmra.mrb[0].mxu0 %v2165
  %v2598 = vpop.f32.mrb[0].mxu0
  %v2599 = vadd.f32 %v2260, %v2598
  %v2600 = vpop.f32.mrb[0].mxu0
  %2601 = vmatprep.mubr.f32.mxu0 0.0
  %2602 = vmatmul.mubr.f32.gmra.mrb[0].mxu0 %v2166
  %v2603 = vpop.f32.mrb[0].mxu0
  %v2604 = vadd.f32 %v2260, %v2603
  %v2605 = vpop.f32.mrb[0].mxu0
  %2606 = vmatprep.mubr.f32.mxu0 0.0
  %2607 = vmatmul.mubr.f32.gmra.mrb[0].mxu0 %v2167
  %v2608 = vpop.f32.mrb[0].mxu0
  %v2609 = vadd.f32 %v2260, %v2608
  %v2610 = vpop.f32.mrb[0].mxu0
  %2611 = vmatprep.mubr.f32.mxu0 0.0
  %2612 = vmatmul.mubr.f32.gmra.mrb[0].mxu0 %v2168
  %v2613 = vpop.f32.mrb[0].mxu0
  %v2614 = vadd.f32 %v2260, %v2613
  %v2615 = vpop.f32.mrb[0].mxu0
  %2616 = vmatprep.mubr.f32.mxu0 0.0
  %2617 = vmatmul.mubr.f32.gmra.mrb[0].mxu0 %v2169
  %v2618 = vpop.f32.mrb[0].mxu0
  %v2619 = vadd.f32 %v2260, %v2618
  %v2620 = vpop.f32.mrb[0].mxu0
  %2621 = vmatprep.mubr.f32.mxu0 0.0
  %2622 = vmatmul.mubr.f32.gmra.mrb[0].mxu0 %v2170
  %v2623 = vpop.f32.mrb[0].mxu0
  %v2624 = vadd.f32 %v2260, %v2623
  %v2625 = vpop.f32.mrb[0].mxu0
  %2626 = vmatprep.mubr.f32.mxu0 0.0
  %2627 = vmatmul.mubr.f32.gmra.mrb[0].mxu0 %v2171
  %v2628 = vpop.f32.mrb[0].mxu0
  %v2629 = vadd.f32 %v2260, %v2628
  %v2630 = vpop.f32.mrb[0].mxu0
  %2631 = vmatprep.mubr.f32.mxu0 0.0
  %2632 = vmatmul.mubr.f32.gmra.mrb[0].mxu0 %v2172
  %v2633 = vpop.f32.mrb[0].mxu0
  %v2634 = vadd.f32 %v2260, %v2633
  %v2635 = vpop.f32.mrb[0].mxu0
  %2636 = vmatprep.mubr.f32.mxu0 0.0
  %2637 = vmatmul.mubr.f32.gmra.mrb[0].mxu0 %v2173
  %v2638 = vpop.f32.mrb[0].mxu0
  %v2639 = vadd.f32 %v2260, %v2638
  %v2640 = vpop.f32.mrb[0].mxu0
  %2641 = vmatprep.mubr.f32.mxu0 0.0
  %2642 = vmatmul.mubr.f32.gmra.mrb[0].mxu0 %v2174
  %v2643 = vpop.f32.mrb[0].mxu0
  %v2644 = vadd.f32 %v2260, %v2643
  %v2645 = vpop.f32.mrb[0].mxu0
  %2646 = vmatprep.mubr.f32.mxu0 0.0
  %2647 = vmatmul.mubr.f32.gmra.mrb[0].mxu0 %v2175
  %v2648 = vpop.f32.mrb[0].mxu0
  %v2649 = vadd.f32 %v2260, %v2648
  %v2650 = vpop.f32.mrb[0].mxu0
  %2651 = vmatprep.mubr.f32.mxu0 0.0
  %2652 = vmatmul.mubr.f32.gmra.mrb[0].mxu0 %v2176
  %v2653 = vpop.f32.mrb[0].mxu0
  %v2654 = vadd.f32 %v2260, %v2653
  %v2655 = vpop.f32.mrb[0].mxu0
  %2656 = vmatprep.mubr.f32.mxu0 0.0
  %2657 = vmatmul.mubr.f32.gmra.mrb[0].mxu0 %v2177
  %v2658 = vpop.f32.mrb[0].mxu0
  %v2659 = vadd.f32 %v2260, %v2658
  %v2660 = vpop.f32.mrb[0].mxu0
  %2661 = vmatprep.mubr.f32.mxu0 0.0
  %2662 = vmatmul.mubr.f32.gmra.mrb[0].mxu0 %v2178
  %v2663 = vpop.f32.mrb[0].mxu0
  %v2664 = vadd.f32 %v2260, %v2663
  %v2665 = vpop.f32.mrb[0].mxu0
  %2666 = vmatprep.mubr.f32.mxu0 0.0
  %2667 = vmatmul.mubr.f32.gmra.mrb[0].mxu0 %v2179
  %v2668 = vpop.f32.mrb[0].mxu0
  %v2669 = vadd.f32 %v2260, %v2668
  %v2670 = vpop.f32.mrb[0].mxu0
  %2671 = vmatprep.mubr.f32.mxu0 0.0
  %2672 = vmatmul.mubr.f32.gmra.mrb[0].mxu0 %v2180
  %v2673 = vpop.f32.mrb[0].mxu0
  %v2674 = vadd.f32 %v2260, %v2673
  %v2675 = vpop.f32.mrb[0].mxu0
  %2676 = vmatprep.mubr.f32.mxu0 0.0
  %2677 = vmatmul.mubr.f32.gmra.mrb[0].mxu0 %v2181
  %v2678 = vpop.f32.mrb[0].mxu0
  %v2679 = vadd.f32 %v2260, %v2678
  %v2680 = vpop.f32.mrb[0].mxu0
  %2681 = vmatprep.mubr.f32.mxu0 0.0
  %2682 = vmatmul.mubr.f32.gmra.mrb[0].mxu0 %v2182
  %v2683 = vpop.f32.mrb[0].mxu0
  %v2684 = vadd.f32 %v2260, %v2683
  %v2685 = vpop.f32.mrb[0].mxu0
  %2686 = vmatprep.mubr.f32.mxu0 0.0
  %2687 = vmatmul.mubr.f32.gmra.mrb[0].mxu0 %v2183
  %v2688 = vpop.f32.mrb[0].mxu0
  %v2689 = vadd.f32 %v2260, %v2688
  %v2690 = vpop.f32.mrb[0].mxu0
  %2691 = vmatprep.mubr.f32.mxu0 0.0
  %2692 = vmatmul.mubr.f32.gmra.mrb[0].mxu0 %v2184
  %v2693 = vpop.f32.mrb[0].mxu0
  %v2694 = vadd.f32 %v2260, %v2693
  %v2695 = vpop.f32.mrb[0].mxu0
  %2696 = vmatprep.mubr.f32.mxu0 0.0
  %2697 = vmatmul.mubr.f32.gmra.mrb[0].mxu0 %v2185
  %v2698 = vpop.f32.mrb[0].mxu0
  %v2699 = vadd.f32 %v2260, %v2698
  %v2700 = vpop.f32.mrb[0].mxu0
  %2701 = vmatprep.mubr.f32.mxu0 0.0
  %2702 = vmatmul.mubr.f32.gmra.mrb[0].mxu0 %v2186
  %v2703 = vpop.f32.mrb[0].mxu0
  %v2704 = vadd.f32 %v2260, %v2703
  %v2705 = vpop.f32.mrb[0].mxu0
  %2706 = vmatprep.mubr.f32.mxu0 0.0
  %2707 = vmatmul.mubr.f32.gmra.mrb[0].mxu0 %v2187
  %v2708 = vpop.f32.mrb[0].mxu0
  %v2709 = vadd.f32 %v2260, %v2708
  %v2710 = vpop.f32.mrb[0].mxu0
  %2711 = vmatprep.mubr.f32.mxu0 0.0
  %2712 = vmatmul.mubr.f32.gmra.mrb[0].mxu0 %v2188
  %v2713 = vpop.f32.mrb[0].mxu0
  %v2714 = vadd.f32 %v2260, %v2713
  %v2715 = vpop.f32.mrb[0].mxu0
  %2716 = vmatprep.mubr.f32.mxu0 0.0
  %2717 = vmatmul.mubr.f32.gmra.mrb[0].mxu0 %v2189
  %v2718 = vpop.f32.mrb[0].mxu0
  %v2719 = vadd.f32 %v2260, %v2718
  %v2720 = vpop.f32.mrb[0].mxu0
  %2721 = vmatprep.mubr.f32.mxu0 0.0
  %2722 = vmatmul.mubr.f32.gmra.mrb[0].mxu0 %v2190
  %v2723 = vpop.f32.mrb[0].mxu0
  %v2724 = vadd.f32 %v2260, %v2723
  %v2725 = vpop.f32.mrb[0].mxu0
  %2726 = vmatprep.mubr.f32.mxu0 0.0
  %2727 = vmatmul.mubr.f32.gmra.mrb[0].mxu0 %v2191
  %v2728 = vpop.f32.mrb[0].mxu0
  %v2729 = vadd.f32 %v2260, %v2728
  %v2730 = vpop.f32.mrb[0].mxu0
  %2731 = vmatprep.mubr.f32.mxu0 0.0
  %2732 = vmatmul.mubr.f32.gmra.mrb[0].mxu0 %v2192
  %v2733 = vpop.f32.mrb[0].mxu0
  %v2734 = vadd.f32 %v2260, %v2733
  %v2735 = vpop.f32.mrb[0].mxu0
  %2736 = vmatprep.mubr.f32.mxu0 0.0
  %2737 = vmatmul.mubr.f32.gmra.mrb[0].mxu0 %v2193
  %v2738 = vpop.f32.mrb[0].mxu0
  %v2739 = vadd.f32 %v2260, %v2738
  %v2740 = vpop.f32.mrb[0].mxu0
  %2741 = vmatprep.mubr.f32.mxu0 0.0
  %2742 = vmatmul.mubr.f32.gmra.mrb[0].mxu0 %v2194
  %v2743 = vpop.f32.mrb[0].mxu0
  %v2744 = vadd.f32 %v2260, %v2743
  %v2745 = vpop.f32.mrb[0].mxu0
  %2746 = vmatprep.mubr.f32.mxu0 0.0
  %2747 = vmatmul.mubr.f32.gmra.mrb[0].mxu0 %v2195
  %v2748 = vpop.f32.mrb[0].mxu0
  %v2749 = vadd.f32 %v2260, %v2748
  %v2750 = vpop.f32.mrb[0].mxu0
  %2751 = vmatprep.mubr.f32.mxu0 0.0
  %2752 = vmatmul.mubr.f32.gmra.mrb[0].mxu0 %v2196
  %v2753 = vpop.f32.mrb[0].mxu0
  %v2754 = vadd.f32 %v2260, %v2753
  %v2755 = vpop.f32.mrb[0].mxu0
  %2756 = vmatprep.mubr.f32.mxu0 0.0
  %2757 = vmatmul.mubr.f32.gmra.mrb[0].mxu0 %v2197
  %v2758 = vpop.f32.mrb[0].mxu0
  %v2759 = vadd.f32 %v2260, %v2758
  %v2760 = vpop.f32.mrb[0].mxu0
  %2761 = vmatprep.mubr.f32.mxu0 0.0
  %2762 = vmatmul.mubr.f32.gmra.mrb[0].mxu0 %v2198
  %v2763 = vpop.f32.mrb[0].mxu0
  %v2764 = vadd.f32 %v2260, %v2763
  %v2765 = vpop.f32.mrb[0].mxu0
  %2766 = vmatprep.mubr.f32.mxu0 0.0
  %2767 = vmatmul.mubr.f32.gmra.mrb[0].mxu0 %v2199
  %v2768 = vpop.f32.mrb[0].mxu0
  %v2769 = vadd.f32 %v2260, %v2768
  %v2770 = vpop.f32.mrb[0].mxu0
  %2771 = vmatprep.mubr.f32.mxu0 0.0
  %2772 = vmatmul.mubr.f32.gmra.mrb[0].mxu0 %v2200
  %v2773 = vpop.f32.mrb[0].mxu0
  %v2774 = vadd.f32 %v2260, %v2773
  %v2775 = vpop.f32.mrb[0].mxu0
  %2776 = vmatprep.mubr.f32.mxu0 0.0
  %2777 = vmatmul.mubr.f32.gmra.mrb[0].mxu0 %v2201
  %v2778 = vpop.f32.mrb[0].mxu0
  %v2779 = vadd.f32 %v2260, %v2778
  %v2780 = vpop.f32.mrb[0].mxu0
  %2781 = vmatprep.mubr.f32.mxu0 0.0
  %2782 = vmatmul.mubr.f32.gmra.mrb[0].mxu0 %v2202
  %v2783 = vpop.f32.mrb[0].mxu0
  %v2784 = vadd.f32 %v2260, %v2783
  %v2785 = vpop.f32.mrb[0].mxu0
  %2786 = vmatprep.mubr.f32.mxu0 0.0
  %2787 = vmatmul.mubr.f32.gmra.mrb[0].mxu0 %v2203
  %v2788 = vpop.f32.mrb[0].mxu0
  %v2789 = vadd.f32 %v2260, %v2788
  %v2790 = vpop.f32.mrb[0].mxu0
  %2791 = vmatprep.mubr.f32.mxu0 0.0
  %2792 = vmatmul.mubr.f32.gmra.mrb[0].mxu0 %v2204
  %v2793 = vpop.f32.mrb[0].mxu0
  %v2794 = vadd.f32 %v2260, %v2793
  %v2795 = vpop.f32.mrb[0].mxu0
  %2796 = vmatprep.mubr.f32.mxu0 0.0
  %2797 = vmatmul.mubr.f32.gmra.mrb[0].mxu0 %v2205
  %v2798 = vpop.f32.mrb[0].mxu0
  %v2799 = vadd.f32 %v2260, %v2798
  %v2800 = vpop.f32.mrb[0].mxu0
  %2801 = vmatprep.mubr.f32.mxu0 0.0
  %2802 = vmatmul.mubr.f32.gmra.mrb[0].mxu0 %v2206
  %v2803 = vpop.f32.mrb[0].mxu0
  %v2804 = vadd.f32 %v2260, %v2803
  %v2805 = vpop.f32.mrb[0].mxu0
  %2806 = vmatprep.mubr.f32.mxu0 0.0
  %2807 = vmatmul.mubr.f32.gmra.mrb[0].mxu0 %v2207
  %v2808 = vpop.f32.mrb[0].mxu0
  %v2809 = vadd.f32 %v2260, %v2808
  %v2810 = vpop.f32.mrb[0].mxu0
  %2811 = vmatprep.mubr.f32.mxu0 0.0
  %2812 = vmatmul.mubr.f32.gmra.mrb[0].mxu0 %v2208
  %v2813 = vpop.f32.mrb[0].mxu0
  %v2814 = vadd.f32 %v2260, %v2813
  %v2815 = vpop.f32.mrb[0].mxu0
  %2816 = vmatprep.mubr.f32.mxu0 0.0
  %2817 = vmatmul.mubr.f32.gmra.mrb[0].mxu0 %v2209
  %v2818 = vpop.f32.mrb[0].mxu0
  %v2819 = vadd.f32 %v2260, %v2818
  %v2820 = vpop.f32.mrb[0].mxu0
  %2821 = vmatprep.mubr.f32.mxu0 0.0
  %2822 = vmatmul.mubr.f32.gmra.mrb[0].mxu0 %v2210
  %v2823 = vpop.f32.mrb[0].mxu0
  %v2824 = vadd.f32 %v2260, %v2823
  %v2825 = vpop.f32.mrb[0].mxu0
  %2826 = vmatprep.mubr.f32.mxu0 0.0
  %2827 = vmatmul.mubr.f32.gmra.mrb[0].mxu0 %v2211
  %v2828 = vpop.f32.mrb[0].mxu0
  %v2829 = vadd.f32 %v2260, %v2828
  %v2830 = vpop.f32.mrb[0].mxu0
  %2831 = vmatprep.mubr.f32.mxu0 0.0
  %2832 = vmatmul.mubr.f32.gmra.mrb[0].mxu0 %v2212
  %v2833 = vpop.f32.mrb[0].mxu0
  %v2834 = vadd.f32 %v2260, %v2833
  %v2835 = vpop.f32.mrb[0].mxu0
  %2836 = vmatprep.mubr.f32.mxu0 0.0
  %2837 = vmatmul.mubr.f32.gmra.mrb[0].mxu0 %v2213
  %v2838 = vpop.f32.mrb[0].mxu0
  %v2839 = vadd.f32 %v2260, %v2838
  %v2840 = vpop.f32.mrb[0].mxu0
  %2841 = vmatprep.mubr.f32.mxu0 0.0
  %2842 = vmatmul.mubr.f32.gmra.mrb[0].mxu0 %v2214
  %v2843 = vpop.f32.mrb[0].mxu0
  %v2844 = vadd.f32 %v2260, %v2843
  %v2845 = vpop.f32.mrb[0].mxu0
  %2846 = vmatprep.mubr.f32.mxu0 0.0
  %2847 = vmatmul.mubr.f32.gmra.mrb[0].mxu0 %v2215
  %v2848 = vpop.f32.mrb[0].mxu0
  %v2849 = vadd.f32 %v2260, %v2848
  %v2850 = vpop.f32.mrb[0].mxu0
  %2851 = vmatprep.mubr.f32.mxu0 0.0
  %2852 = vmatmul.mubr.f32.gmra.mrb[0].mxu0 %v2216
  %v2853 = vpop.f32.mrb[0].mxu0
  %v2854 = vadd.f32 %v2260, %v2853
  %v2855 = vpop.f32.mrb[0].mxu0
  %2856 = vmatprep.mubr.f32.mxu0 0.0
  %2857 = vmatmul.mubr.f32.gmra.mrb[0].mxu0 %v2217
  %v2858 = vpop.f32.mrb[0].mxu0
  %v2859 = vadd.f32 %v2260, %v2858
  %v2860 = vpop.f32.mrb[0].mxu0
  %2861 = vmatprep.mubr.f32.mxu0 0.0
  %2862 = vmatmul.mubr.f32.gmra.mrb[0].mxu0 %v2218
  %v2863 = vpop.f32.mrb[0].mxu0
  %v2864 = vadd.f32 %v2260, %v2863
  %v2865 = vpop.f32.mrb[0].mxu0
  %2866 = vmatprep.mubr.f32.mxu0 0.0
  %2867 = vmatmul.mubr.f32.gmra.mrb[0].mxu0 %v2219
  %v2868 = vpop.f32.mrb[0].mxu0
  %v2869 = vadd.f32 %v2260, %v2868
  %v2870 = vpop.f32.mrb[0].mxu0
  %2871 = vmatprep.mubr.f32.mxu0 0.0
  %2872 = vmatmul.mubr.f32.gmra.mrb[0].mxu0 %v2220
  %v2873 = vpop.f32.mrb[0].mxu0
  %v2874 = vadd.f32 %v2260, %v2873
  %v2875 = vpop.f32.mrb[0].mxu0
  %2876 = vmatprep.mubr.f32.mxu0 0.0
  %2877 = vmatmul.mubr.f32.gmra.mrb[0].mxu0 %v2221
  %v2878 = vpop.f32.mrb[0].mxu0
  %v2879 = vadd.f32 %v2260, %v2878
  %v2880 = vpop.f32.mrb[0].mxu0
  %2881 = vmatprep.mubr.f32.mxu0 0.0
  %2882 = vmatmul.mubr.f32.gmra.mrb[0].mxu0 %v2222
  %v2883 = vpop.f32.mrb[0].mxu0
  %v2884 = vadd.f32 %v2260, %v2883
  %v2885 = vpop.f32.mrb[0].mxu0
  %2886 = vmatprep.mubr.f32.mxu0 0.0
  %2887 = vmatmul.mubr.f32.gmra.mrb[0].mxu0 %v2223
  %v2888 = vpop.f32.mrb[0].mxu0
  %v2889 = vadd.f32 %v2260, %v2888
  %v2890 = vpop.f32.mrb[0].mxu0
  %2891 = vmatprep.mubr.f32.mxu0 0.0
  %2892 = vmatmul.mubr.f32.gmra.mrb[0].mxu0 %v2224
  %v2893 = vpop.f32.mrb[0].mxu0
  %v2894 = vadd.f32 %v2260, %v2893
  %v2895 = vpop.f32.mrb[0].mxu0
  %2896 = vmatprep.mubr.f32.mxu0 0.0
  %2897 = vmatmul.mubr.f32.gmra.mrb[0].mxu0 %v2225
  %v2898 = vpop.f32.mrb[0].mxu0
  %v2899 = vadd.f32 %v2260, %v2898
  %v2900 = vpop.f32.mrb[0].mxu0
  %2901 = vmatprep.mubr.f32.mxu0 0.0
  %2902 = vmatmul.mubr.f32.gmra.mrb[0].mxu0 %v2226
  %v2903 = vpop.f32.mrb[0].mxu0
  %v2904 = vadd.f32 %v2260, %v2903
  %v2905 = vpop.f32.mrb[0].mxu0
  %2906 = vmatprep.mubr.f32.mxu0 0.0
  %2907 = vmatmul.mubr.f32.gmra.mrb[0].mxu0 %v2227
  %v2908 = vpop.f32.mrb[0].mxu0
  %v2909 = vadd.f32 %v2260, %v2908
  %v2910 = vpop.f32.mrb[0].mxu0
  %2911 = vmatprep.mubr.f32.mxu0 0.0
  %2912 = vmatmul.mubr.f32.gmra.mrb[0].mxu0 %v2228
  %v2913 = vpop.f32.mrb[0].mxu0
  %v2914 = vadd.f32 %v2260, %v2913
  %v2915 = vpop.f32.mrb[0].mxu0
  %2916 = vmatprep.mubr.f32.mxu0 0.0
  %2917 = vmatmul.mubr.f32.gmra.mrb[0].mxu0 %v2229
  %v2918 = vpop.f32.mrb[0].mxu0
  %v2919 = vadd.f32 %v2260, %v2918
  %v2920 = vpop.f32.mrb[0].mxu0
  %2921 = vmatprep.mubr.f32.mxu0 0.0
  %2922 = vmatmul.mubr.f32.gmra.mrb[0].mxu0 %v2230
  %v2923 = vpop.f32.mrb[0].mxu0
  %v2924 = vadd.f32 %v2260, %v2923
  %v2925 = vpop.f32.mrb[0].mxu0
  %2926 = vmatprep.mubr.f32.mxu0 0.0
  %2927 = vmatmul.mubr.f32.gmra.mrb[0].mxu0 %v2231
  %v2928 = vpop.f32.mrb[0].mxu0
  %v2929 = vadd.f32 %v2260, %v2928
  %v2930 = vpop.f32.mrb[0].mxu0
  %2931 = vmatprep.mubr.f32.mxu0 0.0
  %2932 = vmatmul.mubr.f32.gmra.mrb[0].mxu0 %v2232
  %v2933 = vpop.f32.mrb[0].mxu0
  %v2934 = vadd.f32 %v2260, %v2933
  %v2935 = vpop.f32.mrb[0].mxu0
  %2936 = vmatprep.mubr.f32.mxu0 0.0
  %2937 = vmatmul.mubr.f32.gmra.mrb[0].mxu0 %v2233
  %v2938 = vpop.f32.mrb[0].mxu0
  %v2939 = vadd.f32 %v2260, %v2938
  %v2940 = vpop.f32.mrb[0].mxu0
  %2941 = vmatprep.mubr.f32.mxu0 0.0
  %2942 = vmatmul.mubr.f32.gmra.mrb[0].mxu0 %v2234
  %v2943 = vpop.f32.mrb[0].mxu0
  %v2944 = vadd.f32 %v2260, %v2943
  %v2945 = vpop.f32.mrb[0].mxu0
  %2946 = vmatprep.mubr.f32.mxu0 0.0
  %2947 = vmatmul.mubr.f32.gmra.mrb[0].mxu0 %v2235
  %v2948 = vpop.f32.mrb[0].mxu0
  %v2949 = vadd.f32 %v2260, %v2948
  %v2950 = vpop.f32.mrb[0].mxu0
  %2951 = vmatprep.mubr.f32.mxu0 0.0
  %2952 = vmatmul.mubr.f32.gmra.mrb[0].mxu0 %v2236
  %v2953 = vpop.f32.mrb[0].mxu0
  %v2954 = vadd.f32 %v2260, %v2953
  %v2955 = vpop.f32.mrb[0].mxu0
  %2956 = vmatprep.mubr.f32.mxu0 0.0
  %2957 = vmatmul.mubr.f32.gmra.mrb[0].mxu0 %v2237
  %v2958 = vpop.f32.mrb[0].mxu0
  %v2959 = vadd.f32 %v2260, %v2958
  %v2960 = vpop.f32.mrb[0].mxu0
  %2961 = vmatprep.mubr.f32.mxu0 0.0
  %2962 = vmatmul.mubr.f32.gmra.mrb[0].mxu0 %v2238
  %v2963 = vpop.f32.mrb[0].mxu0
  %v2964 = vadd.f32 %v2260, %v2963
  %v2965 = vpop.f32.mrb[0].mxu0
  %2966 = vdwg.mxu0
  %vm2967 = vcmask 130048
  %2968 = vst.msk [vmem:[%s7] sm:$0xff] %vm2967, %v2329
  %2969 = vst.msk [vmem:[%s7 + $0x8] sm:$0xff] %vm2967, %v2334
  %2970 = vst.msk [vmem:[%s7 + $0x10] sm:$0xff] %vm2967, %v2339
  %2971 = vst.msk [vmem:[%s7 + $0x18] sm:$0xff] %vm2967, %v2344
  %2972 = vst.msk [vmem:[%s7 + $0x20] sm:$0xff] %vm2967, %v2349
  %2973 = vst.msk [vmem:[%s7 + $0x28] sm:$0xff] %vm2967, %v2354
  %2974 = vst.msk [vmem:[%s7 + $0x30] sm:$0xff] %vm2967, %v2359
  %2975 = vst.msk [vmem:[%s7 + $0x38] sm:$0xff] %vm2967, %v2364
  %2976 = vst.msk [vmem:[%s7 + $0x40] sm:$0xff] %vm2967, %v2369
  %2977 = vst.msk [vmem:[%s7 + $0x48] sm:$0xff] %vm2967, %v2374
  %2978 = vst.msk [vmem:[%s7 + $0x50] sm:$0xff] %vm2967, %v2379
  %2979 = vst.msk [vmem:[%s7 + $0x58] sm:$0xff] %vm2967, %v2384
  %2980 = vst.msk [vmem:[%s7 + $0x60] sm:$0xff] %vm2967, %v2389
  %2981 = vst.msk [vmem:[%s7 + $0x68] sm:$0xff] %vm2967, %v2394
  %2982 = vst.msk [vmem:[%s7 + $0x70] sm:$0xff] %vm2967, %v2399
  %2983 = vst.msk [vmem:[%s7 + $0x78] sm:$0xff] %vm2967, %v2404
  %2984 = vst.msk [vmem:[%s7 + $0x80] sm:$0xff] %vm2967, %v2409
  %2985 = vst.msk [vmem:[%s7 + $0x88] sm:$0xff] %vm2967, %v2414
  %2986 = vst.msk [vmem:[%s7 + $0x90] sm:$0xff] %vm2967, %v2419
  %2987 = vst.msk [vmem:[%s7 + $0x98] sm:$0xff] %vm2967, %v2424
  %2988 = vst.msk [vmem:[%s7 + $0xa0] sm:$0xff] %vm2967, %v2429
  %2989 = vst.msk [vmem:[%s7 + $0xa8] sm:$0xff] %vm2967, %v2434
  %2990 = vst.msk [vmem:[%s7 + $0xb0] sm:$0xff] %vm2967, %v2439
  %2991 = vst.msk [vmem:[%s7 + $0xb8] sm:$0xff] %vm2967, %v2444
  %2992 = vst.msk [vmem:[%s7 + $0xc0] sm:$0xff] %vm2967, %v2449
  %2993 = vst.msk [vmem:[%s7 + $0xc8] sm:$0xff] %vm2967, %v2454
  %2994 = vst.msk [vmem:[%s7 + $0xd0] sm:$0xff] %vm2967, %v2459
  %2995 = vst.msk [vmem:[%s7 + $0xd8] sm:$0xff] %vm2967, %v2464
  %2996 = vst.msk [vmem:[%s7 + $0xe0] sm:$0xff] %vm2967, %v2469
  %2997 = vst.msk [vmem:[%s7 + $0xe8] sm:$0xff] %vm2967, %v2474
  %2998 = vst.msk [vmem:[%s7 + $0xf0] sm:$0xff] %vm2967, %v2479
  %2999 = vst.msk [vmem:[%s7 + $0xf8] sm:$0xff] %vm2967, %v2484
  %3000 = vst.msk [vmem:[%s7 + $0x100] sm:$0xff] %vm2967, %v2489
  %3001 = vst.msk [vmem:[%s7 + $0x108] sm:$0xff] %vm2967, %v2494
  %3002 = vst.msk [vmem:[%s7 + $0x110] sm:$0xff] %vm2967, %v2499
  %3003 = vst.msk [vmem:[%s7 + $0x118] sm:$0xff] %vm2967, %v2504
  %3004 = vst.msk [vmem:[%s7 + $0x120] sm:$0xff] %vm2967, %v2509
  %3005 = vst.msk [vmem:[%s7 + $0x128] sm:$0xff] %vm2967, %v2514
  %3006 = vst.msk [vmem:[%s7 + $0x130] sm:$0xff] %vm2967, %v2519
  %3007 = vst.msk [vmem:[%s7 + $0x138] sm:$0xff] %vm2967, %v2524
  %3008 = vst.msk [vmem:[%s7 + $0x140] sm:$0xff] %vm2967, %v2529
  %3009 = vst.msk [vmem:[%s7 + $0x148] sm:$0xff] %vm2967, %v2534
  %3010 = vst.msk [vmem:[%s7 + $0x150] sm:$0xff] %vm2967, %v2539
  %3011 = vst.msk [vmem:[%s7 + $0x158] sm:$0xff] %vm2967, %v2544
  %3012 = vst.msk [vmem:[%s7 + $0x160] sm:$0xff] %vm2967, %v2549
  %3013 = vst.msk [vmem:[%s7 + $0x168] sm:$0xff] %vm2967, %v2554
  %3014 = vst.msk [vmem:[%s7 + $0x170] sm:$0xff] %vm2967, %v2559
  %3015 = vst.msk [vmem:[%s7 + $0x178] sm:$0xff] %vm2967, %v2564
  %3016 = vst.msk [vmem:[%s7 + $0x180] sm:$0xff] %vm2967, %v2569
  %3017 = vst.msk [vmem:[%s7 + $0x188] sm:$0xff] %vm2967, %v2574
  %3018 = vst.msk [vmem:[%s7 + $0x190] sm:$0xff] %vm2967, %v2579
  %3019 = vst.msk [vmem:[%s7 + $0x198] sm:$0xff] %vm2967, %v2584
  %3020 = vst.msk [vmem:[%s7 + $0x1a0] sm:$0xff] %vm2967, %v2589
  %3021 = vst.msk [vmem:[%s7 + $0x1a8] sm:$0xff] %vm2967, %v2594
  %3022 = vst.msk [vmem:[%s7 + $0x1b0] sm:$0xff] %vm2967, %v2599
  %3023 = vst.msk [vmem:[%s7 + $0x1b8] sm:$0xff] %vm2967, %v2604
  %3024 = vst.msk [vmem:[%s7 + $0x1c0] sm:$0xff] %vm2967, %v2609
  %3025 = vst.msk [vmem:[%s7 + $0x1c8] sm:$0xff] %vm2967, %v2614
  %3026 = vst.msk [vmem:[%s7 + $0x1d0] sm:$0xff] %vm2967, %v2619
  %3027 = vst.msk [vmem:[%s7 + $0x1d8] sm:$0xff] %vm2967, %v2624
  %3028 = vst.msk [vmem:[%s7 + $0x1e0] sm:$0xff] %vm2967, %v2629
  %3029 = vst.msk [vmem:[%s7 + $0x1e8] sm:$0xff] %vm2967, %v2634
  %3030 = vst.msk [vmem:[%s7 + $0x1f0] sm:$0xff] %vm2967, %v2639
  %3031 = vst.msk [vmem:[%s7 + $0x1f8] sm:$0xff] %vm2967, %v2644
  %3032 = vst.msk [vmem:[%s7 + $0x200] sm:$0xff] %vm2967, %v2649
  %3033 = vst.msk [vmem:[%s7 + $0x208] sm:$0xff] %vm2967, %v2654
  %3034 = vst.msk [vmem:[%s7 + $0x210] sm:$0xff] %vm2967, %v2659
  %3035 = vst.msk [vmem:[%s7 + $0x218] sm:$0xff] %vm2967, %v2664
  %3036 = vst.msk [vmem:[%s7 + $0x220] sm:$0xff] %vm2967, %v2669
  %3037 = vst.msk [vmem:[%s7 + $0x228] sm:$0xff] %vm2967, %v2674
  %3038 = vst.msk [vmem:[%s7 + $0x230] sm:$0xff] %vm2967, %v2679
  %3039 = vst.msk [vmem:[%s7 + $0x238] sm:$0xff] %vm2967, %v2684
  %3040 = vst.msk [vmem:[%s7 + $0x240] sm:$0xff] %vm2967, %v2689
  %3041 = vst.msk [vmem:[%s7 + $0x248] sm:$0xff] %vm2967, %v2694
  %3042 = vst.msk [vmem:[%s7 + $0x250] sm:$0xff] %vm2967, %v2699
  %3043 = vst.msk [vmem:[%s7 + $0x258] sm:$0xff] %vm2967, %v2704
  %3044 = vst.msk [vmem:[%s7 + $0x260] sm:$0xff] %vm2967, %v2709
  %3045 = vst.msk [vmem:[%s7 + $0x268] sm:$0xff] %vm2967, %v2714
  %3046 = vst.msk [vmem:[%s7 + $0x270] sm:$0xff] %vm2967, %v2719
  %3047 = vst.msk [vmem:[%s7 + $0x278] sm:$0xff] %vm2967, %v2724
  %3048 = vst.msk [vmem:[%s7 + $0x280] sm:$0xff] %vm2967, %v2729
  %3049 = vst.msk [vmem:[%s7 + $0x288] sm:$0xff] %vm2967, %v2734
  %3050 = vst.msk [vmem:[%s7 + $0x290] sm:$0xff] %vm2967, %v2739
  %3051 = vst.msk [vmem:[%s7 + $0x298] sm:$0xff] %vm2967, %v2744
  %3052 = vst.msk [vmem:[%s7 + $0x2a0] sm:$0xff] %vm2967, %v2749
  %3053 = vst.msk [vmem:[%s7 + $0x2a8] sm:$0xff] %vm2967, %v2754
  %3054 = vst.msk [vmem:[%s7 + $0x2b0] sm:$0xff] %vm2967, %v2759
  %3055 = vst.msk [vmem:[%s7 + $0x2b8] sm:$0xff] %vm2967, %v2764
  %3056 = vst.msk [vmem:[%s7 + $0x2c0] sm:$0xff] %vm2967, %v2769
  %3057 = vst.msk [vmem:[%s7 + $0x2c8] sm:$0xff] %vm2967, %v2774
  %3058 = vst.msk [vmem:[%s7 + $0x2d0] sm:$0xff] %vm2967, %v2779
  %3059 = vst.msk [vmem:[%s7 + $0x2d8] sm:$0xff] %vm2967, %v2784
  %3060 = vst.msk [vmem:[%s7 + $0x2e0] sm:$0xff] %vm2967, %v2789
  %3061 = vst.msk [vmem:[%s7 + $0x2e8] sm:$0xff] %vm2967, %v2794
  %3062 = vst.msk [vmem:[%s7 + $0x2f0] sm:$0xff] %vm2967, %v2799
  %3063 = vst.msk [vmem:[%s7 + $0x2f8] sm:$0xff] %vm2967, %v2804
  %3064 = vst.msk [vmem:[%s7 + $0x300] sm:$0xff] %vm2967, %v2809
  %3065 = vst.msk [vmem:[%s7 + $0x308] sm:$0xff] %vm2967, %v2814
  %3066 = vst.msk [vmem:[%s7 + $0x310] sm:$0xff] %vm2967, %v2819
  %3067 = vst.msk [vmem:[%s7 + $0x318] sm:$0xff] %vm2967, %v2824
  %3068 = vst.msk [vmem:[%s7 + $0x320] sm:$0xff] %vm2967, %v2829
  %3069 = vst.msk [vmem:[%s7 + $0x328] sm:$0xff] %vm2967, %v2834
  %3070 = vst.msk [vmem:[%s7 + $0x330] sm:$0xff] %vm2967, %v2839
  %3071 = vst.msk [vmem:[%s7 + $0x338] sm:$0xff] %vm2967, %v2844
  %3072 = vst.msk [vmem:[%s7 + $0x340] sm:$0xff] %vm2967, %v2849
  %3073 = vst.msk [vmem:[%s7 + $0x348] sm:$0xff] %vm2967, %v2854
  %3074 = vst.msk [vmem:[%s7 + $0x350] sm:$0xff] %vm2967, %v2859
  %3075 = vst.msk [vmem:[%s7 + $0x358] sm:$0xff] %vm2967, %v2864
  %3076 = vst.msk [vmem:[%s7 + $0x360] sm:$0xff] %vm2967, %v2869
  %3077 = vst.msk [vmem:[%s7 + $0x368] sm:$0xff] %vm2967, %v2874
  %3078 = vst.msk [vmem:[%s7 + $0x370] sm:$0xff] %vm2967, %v2879
  %3079 = vst.msk [vmem:[%s7 + $0x378] sm:$0xff] %vm2967, %v2884
  %3080 = vst.msk [vmem:[%s7 + $0x380] sm:$0xff] %vm2967, %v2889
  %3081 = vst.msk [vmem:[%s7 + $0x388] sm:$0xff] %vm2967, %v2894
  %3082 = vst.msk [vmem:[%s7 + $0x390] sm:$0xff] %vm2967, %v2899
  %3083 = vst.msk [vmem:[%s7 + $0x398] sm:$0xff] %vm2967, %v2904
  %3084 = vst.msk [vmem:[%s7 + $0x3a0] sm:$0xff] %vm2967, %v2909
  %3085 = vst.msk [vmem:[%s7 + $0x3a8] sm:$0xff] %vm2967, %v2914
  %3086 = vst.msk [vmem:[%s7 + $0x3b0] sm:$0xff] %vm2967, %v2919
  %3087 = vst.msk [vmem:[%s7 + $0x3b8] sm:$0xff] %vm2967, %v2924
  %3088 = vst.msk [vmem:[%s7 + $0x3c0] sm:$0xff] %vm2967, %v2929
  %3089 = vst.msk [vmem:[%s7 + $0x3c8] sm:$0xff] %vm2967, %v2934
  %3090 = vst.msk [vmem:[%s7 + $0x3d0] sm:$0xff] %vm2967, %v2939
  %3091 = vst.msk [vmem:[%s7 + $0x3d8] sm:$0xff] %vm2967, %v2944
  %3092 = vst.msk [vmem:[%s7 + $0x3e0] sm:$0xff] %vm2967, %v2949
  %3093 = vst.msk [vmem:[%s7 + $0x3e8] sm:$0xff] %vm2967, %v2954
  %3094 = vst.msk [vmem:[%s7 + $0x3f0] sm:$0xff] %vm2967, %v2959
  %3095 = vst.msk [vmem:[%s7 + $0x3f8] sm:$0xff] %vm2967, %v2964
  // Predicated region
  $region30: #{tpu_custom_call.1} parent=0 // pred_check
    _
  $region31: #{tpu_custom_call.1} parent=0 // pred_check_branch
    %3097 = sbr.rel (0) target = $region33
  $region32: #{tpu_custom_call.1} parent=0 // pred_region
    _
  $region33: #{tpu_custom_call.1} parent=0 // pred_fallthru
    _
  // Predicated region
  $region34: #{tpu_custom_call.1} parent=0 // pred_check
    _
  $region35: #{tpu_custom_call.1} parent=0 // pred_check_branch
    %3099 = sbr.rel (0) target = $region37
  $region36: #{tpu_custom_call.1} parent=0 // pred_region
    _
  $region37: #{tpu_custom_call.1} parent=0 // pred_fallthru
    _

</llo_original>
